<compile_context>
chip_gen: v7x
topology: tpu7x:2x2x1
jax: 0.10.0
libtpu: 0.0.40
codegen_flags: <defaults>
</compile_context>

<pallas_src>
import functools
import math

import jax
import jax.numpy as jnp
from jax.experimental import pallas as pl
from jax.experimental.pallas import tpu as pltpu


_SQRT_2_OVER_PI = math.sqrt(2.0 / math.pi)


def _gelu_tanh(x):
    # TODO(synk): torch.nn.GELU() defaults to the exact erf form; the tanh
    # approximation (used identically in the reference below) differs by
    # <~3e-3 absolute and lowers cleanly to the TPU EUP.
    return 0.5 * x * (1.0 + jnp.tanh(_SQRT_2_OVER_PI * (x + 0.044715 * x * x * x)))


def _layernorm_f32(x, gamma, beta, eps):
    mean = jnp.mean(x, axis=-1, keepdims=True)
    xc = x - mean
    var = jnp.mean(xc * xc, axis=-1, keepdims=True)
    return xc * jax.lax.rsqrt(var + eps) * gamma + beta


# ---------------------------------------------------------------------------
# Kernel 1: fused attention sub-block  (LN1 + QKV + MHA + out-proj + residual)
# ---------------------------------------------------------------------------
def _attn_block_kernel(x_ref, g_ref, b_ref, wqkv_ref, bqkv_ref, wo_ref, bo_ref,
                       o_ref, *, num_heads, head_dim, scale, eps):
    dm = num_heads * head_dim
    x = x_ref[...].astype(jnp.float32)                       # (S, dm)

    # LayerNorm1 fused (statistics in f32).
    h = _layernorm_f32(x, g_ref[...].astype(jnp.float32),
                       b_ref[...].astype(jnp.float32), eps)

    # Fused QKV projection: single wide MXU matmul, (S, 3*dm).
    qkv = jnp.dot(h, wqkv_ref[...], preferred_element_type=jnp.float32)
    qkv = qkv + bqkv_ref[...].astype(jnp.float32)

    # Residual + out-proj bias start the full-width accumulator.
    y = x + bo_ref[...].astype(jnp.float32)                  # (S, dm)

    for hd in range(num_heads):                               # static unroll
        lo = hd * head_dim
        # Scale Q once (S*D work) instead of scaling the (Sq, Sk) logits.
        q = qkv[:, lo:lo + head_dim] * scale
        k = qkv[:, dm + lo:dm + lo + head_dim]
        v = qkv[:, 2 * dm + lo:2 * dm + lo + head_dim]
        # Contract over D directly; no explicit .T / XLU transpose.
        s = jnp.einsum("qd,kd->qk", q, k, preferred_element_type=jnp.float32)
        s = s - jnp.max(s, axis=-1, keepdims=True)
        p = jnp.exp(s)
        denom = jnp.sum(p, axis=-1, keepdims=True)
        # Normalize the OUTPUT (S x D) rather than the probabilities (S x S).
        out_h = jnp.einsum("qk,kd->qd", p, v, preferred_element_type=jnp.float32)
        out_h = out_h * pl.reciprocal(denom, approx=False)
        # Distribute the output projection over heads:
        #   concat_h(out_h) @ Wo == sum_h out_h @ Wo[h*D:(h+1)*D, :]
        # -> no lane concatenation / masked partial stores; one dense store.
        y = y + jnp.dot(out_h, wo_ref[lo:lo + head_dim, :],
                        preferred_element_type=jnp.float32)

    o_ref[...] = y.astype(o_ref.dtype)


def attention_block(x, ln_g, ln_b, w_qkv, b_qkv, wo, bo, num_heads, eps=1e-5):
    b, s, dm = x.shape
    d = dm // num_heads
    flops = b * (2 * s * dm * 3 * dm              # QKV projection
                 + num_heads * 4 * s * s * d      # QK^T and P@V
                 + 2 * s * dm * dm)               # output projection
    bytes_accessed = 4 * (2 * b * s * dm + dm * 3 * dm + 3 * dm
                          + dm * dm + dm + 2 * dm)
    kernel = functools.partial(_attn_block_kernel, num_heads=num_heads,
                               head_dim=d, scale=1.0 / math.sqrt(d), eps=eps)
    return pl.pallas_call(
        kernel,
        out_shape=jax.ShapeDtypeStruct((b, s, dm), x.dtype),
        grid=(b,),
        in_specs=[
            pl.BlockSpec((None, s, dm), lambda i: (i, 0, 0)),
            pl.BlockSpec((1, dm), lambda i: (0, 0)),
            pl.BlockSpec((1, dm), lambda i: (0, 0)),
            pl.BlockSpec((dm, 3 * dm), lambda i: (0, 0)),
            pl.BlockSpec((1, 3 * dm), lambda i: (0, 0)),
            pl.BlockSpec((dm, dm), lambda i: (0, 0)),
            pl.BlockSpec((1, dm), lambda i: (0, 0)),
        ],
        out_specs=pl.BlockSpec((None, s, dm), lambda i: (i, 0, 0)),
        compiler_params=pltpu.CompilerParams(dimension_semantics=("parallel",)),
        cost_estimate=pl.CostEstimate(flops=int(flops),
                                      transcendentals=int(b * num_heads * s * s),
                                      bytes_accessed=int(bytes_accessed)),
    )(x, ln_g.reshape(1, dm), ln_b.reshape(1, dm),
      w_qkv, b_qkv.reshape(1, 3 * dm), wo, bo.reshape(1, dm))


# ---------------------------------------------------------------------------
# Kernel 2: fused FFN sub-block  (LN2 + W1 + GELU + W2 + residual)
# ---------------------------------------------------------------------------
def _ffn_block_kernel(x_ref, g_ref, b_ref, w1_ref, b1_ref, w2_ref, b2_ref,
                      o_ref, ln_ref, acc_ref, *, eps):
    j = pl.program_id(1)

    @pl.when(j == 0)
    def _():
        x = x_ref[...].astype(jnp.float32)
        ln_ref[...] = _layernorm_f32(x, g_ref[...].astype(jnp.float32),
                                     b_ref[...].astype(jnp.float32), eps)
        acc_ref[...] = jnp.zeros_like(acc_ref)

    h = ln_ref[...]                                           # (tm, dm) f32
    f = jnp.dot(h, w1_ref[...], preferred_element_type=jnp.float32)
    f = _gelu_tanh(f + b1_ref[...].astype(jnp.float32))       # (tm, tf) f32
    acc_ref[...] += jnp.dot(f, w2_ref[...], preferred_element_type=jnp.float32)

    @pl.when(j == pl.num_programs(1) - 1)
    def _():
        y = acc_ref[...] + b2_ref[...].astype(jnp.float32) \
            + x_ref[...].astype(jnp.float32)                  # residual fused
        o_ref[...] = y.astype(o_ref.dtype)


def _row_tile(m, cap=256):
    # Largest tile <= cap that divides M (cap kept modest for v7x's 64 MiB
    # VMEM); falls back to the full extent (always legal) for odd M.
    for t in (cap, cap // 2, cap // 4, 32, 16, 8):
        if t <= m and m % t == 0:
            return t
    return m


def _ff_tile(d_ff, cap=512):
    # d_ff tile must be a multiple of 128 (lane dim of the W1 block) or full.
    for t in (cap, cap // 2, cap // 4):
        if 128 <= t <= d_ff and d_ff % t == 0:
            return t
    return d_ff


def ffn_block(x, ln_g, ln_b, w1, b1, w2, b2, eps=1e-5):
    m, dm = x.shape
    d_ff = w1.shape[1]
    tm = _row_tile(m)
    tf = _ff_tile(d_ff)
    flops = 4 * m * dm * d_ff
    bytes_accessed = 4 * (2 * m * dm + 2 * dm * d_ff + d_ff + 4 * dm)
    return pl.pallas_call(
        functools.partial(_ffn_block_kernel, eps=eps),
        out_shape=jax.ShapeDtypeStruct((m, dm), x.dtype),
        grid=(m // tm, d_ff // tf),
        in_specs=[
            pl.BlockSpec((tm, dm), lambda i, j: (i, 0)),      # x (resident over j)
            pl.BlockSpec((1, dm), lambda i, j: (0, 0)),       # ln2 gamma
            pl.BlockSpec((1, dm), lambda i, j: (0, 0)),       # ln2 beta
            pl.BlockSpec((dm, tf), lambda i, j: (0, j)),      # W1 tile
            pl.BlockSpec((1, tf), lambda i, j: (0, j)),       # b1 tile
            pl.BlockSpec((tf, dm), lambda i, j: (j, 0)),      # W2 tile
            pl.BlockSpec((1, dm), lambda i, j: (0, 0)),       # b2
        ],
        out_specs=pl.BlockSpec((tm, dm), lambda i, j: (i, 0)),
        scratch_shapes=[pltpu.VMEM((tm, dm), jnp.float32),    # cached LN2(x)
                        pltpu.VMEM((tm, dm), jnp.float32)],   # f32 accumulator
        compiler_params=pltpu.CompilerParams(
            dimension_semantics=("parallel", "arbitrary")),
        cost_estimate=pl.CostEstimate(flops=int(flops),
                                      transcendentals=int(m * d_ff),
                                      bytes_accessed=int(bytes_accessed)),
    )(x, ln_g.reshape(1, dm), ln_b.reshape(1, dm),
      w1, b1.reshape(1, d_ff), w2, b2.reshape(1, dm))


# ---------------------------------------------------------------------------
# EncoderBlock forward (two fused Pallas kernels)
# ---------------------------------------------------------------------------
def encoder_block(x, params, num_heads):
    """Forward pass of EncoderBlock.

    Weights are stored as [in, out] (PyTorch Linear stores [out, in] and does
    x @ W.T — equivalent).  Expects params that already contain the fused
    "w_qkv"/"b_qkv" slabs (see fuse_params — built once, outside jit).
    """
    # TODO(synk): dropout is treated as identity (inference / eval mode);
    # training-mode dropout would need pltpu.prng_seed / prng_random_bits.
    b, s, dm = x.shape

    # --- attention sub-block: one fused kernel -----------------------------
    x = attention_block(x, params["ln1_g"], params["ln1_b"],
                        params["w_qkv"], params["b_qkv"],
                        params["wo"], params["bo"], num_heads)

    # --- FFN sub-block: one fused kernel ------------------------------------
    y = ffn_block(x.reshape(b * s, dm), params["ln2_g"], params["ln2_b"],
                  params["w1"], params["b1"], params["w2"], params["b2"])
    return y.reshape(b, s, dm)


def fuse_params(p):
    """Hoisted out of the forward: concatenate QKV weights once."""
    fp = dict(p)
    fp["w_qkv"] = jnp.concatenate([p["wq"], p["wk"], p["wv"]], axis=1)
    fp["b_qkv"] = jnp.concatenate([p["bq"], p["bk"], p["bv"]], axis=0)
    return fp


# ---------------------------------------------------------------------------
# pure-JAX reference (mirrors the PyTorch forward)
# ---------------------------------------------------------------------------
def _reference_encoder_block(x, p, num_heads):
    eps = 1e-5
    hp = jax.lax.Precision.HIGHEST
    bsz, s, dm = x.shape
    d = dm // num_heads

    def ln(y, g, b):
        mu = jnp.mean(y, -1, keepdims=True)
        var = jnp.mean((y - mu) ** 2, -1, keepdims=True)
        return (y - mu) / jnp.sqrt(var + eps) * g + b

    h = ln(x, p["ln1_g"], p["ln1_b"])
    q = jnp.einsum("bsd,df->bsf", h, p["wq"], precision=hp) + p["bq"]
    k = jnp.einsum("bsd,df->bsf", h, p["wk"], precision=hp) + p["bk"]
    v = jnp.einsum("bsd,df->bsf", h, p["wv"], precision=hp) + p["bv"]
    q = q.reshape(bsz, s, num_heads, d).transpose(0, 2, 1, 3)
    k = k.reshape(bsz, s, num_heads, d).transpose(0, 2, 1, 3)
    v = v.reshape(bsz, s, num_heads, d).transpose(0, 2, 1, 3)
    logits = jnp.einsum("bhqd,bhkd->bhqk", q, k, precision=hp) / math.sqrt(d)
    attn = jax.nn.softmax(logits, axis=-1)
    o = jnp.einsum("bhqk,bhkd->bhqd", attn, v, precision=hp)
    o = o.transpose(0, 2, 1, 3).reshape(bsz, s, dm)
    o = jnp.einsum("bsd,df->bsf", o, p["wo"], precision=hp) + p["bo"]
    x = x + o                                       # dropout == identity
    h2 = ln(x, p["ln2_g"], p["ln2_b"])
    f = jnp.einsum("bsd,df->bsf", h2, p["w1"], precision=hp) + p["b1"]
    f = _gelu_tanh(f)
    f = jnp.einsum("bsf,fd->bsd", f, p["w2"], precision=hp) + p["b2"]
    return x + f


def init_params(key, d_model, d_ff):
    ks = jax.random.split(key, 12)

    def w(k, fi, fo):
        return jax.random.normal(k, (fi, fo), jnp.float32) / math.sqrt(fi)

    def bias(k, fo):
        return jax.random.normal(k, (fo,), jnp.float32) * 0.02

    # NOTE: the PyTorch module zero-inits attention.out and FFN[-1] (making the
    # freshly-initialized block an identity); random weights are used here so
    # every kernel is numerically exercised. The zero-init behaviour is
    # verified separately in __main__.
    return {
        "ln1_g": jnp.ones((d_model,), jnp.float32),
        "ln1_b": jnp.zeros((d_model,), jnp.float32),
        "ln2_g": jnp.ones((d_model,), jnp.float32),
        "ln2_b": jnp.zeros((d_model,), jnp.float32),
        "wq": w(ks[0], d_model, d_model), "bq": bias(ks[1], d_model),
        "wk": w(ks[2], d_model, d_model), "bk": bias(ks[3], d_model),
        "wv": w(ks[4], d_model, d_model), "bv": bias(ks[5], d_model),
        "wo": w(ks[6], d_model, d_model), "bo": bias(ks[7], d_model),
        "w1": w(ks[8], d_model, d_ff),    "b1": bias(ks[9], d_ff),
        "w2": w(ks[10], d_ff, d_model),   "b2": bias(ks[11], d_model),
    }


if __name__ == "__main__":
    B, S = 2, 8
    D_MODEL, NUM_HEAD = 128, 8      # d_k = 16, H*d_k = 128 (lane-dense output)
    D_FF = 4 * D_MODEL

    key = jax.random.PRNGKey(0)
    kx, kp = jax.random.split(key)
    x = jax.random.normal(kx, (B, S, D_MODEL), jnp.float32)
    params = init_params(kp, D_MODEL, D_FF)
    fused = fuse_params(params)     # QKV concat hoisted out of the forward

    encoder_fn = jax.jit(functools.partial(encoder_block, num_heads=NUM_HEAD))

    out = encoder_fn(x, fused)
    jax.block_until_ready(out)

    ref = _reference_encoder_block(x, params, NUM_HEAD)
    assert out.shape == ref.shape
    err = float(jnp.max(jnp.abs(out - ref)))
    assert jnp.allclose(out, ref, atol=5e-4, rtol=5e-4), f"mismatch, max abs err {err}"

    # Faithfulness to the module's init: with zeroed out-projection and last
    # FFN linear (as in the PyTorch __init__), the block must act as identity.
    p0 = dict(params)
    p0["wo"] = jnp.zeros_like(params["wo"]); p0["bo"] = jnp.zeros_like(params["bo"])
    p0["w2"] = jnp.zeros_like(params["w2"]); p0["b2"] = jnp.zeros_like(params["b2"])
    out0 = encoder_fn(x, fuse_params(p0))
    jax.block_until_ready(out0)
    assert jnp.allclose(out0, x, atol=1e-6, rtol=1e-6), "zero-init block should be identity"

    print("KERNEL_OK")
</pallas_src>

<mosaic_0001>
module attributes {stable_mosaic.version = 11 : i64} {
  func.func @_attn_block_kernel(%arg0: i32, %arg1: memref<1x8x128xf32, #tpu.memory_space<vmem>>, %arg2: memref<1x128xf32, #tpu.memory_space<vmem>>, %arg3: memref<1x128xf32, #tpu.memory_space<vmem>>, %arg4: memref<128x384xf32, #tpu.memory_space<vmem>>, %arg5: memref<1x384xf32, #tpu.memory_space<vmem>>, %arg6: memref<128x128xf32, #tpu.memory_space<vmem>>, %arg7: memref<1x128xf32, #tpu.memory_space<vmem>>, %arg8: memref<1x8x128xf32, #tpu.memory_space<vmem>>) attributes {dimension_semantics = [#tpu.dimension_semantics<parallel>], iteration_bounds = array<i64: 2>, scalar_prefetch = 0 : i64, scratch_operands = 0 : i64, tpu.core_type = #tpu.core_type<tc>, window_params = [{transform_indices = @transform_0, window_bounds = array<i64: 1, 8, 128>}, {pipeline_mode = #tpu.pipeline_mode<synchronous>, transform_indices = @transform_1, window_bounds = array<i64: 1, 128>}, {pipeline_mode = #tpu.pipeline_mode<synchronous>, transform_indices = @transform_2, window_bounds = array<i64: 1, 128>}, {pipeline_mode = #tpu.pipeline_mode<synchronous>, transform_indices = @transform_3, window_bounds = array<i64: 128, 384>}, {pipeline_mode = #tpu.pipeline_mode<synchronous>, transform_indices = @transform_4, window_bounds = array<i64: 1, 384>}, {pipeline_mode = #tpu.pipeline_mode<synchronous>, transform_indices = @transform_5, window_bounds = array<i64: 128, 128>}, {pipeline_mode = #tpu.pipeline_mode<synchronous>, transform_indices = @transform_6, window_bounds = array<i64: 1, 128>}, {transform_indices = @transform_7, window_bounds = array<i64: 1, 8, 128>}]} {
    %c0 = arith.constant 0 : index
    %c0_0 = arith.constant 0 : index
    %c0_1 = arith.constant 0 : index
    %0 = vector.load %arg1[%c0, %c0_0, %c0_1] : memref<1x8x128xf32, #tpu.memory_space<vmem>>, vector<1x8x128xf32>
    %1 = vector.shape_cast %0 : vector<1x8x128xf32> to vector<8x128xf32>
    %c0_2 = arith.constant 0 : index
    %c0_3 = arith.constant 0 : index
    %2 = vector.load %arg2[%c0_2, %c0_3] : memref<1x128xf32, #tpu.memory_space<vmem>>, vector<1x128xf32>
    %c0_4 = arith.constant 0 : index
    %c0_5 = arith.constant 0 : index
    %3 = vector.load %arg3[%c0_4, %c0_5] : memref<1x128xf32, #tpu.memory_space<vmem>>, vector<1x128xf32>
    %cst = arith.constant dense<0.000000e+00> : vector<8xf32>
    %4 = vector.multi_reduction <add>, %1, %cst [1] : vector<8x128xf32> to vector<8xf32>
    %5 = vector.shape_cast %4 : vector<8xf32> to vector<8x1xf32>
    %cst_6 = arith.constant 1.280000e+02 : f32
    %6 = vector.broadcast %cst_6 : f32 to vector<8x1xf32>
    %7 = arith.divf %5, %6 : vector<8x1xf32>
    %8 = vector.broadcast %7 : vector<8x1xf32> to vector<8x128xf32>
    %9 = arith.subf %1, %8 : vector<8x128xf32>
    %10 = arith.mulf %9, %9 : vector<8x128xf32>
    %cst_7 = arith.constant dense<0.000000e+00> : vector<8xf32>
    %11 = vector.multi_reduction <add>, %10, %cst_7 [1] : vector<8x128xf32> to vector<8xf32>
    %12 = vector.shape_cast %11 : vector<8xf32> to vector<8x1xf32>
    %cst_8 = arith.constant 1.280000e+02 : f32
    %13 = vector.broadcast %cst_8 : f32 to vector<8x1xf32>
    %14 = arith.divf %12, %13 : vector<8x1xf32>
    %cst_9 = arith.constant 9.99999974E-6 : f32
    %15 = vector.broadcast %cst_9 : f32 to vector<8x1xf32>
    %16 = arith.addf %14, %15 : vector<8x1xf32>
    %17 = math.rsqrt %16 : vector<8x1xf32>
    %18 = vector.broadcast %17 : vector<8x1xf32> to vector<8x128xf32>
    %19 = arith.mulf %9, %18 : vector<8x128xf32>
    %20 = vector.broadcast %2 : vector<1x128xf32> to vector<8x128xf32>
    %21 = arith.mulf %19, %20 : vector<8x128xf32>
    %22 = vector.broadcast %3 : vector<1x128xf32> to vector<8x128xf32>
    %23 = arith.addf %21, %22 : vector<8x128xf32>
    %c0_10 = arith.constant 0 : index
    %c0_11 = arith.constant 0 : index
    %24 = vector.load %arg4[%c0_10, %c0_11] : memref<128x384xf32, #tpu.memory_space<vmem>>, vector<128x384xf32>
    %cst_12 = arith.constant dense<0.000000e+00> : vector<8x384xf32>
    %25 = tpu.matmul %23, %24, %cst_12 {dimension_numbers = #tpu.dot_dimension_numbers<[1], [0], [0], [1], [0, 0, 1, 1], [], []>} : vector<8x128xf32>, vector<128x384xf32>, vector<8x384xf32> -> vector<8x384xf32>
    %c0_13 = arith.constant 0 : index
    %c0_14 = arith.constant 0 : index
    %26 = vector.load %arg5[%c0_13, %c0_14] : memref<1x384xf32, #tpu.memory_space<vmem>>, vector<1x384xf32>
    %27 = vector.broadcast %26 : vector<1x384xf32> to vector<8x384xf32>
    %28 = arith.addf %25, %27 : vector<8x384xf32>
    %c0_15 = arith.constant 0 : index
    %c0_16 = arith.constant 0 : index
    %29 = vector.load %arg7[%c0_15, %c0_16] : memref<1x128xf32, #tpu.memory_space<vmem>>, vector<1x128xf32>
    %30 = vector.broadcast %29 : vector<1x128xf32> to vector<8x128xf32>
    %31 = arith.addf %1, %30 : vector<8x128xf32>
    %32 = vector.extract_strided_slice %28 {offsets = [0, 0], sizes = [8, 16], strides = [1, 1]} : vector<8x384xf32> to vector<8x16xf32>
    %cst_17 = arith.constant 2.500000e-01 : f32
    %33 = vector.broadcast %cst_17 : f32 to vector<8x16xf32>
    %34 = arith.mulf %32, %33 : vector<8x16xf32>
    %35 = vector.extract_strided_slice %28 {offsets = [0, 128], sizes = [8, 16], strides = [1, 1]} : vector<8x384xf32> to vector<8x16xf32>
    %36 = vector.extract_strided_slice %28 {offsets = [0, 256], sizes = [8, 16], strides = [1, 1]} : vector<8x384xf32> to vector<8x16xf32>
    "tpu.trace_start"() <{level = 10 : i32, message = "qd,kd->qk"}> : () -> ()
    %cst_18 = arith.constant dense<0.000000e+00> : vector<8x8xf32>
    %37 = tpu.matmul %34, %35, %cst_18 {dimension_numbers = #tpu.dot_dimension_numbers<[1], [1], [0], [0], [0, 0, 1, 0], [], []>} : vector<8x16xf32>, vector<8x16xf32>, vector<8x8xf32> -> vector<8x8xf32>
    "tpu.trace_stop"() : () -> ()
    %cst_19 = arith.constant dense<0xFF800000> : vector<8xf32>
    %38 = vector.multi_reduction <maximumf>, %37, %cst_19 [1] : vector<8x8xf32> to vector<8xf32>
    %39 = vector.shape_cast %38 : vector<8xf32> to vector<8x1xf32>
    %40 = vector.broadcast %39 : vector<8x1xf32> to vector<8x8xf32>
    %41 = arith.subf %37, %40 : vector<8x8xf32>
    %42 = math.exp %41 : vector<8x8xf32>
    %cst_20 = arith.constant dense<0.000000e+00> : vector<8xf32>
    %43 = vector.multi_reduction <add>, %42, %cst_20 [1] : vector<8x8xf32> to vector<8xf32>
    %44 = vector.shape_cast %43 : vector<8xf32> to vector<8x1xf32>
    "tpu.trace_start"() <{level = 10 : i32, message = "qk,kd->qd"}> : () -> ()
    %cst_21 = arith.constant dense<0.000000e+00> : vector<8x16xf32>
    %45 = tpu.matmul %42, %36, %cst_21 {dimension_numbers = #tpu.dot_dimension_numbers<[1], [0], [0], [1], [0, 0, 1, 1], [], []>} : vector<8x8xf32>, vector<8x16xf32>, vector<8x16xf32> -> vector<8x16xf32>
    "tpu.trace_stop"() : () -> ()
    %46 = tpu.reciprocal %44 : vector<8x1xf32> -> vector<8x1xf32>
    %47 = vector.broadcast %46 : vector<8x1xf32> to vector<8x16xf32>
    %48 = arith.mulf %45, %47 : vector<8x16xf32>
    %c0_22 = arith.constant 0 : index
    %c0_23 = arith.constant 0 : index
    %49 = vector.load %arg6[%c0_22, %c0_23] : memref<128x128xf32, #tpu.memory_space<vmem>>, vector<16x128xf32>
    %cst_24 = arith.constant dense<0.000000e+00> : vector<8x128xf32>
    %50 = tpu.matmul %48, %49, %cst_24 {dimension_numbers = #tpu.dot_dimension_numbers<[1], [0], [0], [1], [0, 0, 1, 1], [], []>} : vector<8x16xf32>, vector<16x128xf32>, vector<8x128xf32> -> vector<8x128xf32>
    %51 = arith.addf %31, %50 : vector<8x128xf32>
    %52 = vector.extract_strided_slice %28 {offsets = [0, 16], sizes = [8, 16], strides = [1, 1]} : vector<8x384xf32> to vector<8x16xf32>
    %cst_25 = arith.constant 2.500000e-01 : f32
    %53 = vector.broadcast %cst_25 : f32 to vector<8x16xf32>
    %54 = arith.mulf %52, %53 : vector<8x16xf32>
    %55 = vector.extract_strided_slice %28 {offsets = [0, 144], sizes = [8, 16], strides = [1, 1]} : vector<8x384xf32> to vector<8x16xf32>
    %56 = vector.extract_strided_slice %28 {offsets = [0, 272], sizes = [8, 16], strides = [1, 1]} : vector<8x384xf32> to vector<8x16xf32>
    "tpu.trace_start"() <{level = 10 : i32, message = "qd,kd->qk"}> : () -> ()
    %cst_26 = arith.constant dense<0.000000e+00> : vector<8x8xf32>
    %57 = tpu.matmul %54, %55, %cst_26 {dimension_numbers = #tpu.dot_dimension_numbers<[1], [1], [0], [0], [0, 0, 1, 0], [], []>} : vector<8x16xf32>, vector<8x16xf32>, vector<8x8xf32> -> vector<8x8xf32>
    "tpu.trace_stop"() : () -> ()
    %cst_27 = arith.constant dense<0xFF800000> : vector<8xf32>
    %58 = vector.multi_reduction <maximumf>, %57, %cst_27 [1] : vector<8x8xf32> to vector<8xf32>
    %59 = vector.shape_cast %58 : vector<8xf32> to vector<8x1xf32>
    %60 = vector.broadcast %59 : vector<8x1xf32> to vector<8x8xf32>
    %61 = arith.subf %57, %60 : vector<8x8xf32>
    %62 = math.exp %61 : vector<8x8xf32>
    %cst_28 = arith.constant dense<0.000000e+00> : vector<8xf32>
    %63 = vector.multi_reduction <add>, %62, %cst_28 [1] : vector<8x8xf32> to vector<8xf32>
    %64 = vector.shape_cast %63 : vector<8xf32> to vector<8x1xf32>
    "tpu.trace_start"() <{level = 10 : i32, message = "qk,kd->qd"}> : () -> ()
    %cst_29 = arith.constant dense<0.000000e+00> : vector<8x16xf32>
    %65 = tpu.matmul %62, %56, %cst_29 {dimension_numbers = #tpu.dot_dimension_numbers<[1], [0], [0], [1], [0, 0, 1, 1], [], []>} : vector<8x8xf32>, vector<8x16xf32>, vector<8x16xf32> -> vector<8x16xf32>
    "tpu.trace_stop"() : () -> ()
    %66 = tpu.reciprocal %64 : vector<8x1xf32> -> vector<8x1xf32>
    %67 = vector.broadcast %66 : vector<8x1xf32> to vector<8x16xf32>
    %68 = arith.mulf %65, %67 : vector<8x16xf32>
    %c16 = arith.constant 16 : index
    %c0_30 = arith.constant 0 : index
    %69 = vector.load %arg6[%c16, %c0_30] : memref<128x128xf32, #tpu.memory_space<vmem>>, vector<16x128xf32>
    %cst_31 = arith.constant dense<0.000000e+00> : vector<8x128xf32>
    %70 = tpu.matmul %68, %69, %cst_31 {dimension_numbers = #tpu.dot_dimension_numbers<[1], [0], [0], [1], [0, 0, 1, 1], [], []>} : vector<8x16xf32>, vector<16x128xf32>, vector<8x128xf32> -> vector<8x128xf32>
    %71 = arith.addf %51, %70 : vector<8x128xf32>
    %72 = vector.extract_strided_slice %28 {offsets = [0, 32], sizes = [8, 16], strides = [1, 1]} : vector<8x384xf32> to vector<8x16xf32>
    %cst_32 = arith.constant 2.500000e-01 : f32
    %73 = vector.broadcast %cst_32 : f32 to vector<8x16xf32>
    %74 = arith.mulf %72, %73 : vector<8x16xf32>
    %75 = vector.extract_strided_slice %28 {offsets = [0, 160], sizes = [8, 16], strides = [1, 1]} : vector<8x384xf32> to vector<8x16xf32>
    %76 = vector.extract_strided_slice %28 {offsets = [0, 288], sizes = [8, 16], strides = [1, 1]} : vector<8x384xf32> to vector<8x16xf32>
    "tpu.trace_start"() <{level = 10 : i32, message = "qd,kd->qk"}> : () -> ()
    %cst_33 = arith.constant dense<0.000000e+00> : vector<8x8xf32>
    %77 = tpu.matmul %74, %75, %cst_33 {dimension_numbers = #tpu.dot_dimension_numbers<[1], [1], [0], [0], [0, 0, 1, 0], [], []>} : vector<8x16xf32>, vector<8x16xf32>, vector<8x8xf32> -> vector<8x8xf32>
    "tpu.trace_stop"() : () -> ()
    %cst_34 = arith.constant dense<0xFF800000> : vector<8xf32>
    %78 = vector.multi_reduction <maximumf>, %77, %cst_34 [1] : vector<8x8xf32> to vector<8xf32>
    %79 = vector.shape_cast %78 : vector<8xf32> to vector<8x1xf32>
    %80 = vector.broadcast %79 : vector<8x1xf32> to vector<8x8xf32>
    %81 = arith.subf %77, %80 : vector<8x8xf32>
    %82 = math.exp %81 : vector<8x8xf32>
    %cst_35 = arith.constant dense<0.000000e+00> : vector<8xf32>
    %83 = vector.multi_reduction <add>, %82, %cst_35 [1] : vector<8x8xf32> to vector<8xf32>
    %84 = vector.shape_cast %83 : vector<8xf32> to vector<8x1xf32>
    "tpu.trace_start"() <{level = 10 : i32, message = "qk,kd->qd"}> : () -> ()
    %cst_36 = arith.constant dense<0.000000e+00> : vector<8x16xf32>
    %85 = tpu.matmul %82, %76, %cst_36 {dimension_numbers = #tpu.dot_dimension_numbers<[1], [0], [0], [1], [0, 0, 1, 1], [], []>} : vector<8x8xf32>, vector<8x16xf32>, vector<8x16xf32> -> vector<8x16xf32>
    "tpu.trace_stop"() : () -> ()
    %86 = tpu.reciprocal %84 : vector<8x1xf32> -> vector<8x1xf32>
    %87 = vector.broadcast %86 : vector<8x1xf32> to vector<8x16xf32>
    %88 = arith.mulf %85, %87 : vector<8x16xf32>
    %c32 = arith.constant 32 : index
    %c0_37 = arith.constant 0 : index
    %89 = vector.load %arg6[%c32, %c0_37] : memref<128x128xf32, #tpu.memory_space<vmem>>, vector<16x128xf32>
    %cst_38 = arith.constant dense<0.000000e+00> : vector<8x128xf32>
    %90 = tpu.matmul %88, %89, %cst_38 {dimension_numbers = #tpu.dot_dimension_numbers<[1], [0], [0], [1], [0, 0, 1, 1], [], []>} : vector<8x16xf32>, vector<16x128xf32>, vector<8x128xf32> -> vector<8x128xf32>
    %91 = arith.addf %71, %90 : vector<8x128xf32>
    %92 = vector.extract_strided_slice %28 {offsets = [0, 48], sizes = [8, 16], strides = [1, 1]} : vector<8x384xf32> to vector<8x16xf32>
    %cst_39 = arith.constant 2.500000e-01 : f32
    %93 = vector.broadcast %cst_39 : f32 to vector<8x16xf32>
    %94 = arith.mulf %92, %93 : vector<8x16xf32>
    %95 = vector.extract_strided_slice %28 {offsets = [0, 176], sizes = [8, 16], strides = [1, 1]} : vector<8x384xf32> to vector<8x16xf32>
    %96 = vector.extract_strided_slice %28 {offsets = [0, 304], sizes = [8, 16], strides = [1, 1]} : vector<8x384xf32> to vector<8x16xf32>
    "tpu.trace_start"() <{level = 10 : i32, message = "qd,kd->qk"}> : () -> ()
    %cst_40 = arith.constant dense<0.000000e+00> : vector<8x8xf32>
    %97 = tpu.matmul %94, %95, %cst_40 {dimension_numbers = #tpu.dot_dimension_numbers<[1], [1], [0], [0], [0, 0, 1, 0], [], []>} : vector<8x16xf32>, vector<8x16xf32>, vector<8x8xf32> -> vector<8x8xf32>
    "tpu.trace_stop"() : () -> ()
    %cst_41 = arith.constant dense<0xFF800000> : vector<8xf32>
    %98 = vector.multi_reduction <maximumf>, %97, %cst_41 [1] : vector<8x8xf32> to vector<8xf32>
    %99 = vector.shape_cast %98 : vector<8xf32> to vector<8x1xf32>
    %100 = vector.broadcast %99 : vector<8x1xf32> to vector<8x8xf32>
    %101 = arith.subf %97, %100 : vector<8x8xf32>
    %102 = math.exp %101 : vector<8x8xf32>
    %cst_42 = arith.constant dense<0.000000e+00> : vector<8xf32>
    %103 = vector.multi_reduction <add>, %102, %cst_42 [1] : vector<8x8xf32> to vector<8xf32>
    %104 = vector.shape_cast %103 : vector<8xf32> to vector<8x1xf32>
    "tpu.trace_start"() <{level = 10 : i32, message = "qk,kd->qd"}> : () -> ()
    %cst_43 = arith.constant dense<0.000000e+00> : vector<8x16xf32>
    %105 = tpu.matmul %102, %96, %cst_43 {dimension_numbers = #tpu.dot_dimension_numbers<[1], [0], [0], [1], [0, 0, 1, 1], [], []>} : vector<8x8xf32>, vector<8x16xf32>, vector<8x16xf32> -> vector<8x16xf32>
    "tpu.trace_stop"() : () -> ()
    %106 = tpu.reciprocal %104 : vector<8x1xf32> -> vector<8x1xf32>
    %107 = vector.broadcast %106 : vector<8x1xf32> to vector<8x16xf32>
    %108 = arith.mulf %105, %107 : vector<8x16xf32>
    %c48 = arith.constant 48 : index
    %c0_44 = arith.constant 0 : index
    %109 = vector.load %arg6[%c48, %c0_44] : memref<128x128xf32, #tpu.memory_space<vmem>>, vector<16x128xf32>
    %cst_45 = arith.constant dense<0.000000e+00> : vector<8x128xf32>
    %110 = tpu.matmul %108, %109, %cst_45 {dimension_numbers = #tpu.dot_dimension_numbers<[1], [0], [0], [1], [0, 0, 1, 1], [], []>} : vector<8x16xf32>, vector<16x128xf32>, vector<8x128xf32> -> vector<8x128xf32>
    %111 = arith.addf %91, %110 : vector<8x128xf32>
    %112 = vector.extract_strided_slice %28 {offsets = [0, 64], sizes = [8, 16], strides = [1, 1]} : vector<8x384xf32> to vector<8x16xf32>
    %cst_46 = arith.constant 2.500000e-01 : f32
    %113 = vector.broadcast %cst_46 : f32 to vector<8x16xf32>
    %114 = arith.mulf %112, %113 : vector<8x16xf32>
    %115 = vector.extract_strided_slice %28 {offsets = [0, 192], sizes = [8, 16], strides = [1, 1]} : vector<8x384xf32> to vector<8x16xf32>
    %116 = vector.extract_strided_slice %28 {offsets = [0, 320], sizes = [8, 16], strides = [1, 1]} : vector<8x384xf32> to vector<8x16xf32>
    "tpu.trace_start"() <{level = 10 : i32, message = "qd,kd->qk"}> : () -> ()
    %cst_47 = arith.constant dense<0.000000e+00> : vector<8x8xf32>
    %117 = tpu.matmul %114, %115, %cst_47 {dimension_numbers = #tpu.dot_dimension_numbers<[1], [1], [0], [0], [0, 0, 1, 0], [], []>} : vector<8x16xf32>, vector<8x16xf32>, vector<8x8xf32> -> vector<8x8xf32>
    "tpu.trace_stop"() : () -> ()
    %cst_48 = arith.constant dense<0xFF800000> : vector<8xf32>
    %118 = vector.multi_reduction <maximumf>, %117, %cst_48 [1] : vector<8x8xf32> to vector<8xf32>
    %119 = vector.shape_cast %118 : vector<8xf32> to vector<8x1xf32>
    %120 = vector.broadcast %119 : vector<8x1xf32> to vector<8x8xf32>
    %121 = arith.subf %117, %120 : vector<8x8xf32>
    %122 = math.exp %121 : vector<8x8xf32>
    %cst_49 = arith.constant dense<0.000000e+00> : vector<8xf32>
    %123 = vector.multi_reduction <add>, %122, %cst_49 [1] : vector<8x8xf32> to vector<8xf32>
    %124 = vector.shape_cast %123 : vector<8xf32> to vector<8x1xf32>
    "tpu.trace_start"() <{level = 10 : i32, message = "qk,kd->qd"}> : () -> ()
    %cst_50 = arith.constant dense<0.000000e+00> : vector<8x16xf32>
    %125 = tpu.matmul %122, %116, %cst_50 {dimension_numbers = #tpu.dot_dimension_numbers<[1], [0], [0], [1], [0, 0, 1, 1], [], []>} : vector<8x8xf32>, vector<8x16xf32>, vector<8x16xf32> -> vector<8x16xf32>
    "tpu.trace_stop"() : () -> ()
    %126 = tpu.reciprocal %124 : vector<8x1xf32> -> vector<8x1xf32>
    %127 = vector.broadcast %126 : vector<8x1xf32> to vector<8x16xf32>
    %128 = arith.mulf %125, %127 : vector<8x16xf32>
    %c64 = arith.constant 64 : index
    %c0_51 = arith.constant 0 : index
    %129 = vector.load %arg6[%c64, %c0_51] : memref<128x128xf32, #tpu.memory_space<vmem>>, vector<16x128xf32>
    %cst_52 = arith.constant dense<0.000000e+00> : vector<8x128xf32>
    %130 = tpu.matmul %128, %129, %cst_52 {dimension_numbers = #tpu.dot_dimension_numbers<[1], [0], [0], [1], [0, 0, 1, 1], [], []>} : vector<8x16xf32>, vector<16x128xf32>, vector<8x128xf32> -> vector<8x128xf32>
    %131 = arith.addf %111, %130 : vector<8x128xf32>
    %132 = vector.extract_strided_slice %28 {offsets = [0, 80], sizes = [8, 16], strides = [1, 1]} : vector<8x384xf32> to vector<8x16xf32>
    %cst_53 = arith.constant 2.500000e-01 : f32
    %133 = vector.broadcast %cst_53 : f32 to vector<8x16xf32>
    %134 = arith.mulf %132, %133 : vector<8x16xf32>
    %135 = vector.extract_strided_slice %28 {offsets = [0, 208], sizes = [8, 16], strides = [1, 1]} : vector<8x384xf32> to vector<8x16xf32>
    %136 = vector.extract_strided_slice %28 {offsets = [0, 336], sizes = [8, 16], strides = [1, 1]} : vector<8x384xf32> to vector<8x16xf32>
    "tpu.trace_start"() <{level = 10 : i32, message = "qd,kd->qk"}> : () -> ()
    %cst_54 = arith.constant dense<0.000000e+00> : vector<8x8xf32>
    %137 = tpu.matmul %134, %135, %cst_54 {dimension_numbers = #tpu.dot_dimension_numbers<[1], [1], [0], [0], [0, 0, 1, 0], [], []>} : vector<8x16xf32>, vector<8x16xf32>, vector<8x8xf32> -> vector<8x8xf32>
    "tpu.trace_stop"() : () -> ()
    %cst_55 = arith.constant dense<0xFF800000> : vector<8xf32>
    %138 = vector.multi_reduction <maximumf>, %137, %cst_55 [1] : vector<8x8xf32> to vector<8xf32>
    %139 = vector.shape_cast %138 : vector<8xf32> to vector<8x1xf32>
    %140 = vector.broadcast %139 : vector<8x1xf32> to vector<8x8xf32>
    %141 = arith.subf %137, %140 : vector<8x8xf32>
    %142 = math.exp %141 : vector<8x8xf32>
    %cst_56 = arith.constant dense<0.000000e+00> : vector<8xf32>
    %143 = vector.multi_reduction <add>, %142, %cst_56 [1] : vector<8x8xf32> to vector<8xf32>
    %144 = vector.shape_cast %143 : vector<8xf32> to vector<8x1xf32>
    "tpu.trace_start"() <{level = 10 : i32, message = "qk,kd->qd"}> : () -> ()
    %cst_57 = arith.constant dense<0.000000e+00> : vector<8x16xf32>
    %145 = tpu.matmul %142, %136, %cst_57 {dimension_numbers = #tpu.dot_dimension_numbers<[1], [0], [0], [1], [0, 0, 1, 1], [], []>} : vector<8x8xf32>, vector<8x16xf32>, vector<8x16xf32> -> vector<8x16xf32>
    "tpu.trace_stop"() : () -> ()
    %146 = tpu.reciprocal %144 : vector<8x1xf32> -> vector<8x1xf32>
    %147 = vector.broadcast %146 : vector<8x1xf32> to vector<8x16xf32>
    %148 = arith.mulf %145, %147 : vector<8x16xf32>
    %c80 = arith.constant 80 : index
    %c0_58 = arith.constant 0 : index
    %149 = vector.load %arg6[%c80, %c0_58] : memref<128x128xf32, #tpu.memory_space<vmem>>, vector<16x128xf32>
    %cst_59 = arith.constant dense<0.000000e+00> : vector<8x128xf32>
    %150 = tpu.matmul %148, %149, %cst_59 {dimension_numbers = #tpu.dot_dimension_numbers<[1], [0], [0], [1], [0, 0, 1, 1], [], []>} : vector<8x16xf32>, vector<16x128xf32>, vector<8x128xf32> -> vector<8x128xf32>
    %151 = arith.addf %131, %150 : vector<8x128xf32>
    %152 = vector.extract_strided_slice %28 {offsets = [0, 96], sizes = [8, 16], strides = [1, 1]} : vector<8x384xf32> to vector<8x16xf32>
    %cst_60 = arith.constant 2.500000e-01 : f32
    %153 = vector.broadcast %cst_60 : f32 to vector<8x16xf32>
    %154 = arith.mulf %152, %153 : vector<8x16xf32>
    %155 = vector.extract_strided_slice %28 {offsets = [0, 224], sizes = [8, 16], strides = [1, 1]} : vector<8x384xf32> to vector<8x16xf32>
    %156 = vector.extract_strided_slice %28 {offsets = [0, 352], sizes = [8, 16], strides = [1, 1]} : vector<8x384xf32> to vector<8x16xf32>
    "tpu.trace_start"() <{level = 10 : i32, message = "qd,kd->qk"}> : () -> ()
    %cst_61 = arith.constant dense<0.000000e+00> : vector<8x8xf32>
    %157 = tpu.matmul %154, %155, %cst_61 {dimension_numbers = #tpu.dot_dimension_numbers<[1], [1], [0], [0], [0, 0, 1, 0], [], []>} : vector<8x16xf32>, vector<8x16xf32>, vector<8x8xf32> -> vector<8x8xf32>
    "tpu.trace_stop"() : () -> ()
    %cst_62 = arith.constant dense<0xFF800000> : vector<8xf32>
    %158 = vector.multi_reduction <maximumf>, %157, %cst_62 [1] : vector<8x8xf32> to vector<8xf32>
    %159 = vector.shape_cast %158 : vector<8xf32> to vector<8x1xf32>
    %160 = vector.broadcast %159 : vector<8x1xf32> to vector<8x8xf32>
    %161 = arith.subf %157, %160 : vector<8x8xf32>
    %162 = math.exp %161 : vector<8x8xf32>
    %cst_63 = arith.constant dense<0.000000e+00> : vector<8xf32>
    %163 = vector.multi_reduction <add>, %162, %cst_63 [1] : vector<8x8xf32> to vector<8xf32>
    %164 = vector.shape_cast %163 : vector<8xf32> to vector<8x1xf32>
    "tpu.trace_start"() <{level = 10 : i32, message = "qk,kd->qd"}> : () -> ()
    %cst_64 = arith.constant dense<0.000000e+00> : vector<8x16xf32>
    %165 = tpu.matmul %162, %156, %cst_64 {dimension_numbers = #tpu.dot_dimension_numbers<[1], [0], [0], [1], [0, 0, 1, 1], [], []>} : vector<8x8xf32>, vector<8x16xf32>, vector<8x16xf32> -> vector<8x16xf32>
    "tpu.trace_stop"() : () -> ()
    %166 = tpu.reciprocal %164 : vector<8x1xf32> -> vector<8x1xf32>
    %167 = vector.broadcast %166 : vector<8x1xf32> to vector<8x16xf32>
    %168 = arith.mulf %165, %167 : vector<8x16xf32>
    %c96 = arith.constant 96 : index
    %c0_65 = arith.constant 0 : index
    %169 = vector.load %arg6[%c96, %c0_65] : memref<128x128xf32, #tpu.memory_space<vmem>>, vector<16x128xf32>
    %cst_66 = arith.constant dense<0.000000e+00> : vector<8x128xf32>
    %170 = tpu.matmul %168, %169, %cst_66 {dimension_numbers = #tpu.dot_dimension_numbers<[1], [0], [0], [1], [0, 0, 1, 1], [], []>} : vector<8x16xf32>, vector<16x128xf32>, vector<8x128xf32> -> vector<8x128xf32>
    %171 = arith.addf %151, %170 : vector<8x128xf32>
    %172 = vector.extract_strided_slice %28 {offsets = [0, 112], sizes = [8, 16], strides = [1, 1]} : vector<8x384xf32> to vector<8x16xf32>
    %cst_67 = arith.constant 2.500000e-01 : f32
    %173 = vector.broadcast %cst_67 : f32 to vector<8x16xf32>
    %174 = arith.mulf %172, %173 : vector<8x16xf32>
    %175 = vector.extract_strided_slice %28 {offsets = [0, 240], sizes = [8, 16], strides = [1, 1]} : vector<8x384xf32> to vector<8x16xf32>
    %176 = vector.extract_strided_slice %28 {offsets = [0, 368], sizes = [8, 16], strides = [1, 1]} : vector<8x384xf32> to vector<8x16xf32>
    "tpu.trace_start"() <{level = 10 : i32, message = "qd,kd->qk"}> : () -> ()
    %cst_68 = arith.constant dense<0.000000e+00> : vector<8x8xf32>
    %177 = tpu.matmul %174, %175, %cst_68 {dimension_numbers = #tpu.dot_dimension_numbers<[1], [1], [0], [0], [0, 0, 1, 0], [], []>} : vector<8x16xf32>, vector<8x16xf32>, vector<8x8xf32> -> vector<8x8xf32>
    "tpu.trace_stop"() : () -> ()
    %cst_69 = arith.constant dense<0xFF800000> : vector<8xf32>
    %178 = vector.multi_reduction <maximumf>, %177, %cst_69 [1] : vector<8x8xf32> to vector<8xf32>
    %179 = vector.shape_cast %178 : vector<8xf32> to vector<8x1xf32>
    %180 = vector.broadcast %179 : vector<8x1xf32> to vector<8x8xf32>
    %181 = arith.subf %177, %180 : vector<8x8xf32>
    %182 = math.exp %181 : vector<8x8xf32>
    %cst_70 = arith.constant dense<0.000000e+00> : vector<8xf32>
    %183 = vector.multi_reduction <add>, %182, %cst_70 [1] : vector<8x8xf32> to vector<8xf32>
    %184 = vector.shape_cast %183 : vector<8xf32> to vector<8x1xf32>
    "tpu.trace_start"() <{level = 10 : i32, message = "qk,kd->qd"}> : () -> ()
    %cst_71 = arith.constant dense<0.000000e+00> : vector<8x16xf32>
    %185 = tpu.matmul %182, %176, %cst_71 {dimension_numbers = #tpu.dot_dimension_numbers<[1], [0], [0], [1], [0, 0, 1, 1], [], []>} : vector<8x8xf32>, vector<8x16xf32>, vector<8x16xf32> -> vector<8x16xf32>
    "tpu.trace_stop"() : () -> ()
    %186 = tpu.reciprocal %184 : vector<8x1xf32> -> vector<8x1xf32>
    %187 = vector.broadcast %186 : vector<8x1xf32> to vector<8x16xf32>
    %188 = arith.mulf %185, %187 : vector<8x16xf32>
    %c112 = arith.constant 112 : index
    %c0_72 = arith.constant 0 : index
    %189 = vector.load %arg6[%c112, %c0_72] : memref<128x128xf32, #tpu.memory_space<vmem>>, vector<16x128xf32>
    %cst_73 = arith.constant dense<0.000000e+00> : vector<8x128xf32>
    %190 = tpu.matmul %188, %189, %cst_73 {dimension_numbers = #tpu.dot_dimension_numbers<[1], [0], [0], [1], [0, 0, 1, 1], [], []>} : vector<8x16xf32>, vector<16x128xf32>, vector<8x128xf32> -> vector<8x128xf32>
    %191 = arith.addf %171, %190 : vector<8x128xf32>
    %c0_74 = arith.constant 0 : index
    %c0_75 = arith.constant 0 : index
    %c0_76 = arith.constant 0 : index
    %192 = vector.load %arg8[%c0_74, %c0_75, %c0_76] : memref<1x8x128xf32, #tpu.memory_space<vmem>>, vector<1x8x128xf32>
    %193 = vector.shape_cast %192 : vector<1x8x128xf32> to vector<8x128xf32>
    %194 = vector.shape_cast %191 : vector<8x128xf32> to vector<1x8x128xf32>
    tpu.vector_store %arg8[%c0_74, %c0_75, %c0_76], %194 {strides = array<i32>} : memref<1x8x128xf32, #tpu.memory_space<vmem>>, vector<1x8x128xf32>,
    return
  }
  func.func @transform_0(%arg0: i32) -> (i32, i32, i32) {
    %c0_i32 = arith.constant 0 : i32
    %c0_i32_0 = arith.constant 0 : i32
    %c0_i32_1 = arith.constant 0 : i32
    return %arg0, %c0_i32, %c0_i32_0 : i32, i32, i32
  }
  func.func @transform_1(%arg0: i32) -> (i32, i32) {
    %c0_i32 = arith.constant 0 : i32
    %c0_i32_0 = arith.constant 0 : i32
    %c0_i32_1 = arith.constant 0 : i32
    return %c0_i32, %c0_i32_0 : i32, i32
  }
  func.func @transform_2(%arg0: i32) -> (i32, i32) {
    %c0_i32 = arith.constant 0 : i32
    %c0_i32_0 = arith.constant 0 : i32
    %c0_i32_1 = arith.constant 0 : i32
    return %c0_i32, %c0_i32_0 : i32, i32
  }
  func.func @transform_3(%arg0: i32) -> (i32, i32) {
    %c0_i32 = arith.constant 0 : i32
    %c0_i32_0 = arith.constant 0 : i32
    %c0_i32_1 = arith.constant 0 : i32
    return %c0_i32, %c0_i32_0 : i32, i32
  }
  func.func @transform_4(%arg0: i32) -> (i32, i32) {
    %c0_i32 = arith.constant 0 : i32
    %c0_i32_0 = arith.constant 0 : i32
    %c0_i32_1 = arith.constant 0 : i32
    return %c0_i32, %c0_i32_0 : i32, i32
  }
  func.func @transform_5(%arg0: i32) -> (i32, i32) {
    %c0_i32 = arith.constant 0 : i32
    %c0_i32_0 = arith.constant 0 : i32
    %c0_i32_1 = arith.constant 0 : i32
    return %c0_i32, %c0_i32_0 : i32, i32
  }
  func.func @transform_6(%arg0: i32) -> (i32, i32) {
    %c0_i32 = arith.constant 0 : i32
    %c0_i32_0 = arith.constant 0 : i32
    %c0_i32_1 = arith.constant 0 : i32
    return %c0_i32, %c0_i32_0 : i32, i32
  }
  func.func @transform_7(%arg0: i32) -> (i32, i32, i32) {
    %c0_i32 = arith.constant 0 : i32
    %c0_i32_0 = arith.constant 0 : i32
    %c0_i32_1 = arith.constant 0 : i32
    return %arg0, %c0_i32, %c0_i32_0 : i32, i32, i32
  }
}

module attributes {stable_mosaic.version = 11 : i64} {
  func.func @_ffn_block_kernel(%arg0: i32, %arg1: i32, %arg2: memref<16x128xf32, #tpu.memory_space<vmem>>, %arg3: memref<1x128xf32, #tpu.memory_space<vmem>>, %arg4: memref<1x128xf32, #tpu.memory_space<vmem>>, %arg5: memref<128x512xf32, #tpu.memory_space<vmem>>, %arg6: memref<1x512xf32, #tpu.memory_space<vmem>>, %arg7: memref<512x128xf32, #tpu.memory_space<vmem>>, %arg8: memref<1x128xf32, #tpu.memory_space<vmem>>, %arg9: memref<16x128xf32, #tpu.memory_space<vmem>>, %arg10: memref<16x128xf32, #tpu.memory_space<vmem>>, %arg11: memref<16x128xf32, #tpu.memory_space<vmem>>) attributes {dimension_semantics = [#tpu.dimension_semantics<parallel>, #tpu.dimension_semantics<arbitrary>], iteration_bounds = array<i64: 1, 1>, scalar_prefetch = 0 : i64, scratch_operands = 2 : i64, tpu.core_type = #tpu.core_type<tc>, window_params = [{transform_indices = @transform_0, window_bounds = array<i64: 16, 128>}, {pipeline_mode = #tpu.pipeline_mode<synchronous>, transform_indices = @transform_1, window_bounds = array<i64: 1, 128>}, {pipeline_mode = #tpu.pipeline_mode<synchronous>, transform_indices = @transform_2, window_bounds = array<i64: 1, 128>}, {transform_indices = @transform_3, window_bounds = array<i64: 128, 512>}, {transform_indices = @transform_4, window_bounds = array<i64: 1, 512>}, {transform_indices = @transform_5, window_bounds = array<i64: 512, 128>}, {pipeline_mode = #tpu.pipeline_mode<synchronous>, transform_indices = @transform_6, window_bounds = array<i64: 1, 128>}, {transform_indices = @transform_7, window_bounds = array<i64: 16, 128>}]} {
    %c0_i32 = arith.constant 0 : i32
    %0 = arith.cmpi eq, %arg1, %c0_i32 : i32
    %1 = arith.extui %0 : i1 to i32
    %c0_i32_0 = arith.constant 0 : i32
    %2 = arith.cmpi ne, %1, %c0_i32_0 : i32
    scf.if %2 {
      %c0_19 = arith.constant 0 : index
      %c0_20 = arith.constant 0 : index
      %30 = vector.load %arg2[%c0_19, %c0_20] : memref<16x128xf32, #tpu.memory_space<vmem>>, vector<16x128xf32>
      %c0_21 = arith.constant 0 : index
      %c0_22 = arith.constant 0 : index
      %31 = vector.load %arg3[%c0_21, %c0_22] : memref<1x128xf32, #tpu.memory_space<vmem>>, vector<1x128xf32>
      %c0_23 = arith.constant 0 : index
      %c0_24 = arith.constant 0 : index
      %32 = vector.load %arg4[%c0_23, %c0_24] : memref<1x128xf32, #tpu.memory_space<vmem>>, vector<1x128xf32>
      %cst_25 = arith.constant dense<0.000000e+00> : vector<16xf32>
      %33 = vector.multi_reduction <add>, %30, %cst_25 [1] : vector<16x128xf32> to vector<16xf32>
      %34 = vector.shape_cast %33 : vector<16xf32> to vector<16x1xf32>
      %cst_26 = arith.constant 1.280000e+02 : f32
      %35 = vector.broadcast %cst_26 : f32 to vector<16x1xf32>
      %36 = arith.divf %34, %35 : vector<16x1xf32>
      %37 = vector.broadcast %36 : vector<16x1xf32> to vector<16x128xf32>
      %38 = arith.subf %30, %37 : vector<16x128xf32>
      %39 = arith.mulf %38, %38 : vector<16x128xf32>
      %cst_27 = arith.constant dense<0.000000e+00> : vector<16xf32>
      %40 = vector.multi_reduction <add>, %39, %cst_27 [1] : vector<16x128xf32> to vector<16xf32>
      %41 = vector.shape_cast %40 : vector<16xf32> to vector<16x1xf32>
      %cst_28 = arith.constant 1.280000e+02 : f32
      %42 = vector.broadcast %cst_28 : f32 to vector<16x1xf32>
      %43 = arith.divf %41, %42 : vector<16x1xf32>
      %cst_29 = arith.constant 9.99999974E-6 : f32
      %44 = vector.broadcast %cst_29 : f32 to vector<16x1xf32>
      %45 = arith.addf %43, %44 : vector<16x1xf32>
      %46 = math.rsqrt %45 : vector<16x1xf32>
      %47 = vector.broadcast %46 : vector<16x1xf32> to vector<16x128xf32>
      %48 = arith.mulf %38, %47 : vector<16x128xf32>
      %49 = vector.broadcast %31 : vector<1x128xf32> to vector<16x128xf32>
      %50 = arith.mulf %48, %49 : vector<16x128xf32>
      %51 = vector.broadcast %32 : vector<1x128xf32> to vector<16x128xf32>
      %52 = arith.addf %50, %51 : vector<16x128xf32>
      %c0_30 = arith.constant 0 : index
      %c0_31 = arith.constant 0 : index
      %53 = vector.load %arg10[%c0_30, %c0_31] : memref<16x128xf32, #tpu.memory_space<vmem>>, vector<16x128xf32>
      tpu.vector_store %arg10[%c0_30, %c0_31], %52 {strides = array<i32>} : memref<16x128xf32, #tpu.memory_space<vmem>>, vector<16x128xf32>,
      %cst_32 = arith.constant 0.000000e+00 : f32
      %54 = vector.broadcast %cst_32 : f32 to vector<16x128xf32>
      %c0_33 = arith.constant 0 : index
      %c0_34 = arith.constant 0 : index
      %55 = vector.load %arg11[%c0_33, %c0_34] : memref<16x128xf32, #tpu.memory_space<vmem>>, vector<16x128xf32>
      tpu.vector_store %arg11[%c0_33, %c0_34], %54 {strides = array<i32>} : memref<16x128xf32, #tpu.memory_space<vmem>>, vector<16x128xf32>,
    } else {
    }
    %c0 = arith.constant 0 : index
    %c0_1 = arith.constant 0 : index
    %3 = vector.load %arg10[%c0, %c0_1] : memref<16x128xf32, #tpu.memory_space<vmem>>, vector<16x128xf32>
    %c0_2 = arith.constant 0 : index
    %c0_3 = arith.constant 0 : index
    %4 = vector.load %arg5[%c0_2, %c0_3] : memref<128x512xf32, #tpu.memory_space<vmem>>, vector<128x512xf32>
    %cst = arith.constant dense<0.000000e+00> : vector<16x512xf32>
    %5 = tpu.matmul %3, %4, %cst {dimension_numbers = #tpu.dot_dimension_numbers<[1], [0], [0], [1], [0, 0, 1, 1], [], []>} : vector<16x128xf32>, vector<128x512xf32>, vector<16x512xf32> -> vector<16x512xf32>
    %c0_4 = arith.constant 0 : index
    %c0_5 = arith.constant 0 : index
    %6 = vector.load %arg6[%c0_4, %c0_5] : memref<1x512xf32, #tpu.memory_space<vmem>>, vector<1x512xf32>
    %7 = vector.broadcast %6 : vector<1x512xf32> to vector<16x512xf32>
    %8 = arith.addf %5, %7 : vector<16x512xf32>
    %cst_6 = arith.constant 5.000000e-01 : f32
    %9 = vector.broadcast %cst_6 : f32 to vector<16x512xf32>
    %10 = arith.mulf %9, %8 : vector<16x512xf32>
    %cst_7 = arith.constant 4.471500e-02 : f32
    %11 = vector.broadcast %cst_7 : f32 to vector<16x512xf32>
    %12 = arith.mulf %11, %8 : vector<16x512xf32>
    %13 = arith.mulf %12, %8 : vector<16x512xf32>
    %14 = arith.mulf %13, %8 : vector<16x512xf32>
    %15 = arith.addf %8, %14 : vector<16x512xf32>
    %cst_8 = arith.constant 0.797884583 : f32
    %16 = vector.broadcast %cst_8 : f32 to vector<16x512xf32>
    %17 = arith.mulf %16, %15 : vector<16x512xf32>
    %18 = math.tanh %17 : vector<16x512xf32>
    %cst_9 = arith.constant 1.000000e+00 : f32
    %19 = vector.broadcast %cst_9 : f32 to vector<16x512xf32>
    %20 = arith.addf %19, %18 : vector<16x512xf32>
    %21 = arith.mulf %10, %20 : vector<16x512xf32>
    %c0_10 = arith.constant 0 : index
    %c0_11 = arith.constant 0 : index
    %22 = vector.load %arg11[%c0_10, %c0_11] : memref<16x128xf32, #tpu.memory_space<vmem>>, vector<16x128xf32>
    %c0_12 = arith.constant 0 : index
    %c0_13 = arith.constant 0 : index
    %23 = vector.load %arg7[%c0_12, %c0_13] : memref<512x128xf32, #tpu.memory_space<vmem>>, vector<512x128xf32>
    %cst_14 = arith.constant dense<0.000000e+00> : vector<16x128xf32>
    %24 = tpu.matmul %21, %23, %cst_14 {dimension_numbers = #tpu.dot_dimension_numbers<[1], [0], [0], [1], [0, 0, 1, 1], [], []>} : vector<16x512xf32>, vector<512x128xf32>, vector<16x128xf32> -> vector<16x128xf32>
    %25 = arith.addf %22, %24 : vector<16x128xf32>
    %c0_15 = arith.constant 0 : index
    %c0_16 = arith.constant 0 : index
    %26 = vector.load %arg11[%c0_15, %c0_16] : memref<16x128xf32, #tpu.memory_space<vmem>>, vector<16x128xf32>
    tpu.vector_store %arg11[%c0_15, %c0_16], %25 {strides = array<i32>} : memref<16x128xf32, #tpu.memory_space<vmem>>, vector<16x128xf32>,
    %c0_i32_17 = arith.constant 0 : i32
    %27 = arith.cmpi eq, %arg1, %c0_i32_17 : i32
    %28 = arith.extui %27 : i1 to i32
    %c0_i32_18 = arith.constant 0 : i32
    %29 = arith.cmpi ne, %28, %c0_i32_18 : i32
    scf.if %29 {
      %c0_19 = arith.constant 0 : index
      %c0_20 = arith.constant 0 : index
      %30 = vector.load %arg11[%c0_19, %c0_20] : memref<16x128xf32, #tpu.memory_space<vmem>>, vector<16x128xf32>
      %c0_21 = arith.constant 0 : index
      %c0_22 = arith.constant 0 : index
      %31 = vector.load %arg8[%c0_21, %c0_22] : memref<1x128xf32, #tpu.memory_space<vmem>>, vector<1x128xf32>
      %32 = vector.broadcast %31 : vector<1x128xf32> to vector<16x128xf32>
      %33 = arith.addf %30, %32 : vector<16x128xf32>
      %c0_23 = arith.constant 0 : index
      %c0_24 = arith.constant 0 : index
      %34 = vector.load %arg2[%c0_23, %c0_24] : memref<16x128xf32, #tpu.memory_space<vmem>>, vector<16x128xf32>
      %35 = arith.addf %33, %34 : vector<16x128xf32>
      %c0_25 = arith.constant 0 : index
      %c0_26 = arith.constant 0 : index
      %36 = vector.load %arg9[%c0_25, %c0_26] : memref<16x128xf32, #tpu.memory_space<vmem>>, vector<16x128xf32>
      tpu.vector_store %arg9[%c0_25, %c0_26], %35 {strides = array<i32>} : memref<16x128xf32, #tpu.memory_space<vmem>>, vector<16x128xf32>,
    } else {
    }
    return
  }
  func.func @transform_0(%arg0: i32, %arg1: i32) -> (i32, i32) {
    %c0_i32 = arith.constant 0 : i32
    %c0_i32_0 = arith.constant 0 : i32
    return %arg0, %c0_i32 : i32, i32
  }
  func.func @transform_1(%arg0: i32, %arg1: i32) -> (i32, i32) {
    %c0_i32 = arith.constant 0 : i32
    %c0_i32_0 = arith.constant 0 : i32
    %c0_i32_1 = arith.constant 0 : i32
    return %c0_i32, %c0_i32_0 : i32, i32
  }
  func.func @transform_2(%arg0: i32, %arg1: i32) -> (i32, i32) {
    %c0_i32 = arith.constant 0 : i32
    %c0_i32_0 = arith.constant 0 : i32
    %c0_i32_1 = arith.constant 0 : i32
    return %c0_i32, %c0_i32_0 : i32, i32
  }
  func.func @transform_3(%arg0: i32, %arg1: i32) -> (i32, i32) {
    %c0_i32 = arith.constant 0 : i32
    %c0_i32_0 = arith.constant 0 : i32
    return %c0_i32, %arg1 : i32, i32
  }
  func.func @transform_4(%arg0: i32, %arg1: i32) -> (i32, i32) {
    %c0_i32 = arith.constant 0 : i32
    %c0_i32_0 = arith.constant 0 : i32
    return %c0_i32, %arg1 : i32, i32
  }
  func.func @transform_5(%arg0: i32, %arg1: i32) -> (i32, i32) {
    %c0_i32 = arith.constant 0 : i32
    %c0_i32_0 = arith.constant 0 : i32
    return %arg1, %c0_i32 : i32, i32
  }
  func.func @transform_6(%arg0: i32, %arg1: i32) -> (i32, i32) {
    %c0_i32 = arith.constant 0 : i32
    %c0_i32_0 = arith.constant 0 : i32
    %c0_i32_1 = arith.constant 0 : i32
    return %c0_i32, %c0_i32_0 : i32, i32
  }
  func.func @transform_7(%arg0: i32, %arg1: i32) -> (i32, i32) {
    %c0_i32 = arith.constant 0 : i32
    %c0_i32_0 = arith.constant 0 : i32
    return %arg0, %c0_i32 : i32, i32
  }
}

</mosaic_0001>

<llo_original>
// kernel: encoder_block.2
$region0: #{encoder_block.2}
  #allocation0 [shape = 'u32[]', space=smem, size = 0x4, offset = 0x4, fixed_abs, tag = 'smem constant byte address 0x4 - core index']
  #allocation1 [shape = 'u32[144,128]{1,0:T(1,128)}', space=vmem, size = 0x12000, scoped, tag = 'internal scratch']
  %s0 = inlined_call_operand.hbm [shape: f32[2,8,128], index: 0, kind: input, shape index: {}]
  %s1 = inlined_call_operand.hbm [shape: f32[1,128], index: 1, kind: input, shape index: {}]
  %s2 = inlined_call_operand.hbm [shape: f32[1,128], index: 2, kind: input, shape index: {}]
  %s3 = inlined_call_operand.hbm [shape: f32[128,384], index: 3, kind: input, shape index: {}]
  %s4 = inlined_call_operand.vmem [shape: f32[1,384], index: 4, kind: input, shape index: {}]
  %s5 = inlined_call_operand.hbm [shape: f32[128,128], index: 5, kind: input, shape index: {}]
  %s6 = inlined_call_operand.hbm [shape: f32[1,128], index: 6, kind: input, shape index: {}]
  %s7 = inlined_call_operand.vmem [shape: f32[2,8,128], index: 7, kind: output, shape index: {}]
  %s8 = sld [smem:[#allocation0]]
  $region85: #{encoder_block.2} parent=0
    _
  %s10 = ssub.s32 1, %s8
  %s11 = scalar_select 0, %s10, %s8
  $region1: #{encoder_block.2} parent=0
    #allocation2 [shape = 'u8[8192]{0}', space=vmem, size = 0x2000, scoped, tag = 'input window, operand 0']
    #allocation3 [shape = 's32[2]{0}', space=sflag, size = 0x8, scoped, tag = 'scoped memory for encoder_block.2']
    #allocation4 [shape = 'u8[512]{0}', space=vmem, size = 0x400, scoped, tag = 'input window, operand 1, single buffered']
    #allocation5 [shape = 's32[1]{0}', space=sflag, size = 0x4, scoped, tag = 'scoped memory for encoder_block.2']
    #allocation6 [shape = 'u8[512]{0}', space=vmem, size = 0x400, scoped, tag = 'input window, operand 2, single buffered']
    #allocation7 [shape = 'u8[196608]{0}', space=vmem, size = 0x30000, scoped, tag = 'input window, operand 3, single buffered']
    #allocation8 [shape = 's32[1]{0}', space=sflag, size = 0x4, scoped, tag = 'scoped memory for encoder_block.2']
    #allocation9 [shape = 'u8[65536]{0}', space=vmem, size = 0x10000, scoped, tag = 'input window, operand 5, single buffered']
    #allocation10 [shape = 'u8[512]{0}', space=vmem, size = 0x400, scoped, tag = 'input window, operand 6, single buffered']
    #allocation11 [shape = 's32[1]{0}', space=sflag, size = 0x4, scoped, tag = 'scoped memory for encoder_block.2']
    %12 = vsyncpa [#allocation3], 0
    %s13 = scalar_lea.sflag [#allocation3], 1
    %14 = vsyncpa %s13, 0
    %15 = vsyncpa [#allocation5], 0
    %16 = vsyncpa [#allocation8], 0
    %17 = vsyncpa [#allocation11], 0
    loop: start=0, step=1, limit=4
    $region2: #{encoder_block.2} parent=1 // loop_pre_header
      _
    $region3: #{encoder_block.2} parent=1 // loop_header
      %s19 = sphi 0, %s23
      %p20 = scmp.ge.s32.totalorder %s19, 4
      %s29 = sphi 0, %s31
      %s32 = sphi 0, %s29
      %s33 = sphi 0, %s32
      %s49 = sphi 0, %s33
      %s53 = sphi 0, %s53
      %s55 = sphi 0, %s53
      %s56 = sphi 0, %s55
      %s70 = sphi 0, %s56
      %s74 = sphi 0, %s74
      %s76 = sphi 0, %s74
      %s77 = sphi 0, %s76
      %s91 = sphi 0, %s77
      %s95 = sphi 0, %s95
      %s97 = sphi 0, %s95
      %s98 = sphi 0, %s97
      %s112 = sphi 0, %s98
      %s116 = sphi 0, %s116
      %s118 = sphi 0, %s116
      %s119 = sphi 0, %s118
      %s133 = sphi 0, %s119
      %s137 = sphi 0, %s137
      %s139 = sphi 0, %s137
      %s140 = sphi 0, %s139
      %s154 = sphi 0, %s140
      %s158 = sphi 0, %s158
      %s160 = sphi 0, %s158
      %s161 = sphi 0, %s160
      %s175 = sphi 0, %s161
      %s181 = sphi 0, %s183
      %s184 = sphi 0, %s181
      %s185 = sphi 0, %s184
      %s201 = sphi 0, %s185
    $region4: #{encoder_block.2} parent=1 // loop_header_branch
      %22 = sbr.rel (%p20) target = $region8
    $region5: #{encoder_block.2} parent=1 // loop_body
      %s24 = ssub.s32 %s19, 1
      %s25 = ssub.s32 %s19, 2
      %s26 = sadd.s32 %s19, 1
      %s27 = ssub.s32 %s19, %s26
      %p28 = scmp.eq.s32.totalorder %s27, 0
      %s30 = sadd.s32 %s29, 1
      %s31 = scalar_select %p28, %s29, %s30
      %p34 = pneg %p28
      %p35 = scmp.eq.s32.totalorder %s19, 1
      %p36 = por %p34, %p35
      %p37 = scmp.ne.s32.totalorder %s29, %s32
      %p38 = scmp.eq.s32.totalorder %s19, 0
      %p39 = por %p37, %p38
      %p40 = scmp.ne.s32.totalorder %s29, %s32
      %p41 = scmp.eq.s32.totalorder %s24, 1
      %p42 = por %p40, %p41
      %p43 = scmp.ne.s32.totalorder %s32, %s33
      %p44 = scmp.eq.s32.totalorder %s24, 0
      %p45 = por %p43, %p44
      %p46 = scmp.ne.s32.totalorder %s32, %s33
      %p47 = scmp.eq.s32.totalorder %s25, 1
      %p48 = por %p46, %p47
      %p50 = scmp.ne.s32.totalorder %s33, %s49
      %p51 = scmp.eq.s32.totalorder %s25, 0
      %p52 = por %p50, %p51
      %s54 = sadd.s32 %s53, 1
      %p57 = scmp.eq.s32.totalorder %s19, 1
      %p58 = scmp.ne.s32.totalorder %s53, %s55
      %p59 = scmp.eq.s32.totalorder %s19, 0
      %p60 = por %p58, %p59
      %p61 = scmp.ne.s32.totalorder %s53, %s55
      %p62 = scmp.eq.s32.totalorder %s24, 1
      %p63 = por %p61, %p62
      %p64 = scmp.ne.s32.totalorder %s55, %s56
      %p65 = scmp.eq.s32.totalorder %s24, 0
      %p66 = por %p64, %p65
      %p67 = scmp.ne.s32.totalorder %s55, %s56
      %p68 = scmp.eq.s32.totalorder %s25, 1
      %p69 = por %p67, %p68
      %p71 = scmp.ne.s32.totalorder %s56, %s70
      %p72 = scmp.eq.s32.totalorder %s25, 0
      %p73 = por %p71, %p72
      %s75 = sadd.s32 %s74, 1
      %p78 = scmp.eq.s32.totalorder %s19, 1
      %p79 = scmp.ne.s32.totalorder %s74, %s76
      %p80 = scmp.eq.s32.totalorder %s19, 0
      %p81 = por %p79, %p80
      %p82 = scmp.ne.s32.totalorder %s74, %s76
      %p83 = scmp.eq.s32.totalorder %s24, 1
      %p84 = por %p82, %p83
      %p85 = scmp.ne.s32.totalorder %s76, %s77
      %p86 = scmp.eq.s32.totalorder %s24, 0
      %p87 = por %p85, %p86
      %p88 = scmp.ne.s32.totalorder %s76, %s77
      %p89 = scmp.eq.s32.totalorder %s25, 1
      %p90 = por %p88, %p89
      %p92 = scmp.ne.s32.totalorder %s77, %s91
      %p93 = scmp.eq.s32.totalorder %s25, 0
      %p94 = por %p92, %p93
      %s96 = sadd.s32 %s95, 1
      %p99 = scmp.eq.s32.totalorder %s19, 1
      %p100 = scmp.ne.s32.totalorder %s95, %s97
      %p101 = scmp.eq.s32.totalorder %s19, 0
      %p102 = por %p100, %p101
      %p103 = scmp.ne.s32.totalorder %s95, %s97
      %p104 = scmp.eq.s32.totalorder %s24, 1
      %p105 = por %p103, %p104
      %p106 = scmp.ne.s32.totalorder %s97, %s98
      %p107 = scmp.eq.s32.totalorder %s24, 0
      %p108 = por %p106, %p107
      %p109 = scmp.ne.s32.totalorder %s97, %s98
      %p110 = scmp.eq.s32.totalorder %s25, 1
      %p111 = por %p109, %p110
      %p113 = scmp.ne.s32.totalorder %s98, %s112
      %p114 = scmp.eq.s32.totalorder %s25, 0
      %p115 = por %p113, %p114
      %s117 = sadd.s32 %s116, 1
      %p120 = scmp.eq.s32.totalorder %s19, 1
      %p121 = scmp.ne.s32.totalorder %s116, %s118
      %p122 = scmp.eq.s32.totalorder %s19, 0
      %p123 = por %p121, %p122
      %p124 = scmp.ne.s32.totalorder %s116, %s118
      %p125 = scmp.eq.s32.totalorder %s24, 1
      %p126 = por %p124, %p125
      %p127 = scmp.ne.s32.totalorder %s118, %s119
      %p128 = scmp.eq.s32.totalorder %s24, 0
      %p129 = por %p127, %p128
      %p130 = scmp.ne.s32.totalorder %s118, %s119
      %p131 = scmp.eq.s32.totalorder %s25, 1
      %p132 = por %p130, %p131
      %p134 = scmp.ne.s32.totalorder %s119, %s133
      %p135 = scmp.eq.s32.totalorder %s25, 0
      %p136 = por %p134, %p135
      %s138 = sadd.s32 %s137, 1
      %p141 = scmp.eq.s32.totalorder %s19, 1
      %p142 = scmp.ne.s32.totalorder %s137, %s139
      %p143 = scmp.eq.s32.totalorder %s19, 0
      %p144 = por %p142, %p143
      %p145 = scmp.ne.s32.totalorder %s137, %s139
      %p146 = scmp.eq.s32.totalorder %s24, 1
      %p147 = por %p145, %p146
      %p148 = scmp.ne.s32.totalorder %s139, %s140
      %p149 = scmp.eq.s32.totalorder %s24, 0
      %p150 = por %p148, %p149
      %p151 = scmp.ne.s32.totalorder %s139, %s140
      %p152 = scmp.eq.s32.totalorder %s25, 1
      %p153 = por %p151, %p152
      %p155 = scmp.ne.s32.totalorder %s140, %s154
      %p156 = scmp.eq.s32.totalorder %s25, 0
      %p157 = por %p155, %p156
      %s159 = sadd.s32 %s158, 1
      %p162 = scmp.eq.s32.totalorder %s19, 1
      %p163 = scmp.ne.s32.totalorder %s158, %s160
      %p164 = scmp.eq.s32.totalorder %s19, 0
      %p165 = por %p163, %p164
      %p166 = scmp.ne.s32.totalorder %s158, %s160
      %p167 = scmp.eq.s32.totalorder %s24, 1
      %p168 = por %p166, %p167
      %p169 = scmp.ne.s32.totalorder %s160, %s161
      %p170 = scmp.eq.s32.totalorder %s24, 0
      %p171 = por %p169, %p170
      %p172 = scmp.ne.s32.totalorder %s160, %s161
      %p173 = scmp.eq.s32.totalorder %s25, 1
      %p174 = por %p172, %p173
      %p176 = scmp.ne.s32.totalorder %s161, %s175
      %p177 = scmp.eq.s32.totalorder %s25, 0
      %p178 = por %p176, %p177
      %s179 = ssub.s32 %s19, %s26
      %p180 = scmp.eq.s32.totalorder %s179, 0
      %s182 = sadd.s32 %s181, 1
      %s183 = scalar_select %p180, %s181, %s182
      %p186 = pneg %p180
      %p187 = scmp.eq.s32.totalorder %s19, 1
      %p188 = por %p186, %p187
      %p189 = scmp.ne.s32.totalorder %s181, %s184
      %p190 = scmp.eq.s32.totalorder %s19, 0
      %p191 = por %p189, %p190
      %p192 = scmp.ne.s32.totalorder %s181, %s184
      %p193 = scmp.eq.s32.totalorder %s24, 1
      %p194 = por %p192, %p193
      %p195 = scmp.ne.s32.totalorder %s184, %s185
      %p196 = scmp.eq.s32.totalorder %s24, 0
      %p197 = por %p195, %p196
      %p198 = scmp.ne.s32.totalorder %s184, %s185
      %p199 = scmp.eq.s32.totalorder %s25, 1
      %p200 = por %p198, %p199
      %p202 = scmp.ne.s32.totalorder %s185, %s201
      %p203 = scmp.eq.s32.totalorder %s25, 0
      %p204 = por %p202, %p203
      %p205 = scmp.le.s32.totalorder 1, %s19
      %p206 = scmp.lt.s32.totalorder %s19, 3
      %p207 = pnand %p205, %p206
      %p208 = pneg %p207
      // Predicated region
      $region9: #{encoder_block.2} parent=5 // pred_check
        _
      $region10: #{encoder_block.2} parent=5 // pred_check_branch
        %210 = sbr.rel (%p207) target = $region12
      $region11: #{encoder_block.2} parent=5 // pred_region
        %s211 = ssub.s32 %s19, 1
        // Predicated region
        $region13: #{encoder_block.2} parent=11 // pred_check
          %p212 = pneg %p66
        $region14: #{encoder_block.2} parent=11 // pred_check_branch
          %214 = sbr.rel (%p212) target = $region16
        $region15: #{encoder_block.2} parent=11 // pred_region
          %s216 = ssub.s32 16, 16
          %217 = vsyncadd [#allocation5], %s216
          %s219 = sshll.u32 [#allocation4], 4
          %s220 = int_to_ptr.vmem [resolvable:$true] %s219
          %222 = dma.hbm_to_vmem [thread:$0]  %s1, 16, %s220, [#allocation5]
        $region16: #{encoder_block.2} parent=11 // pred_fallthru
          _
        // Predicated region
        $region17: #{encoder_block.2} parent=11 // pred_check
          %p223 = pneg %p87
        $region18: #{encoder_block.2} parent=11 // pred_check_branch
          %225 = sbr.rel (%p223) target = $region20
        $region19: #{encoder_block.2} parent=11 // pred_region
          %s227 = ssub.s32 16, 16
          %228 = vsyncadd [#allocation5], %s227
          %s230 = sshll.u32 [#allocation6], 4
          %s231 = int_to_ptr.vmem [resolvable:$true] %s230
          %233 = dma.hbm_to_vmem [thread:$0]  %s2, 16, %s231, [#allocation5]
        $region20: #{encoder_block.2} parent=11 // pred_fallthru
          _
        // Predicated region
        $region21: #{encoder_block.2} parent=11 // pred_check
          %p234 = pneg %p108
        $region22: #{encoder_block.2} parent=11 // pred_check_branch
          %236 = sbr.rel (%p234) target = $region24
        $region23: #{encoder_block.2} parent=11 // pred_region
          %s238 = ssub.s32 6144, 6144
          %239 = vsyncadd [#allocation8], %s238
          %s240 = sshll.u32 [#allocation7], 4
          %s241 = int_to_ptr.vmem [resolvable:$true] %s240
          %246 = dma.hbm_to_vmem [thread:$0]  %s3, 6144, %s241, [#allocation8], 384, 384, 24
        $region24: #{encoder_block.2} parent=11 // pred_fallthru
          _
        // Predicated region
        $region25: #{encoder_block.2} parent=11 // pred_check
          %p247 = pneg %p129
        $region26: #{encoder_block.2} parent=11 // pred_check_branch
          %249 = sbr.rel (%p247) target = $region28
        $region27: #{encoder_block.2} parent=11 // pred_region
          _
        $region28: #{encoder_block.2} parent=11 // pred_fallthru
          _
        // Predicated region
        $region29: #{encoder_block.2} parent=11 // pred_check
          %p250 = pneg %p150
        $region30: #{encoder_block.2} parent=11 // pred_check_branch
          %252 = sbr.rel (%p250) target = $region32
        $region31: #{encoder_block.2} parent=11 // pred_region
          %s254 = ssub.s32 2048, 2048
          %255 = vsyncadd [#allocation8], %s254
          %s256 = sshll.u32 [#allocation9], 4
          %s257 = int_to_ptr.vmem [resolvable:$true] %s256
          %262 = dma.hbm_to_vmem [thread:$0]  %s5, 2048, %s257, [#allocation8], 128, 128, 8
        $region32: #{encoder_block.2} parent=11 // pred_fallthru
          _
        // Predicated region
        $region33: #{encoder_block.2} parent=11 // pred_check
          %p263 = pneg %p171
        $region34: #{encoder_block.2} parent=11 // pred_check_branch
          %265 = sbr.rel (%p263) target = $region36
        $region35: #{encoder_block.2} parent=11 // pred_region
          %s267 = ssub.s32 16, 16
          %268 = vsyncadd [#allocation11], %s267
          %s270 = sshll.u32 [#allocation10], 4
          %s271 = int_to_ptr.vmem [resolvable:$true] %s270
          %273 = dma.hbm_to_vmem [thread:$0]  %s6, 16, %s271, [#allocation11]
        $region36: #{encoder_block.2} parent=11 // pred_fallthru
          _
      $region12: #{encoder_block.2} parent=5 // pred_fallthru
        _
      %p274 = scmp.lt.s32.totalorder %s19, 2
      // Predicated region
      $region37: #{encoder_block.2} parent=5 // pred_check
        %p275 = pneg %p274
      $region38: #{encoder_block.2} parent=5 // pred_check_branch
        %277 = sbr.rel (%p275) target = $region40
      $region39: #{encoder_block.2} parent=5 // pred_region
        // Predicated region
        $region41: #{encoder_block.2} parent=39 // pred_check
          %p278 = pneg %p39
        $region42: #{encoder_block.2} parent=39 // pred_check_branch
          %280 = sbr.rel (%p278) target = $region44
        $region43: #{encoder_block.2} parent=39 // pred_region
          %s281 = sand.u32 %s29, 1
          %s282 = scalar_lea.sflag [#allocation3], %s281
          %s283 = sand.u32 %s29, 1
          %s284 = smul.addr %s283, 8
          %s285 = scalar_lea.vmem [#allocation2], %s284
          %s287 = ssub.s32 128, 128
          %288 = vsyncadd %s282, %s287
          %s289 = smul.addr %s19, 128
          %s290 = scalar_lea.hbm %s0, %s289
          %s292 = sshll.u32 %s285, 4
          %s293 = int_to_ptr.vmem [resolvable:$true] %s292
          %295 = dma.hbm_to_vmem [thread:$0]  %s290, 128, %s293, %s282
        $region44: #{encoder_block.2} parent=39 // pred_fallthru
          _
      $region40: #{encoder_block.2} parent=5 // pred_fallthru
        _
      %p296 = scmp.le.s32.totalorder 1, %s19
      %p297 = scmp.lt.s32.totalorder %s19, 3
      %p298 = pnand %p296, %p297
      %p299 = pneg %p298
      // Predicated region
      $region45: #{encoder_block.2} parent=5 // pred_check
        _
      $region46: #{encoder_block.2} parent=5 // pred_check_branch
        %301 = sbr.rel (%p298) target = $region48
      $region47: #{encoder_block.2} parent=5 // pred_region
        %s302 = ssub.s32 %s19, 1
        %s303 = sand.u32 %s32, 1
        %s304 = scalar_lea.sflag [#allocation3], %s303
        %s305 = sand.u32 %s32, 1
        %s306 = smul.addr %s305, 8
        %s307 = scalar_lea.vmem [#allocation2], %s306
        // Predicated region
        $region49: #{encoder_block.2} parent=47 // pred_check
          %p308 = pneg %p45
        $region50: #{encoder_block.2} parent=47 // pred_check_branch
          %310 = sbr.rel (%p308) target = $region52
        $region51: #{encoder_block.2} parent=47 // pred_region
          %311 = dma.done %s304, 128
        $region52: #{encoder_block.2} parent=47 // pred_fallthru
          _
        // Predicated region
        $region53: #{encoder_block.2} parent=47 // pred_check
          %p312 = pneg %p66
        $region54: #{encoder_block.2} parent=47 // pred_check_branch
          %314 = sbr.rel (%p312) target = $region56
        $region55: #{encoder_block.2} parent=47 // pred_region
          %315 = dma.done [#allocation5], 16
        $region56: #{encoder_block.2} parent=47 // pred_fallthru
          _
        // Predicated region
        $region57: #{encoder_block.2} parent=47 // pred_check
          %p316 = pneg %p87
        $region58: #{encoder_block.2} parent=47 // pred_check_branch
          %318 = sbr.rel (%p316) target = $region60
        $region59: #{encoder_block.2} parent=47 // pred_region
          %319 = dma.done [#allocation5], 16
        $region60: #{encoder_block.2} parent=47 // pred_fallthru
          _
        // Predicated region
        $region61: #{encoder_block.2} parent=47 // pred_check
          %p320 = pneg %p108
        $region62: #{encoder_block.2} parent=47 // pred_check_branch
          %322 = sbr.rel (%p320) target = $region64
        $region63: #{encoder_block.2} parent=47 // pred_region
          %323 = dma.done [#allocation8], 6144
        $region64: #{encoder_block.2} parent=47 // pred_fallthru
          _
        // Predicated region
        $region65: #{encoder_block.2} parent=47 // pred_check
          %p324 = pneg %p150
        $region66: #{encoder_block.2} parent=47 // pred_check_branch
          %326 = sbr.rel (%p324) target = $region68
        $region67: #{encoder_block.2} parent=47 // pred_region
          %327 = dma.done [#allocation8], 2048
        $region68: #{encoder_block.2} parent=47 // pred_fallthru
          _
        // Predicated region
        $region69: #{encoder_block.2} parent=47 // pred_check
          %p328 = pneg %p171
        $region70: #{encoder_block.2} parent=47 // pred_check_branch
          %330 = sbr.rel (%p328) target = $region72
        $region71: #{encoder_block.2} parent=47 // pred_region
          %331 = dma.done [#allocation11], 16
        $region72: #{encoder_block.2} parent=47 // pred_fallthru
          _
        %s332 = sand.u32 %s32, 1
        %s333 = scalar_lea.sflag [#allocation3], %s332
        %s334 = sand.u32 %s32, 1
        %s335 = smul.addr %s334, 8
        %s336 = scalar_lea.vmem [#allocation2], %s335
        %p337 = pneg %p45
        %p338 = pneg %p42
        %p339 = pneg %p66
        %p340 = pneg %p63
        %p341 = pneg %p87
        %p342 = pneg %p84
        %p343 = pneg %p108
        %p344 = pneg %p105
        %p345 = pneg %p129
        %p346 = pneg %p126
        %p347 = pneg %p150
        %p348 = pneg %p147
        %p349 = pneg %p171
        %p350 = pneg %p168
        %p351 = pneg %p197
        %p352 = pneg %p194
        %p353 = scmp.lt.s32.totalorder %s24, 1
        %s354 = scalar_select %p353, %s24, 1
        %s355 = smul.addr %s354, 8
        %s356 = scalar_lea.vmem %s7, %s355
        %p357 = scmp.lt.s32.totalorder %s24, 1
        %s358 = scalar_select %p357, %s24, 1
        %s359 = smul.addr %s358, 8
        %s360 = scalar_lea.vmem %s7, %s359
        %v361 = vld [vmem:[%s307] sm:$0xff]
        %v362 = vld [vmem:[#allocation4] sm:$0x1]
        %v363 = vld [vmem:[#allocation6] sm:$0x1]
        %364 = vadd.xlane.f32.xlu0 %v361
        %v365 = vpop.xlane.xlu0 %364
        %v366 = vrcp.pop 128.0
        %v367 = vmul.f32 %v365, %v366
        %v368 = vsub.f32 %v361, %v367
        %v369 = vmul.f32 %v368, %v368
        %370 = vadd.xlane.f32.xlu0 %v369
        %v371 = vpop.xlane.xlu0 %370
        %v372 = vmul.f32 %v371, %v366
        %v373 = vadd.f32 %v372, 1e-05
        %v374 = vrsqrt.pop %v373
        %v375 = vmul.f32 %v368, %v374
        %v377 = vlaneseq
        %v378 = vshrl.u32 %v377, 7
        %v379 = vsub.s32 0, %v378
        %v380 = vrot.slane %v362, %v379
        %v382 = vmul.f32 %v375, %v380
        %v384 = vlaneseq
        %v385 = vshrl.u32 %v384, 7
        %v386 = vsub.s32 0, %v385
        %v387 = vrot.slane %v363, %v386
        %v389 = vadd.f32 %v382, %v387
        %v390 = vld [vmem:[#allocation7] sm:$0xff]
        %v391 = vld [vmem:[#allocation7 + $0x8] sm:$0xff]
        %v392 = vld [vmem:[#allocation7 + $0x10] sm:$0xff]
        %v393 = vld [vmem:[#allocation7 + $0x18] sm:$0xff]
        %v394 = vld [vmem:[#allocation7 + $0x20] sm:$0xff]
        %v395 = vld [vmem:[#allocation7 + $0x28] sm:$0xff]
        %v396 = vld [vmem:[#allocation7 + $0x30] sm:$0xff]
        %v397 = vld [vmem:[#allocation7 + $0x38] sm:$0xff]
        %v398 = vld [vmem:[#allocation7 + $0x40] sm:$0xff]
        %v399 = vld [vmem:[#allocation7 + $0x48] sm:$0xff]
        %v400 = vld [vmem:[#allocation7 + $0x50] sm:$0xff]
        %v401 = vld [vmem:[#allocation7 + $0x58] sm:$0xff]
        %v402 = vld [vmem:[#allocation7 + $0x60] sm:$0xff]
        %v403 = vld [vmem:[#allocation7 + $0x68] sm:$0xff]
        %v404 = vld [vmem:[#allocation7 + $0x70] sm:$0xff]
        %v405 = vld [vmem:[#allocation7 + $0x78] sm:$0xff]
        %v406 = vld [vmem:[#allocation7 + $0x80] sm:$0xff]
        %v407 = vld [vmem:[#allocation7 + $0x88] sm:$0xff]
        %v408 = vld [vmem:[#allocation7 + $0x90] sm:$0xff]
        %v409 = vld [vmem:[#allocation7 + $0x98] sm:$0xff]
        %v410 = vld [vmem:[#allocation7 + $0xa0] sm:$0xff]
        %v411 = vld [vmem:[#allocation7 + $0xa8] sm:$0xff]
        %v412 = vld [vmem:[#allocation7 + $0xb0] sm:$0xff]
        %v413 = vld [vmem:[#allocation7 + $0xb8] sm:$0xff]
        %v414 = vld [vmem:[#allocation7 + $0xc0] sm:$0xff]
        %v415 = vld [vmem:[#allocation7 + $0xc8] sm:$0xff]
        %v416 = vld [vmem:[#allocation7 + $0xd0] sm:$0xff]
        %v417 = vld [vmem:[#allocation7 + $0xd8] sm:$0xff]
        %v418 = vld [vmem:[#allocation7 + $0xe0] sm:$0xff]
        %v419 = vld [vmem:[#allocation7 + $0xe8] sm:$0xff]
        %v420 = vld [vmem:[#allocation7 + $0xf0] sm:$0xff]
        %v421 = vld [vmem:[#allocation7 + $0xf8] sm:$0xff]
        %v422 = vld [vmem:[#allocation7 + $0x100] sm:$0xff]
        %v423 = vld [vmem:[#allocation7 + $0x108] sm:$0xff]
        %v424 = vld [vmem:[#allocation7 + $0x110] sm:$0xff]
        %v425 = vld [vmem:[#allocation7 + $0x118] sm:$0xff]
        %v426 = vld [vmem:[#allocation7 + $0x120] sm:$0xff]
        %v427 = vld [vmem:[#allocation7 + $0x128] sm:$0xff]
        %v428 = vld [vmem:[#allocation7 + $0x130] sm:$0xff]
        %v429 = vld [vmem:[#allocation7 + $0x138] sm:$0xff]
        %v430 = vld [vmem:[#allocation7 + $0x140] sm:$0xff]
        %v431 = vld [vmem:[#allocation7 + $0x148] sm:$0xff]
        %v432 = vld [vmem:[#allocation7 + $0x150] sm:$0xff]
        %v433 = vld [vmem:[#allocation7 + $0x158] sm:$0xff]
        %v434 = vld [vmem:[#allocation7 + $0x160] sm:$0xff]
        %v435 = vld [vmem:[#allocation7 + $0x168] sm:$0xff]
        %v436 = vld [vmem:[#allocation7 + $0x170] sm:$0xff]
        %v437 = vld [vmem:[#allocation7 + $0x178] sm:$0xff]
        %v438 = vld [vmem:[%s4] sm:$0x7]
        %v440 = vlaneseq
        %v441 = vshrl.u32 %v440, 7
        %v442 = vsub.s32 0, %v441
        %v443 = vrot.slane %v438, %v442
        %v444 = vlaneseq
        %v445 = vshrl.u32 %v444, 7
        %v446 = vsub.s32 1, %v445
        %v447 = vrot.slane %v438, %v446
        %v448 = vlaneseq
        %v449 = vshrl.u32 %v448, 7
        %v450 = vsub.s32 2, %v449
        %v451 = vrot.slane %v438, %v450
        %455 = vmatprep.subr.mxu0 %v391
        %456 = vmatpush1.msra.mxu0 %v390
        %457 = vmatprep.subr.mxu0 %v394
        %458 = vmatpush1.msra.mxu0 %v393
        %459 = vmatprep.subr.mxu0 %v397
        %460 = vmatpush1.msra.mxu0 %v396
        %461 = vmatprep.subr.mxu0 %v400
        %462 = vmatpush1.msra.mxu0 %v399
        %463 = vmatprep.subr.mxu0 %v403
        %464 = vmatpush1.msra.mxu0 %v402
        %465 = vmatprep.subr.mxu0 %v406
        %466 = vmatpush1.msra.mxu0 %v405
        %467 = vmatprep.subr.mxu0 %v409
        %468 = vmatpush1.msra.mxu0 %v408
        %469 = vmatprep.subr.mxu0 %v412
        %470 = vmatpush1.msra.mxu0 %v411
        %471 = vmatprep.subr.mxu0 %v415
        %472 = vmatpush1.msra.mxu0 %v414
        %473 = vmatprep.subr.mxu0 %v418
        %474 = vmatpush1.msra.mxu0 %v417
        %475 = vmatprep.subr.mxu0 %v421
        %476 = vmatpush1.msra.mxu0 %v420
        %477 = vmatprep.subr.mxu0 %v424
        %478 = vmatpush1.msra.mxu0 %v423
        %479 = vmatprep.subr.mxu0 %v427
        %480 = vmatpush1.msra.mxu0 %v426
        %481 = vmatprep.subr.mxu0 %v430
        %482 = vmatpush1.msra.mxu0 %v429
        %483 = vmatprep.subr.mxu0 %v433
        %484 = vmatpush1.msra.mxu0 %v432
        %485 = vmatprep.subr.mxu0 %v436
        %486 = vmatpush1.msra.mxu0 %v435
        %487 = vmatprep.subr.mxu0 0.0
        %488 = vmatpush1.msra.mxu0 0.0
        %489 = vmatprep.subr.mxu0 0.0
        %490 = vmatpush1.msra.mxu0 0.0
        %491 = vmatprep.subr.mxu0 0.0
        %492 = vmatpush1.msra.mxu0 0.0
        %493 = vmatprep.subr.mxu0 0.0
        %494 = vmatpush1.msra.mxu0 0.0
        %495 = vmatprep.subr.mxu0 0.0
        %496 = vmatpush1.msra.mxu0 0.0
        %497 = vmatprep.subr.mxu0 0.0
        %498 = vmatpush1.msra.mxu0 0.0
        %499 = vmatprep.subr.mxu0 0.0
        %500 = vmatpush1.msra.mxu0 0.0
        %501 = vmatprep.subr.mxu0 0.0
        %502 = vmatpush1.msra.mxu0 0.0
        %503 = vmatprep.subr.mxu0 0.0
        %504 = vmatpush1.msra.mxu0 0.0
        %505 = vmatprep.subr.mxu0 0.0
        %506 = vmatpush1.msra.mxu0 0.0
        %507 = vmatprep.subr.mxu0 0.0
        %508 = vmatpush1.msra.mxu0 0.0
        %509 = vmatprep.subr.mxu0 0.0
        %510 = vmatpush1.msra.mxu0 0.0
        %511 = vmatprep.subr.mxu0 0.0
        %512 = vmatpush1.msra.mxu0 0.0
        %513 = vmatprep.subr.mxu0 0.0
        %514 = vmatpush1.msra.mxu0 0.0
        %515 = vmatprep.subr.mxu0 0.0
        %516 = vmatpush1.msra.mxu0 0.0
        %517 = vmatprep.subr.mxu0 0.0
        %518 = vmatpush1.msra.mxu0 0.0
        %519 = vmatprep.mubr.f32.mxu0 0.0
        %520 = vmatmul.mubr.f32.gmra.mrb[0].mxu0 %v389
        %v521 = vpop.f32.mrb[0].mxu0
        %v522 = vadd.f32 %v443, %v521
        %v523 = vpop.f32.mrb[0].mxu0
        %v524 = vadd.f32 %v447, %v523
        %525 = vdwg.mxu0
        %526 = vmatprep.subr.mxu0 0.0
        %527 = vmatpush1.msra.mxu0 %v392
        %528 = vmatprep.subr.mxu0 0.0
        %529 = vmatpush1.msra.mxu0 %v395
        %530 = vmatprep.subr.mxu0 0.0
        %531 = vmatpush1.msra.mxu0 %v398
        %532 = vmatprep.subr.mxu0 0.0
        %533 = vmatpush1.msra.mxu0 %v401
        %534 = vmatprep.subr.mxu0 0.0
        %535 = vmatpush1.msra.mxu0 %v404
        %536 = vmatprep.subr.mxu0 0.0
        %537 = vmatpush1.msra.mxu0 %v407
        %538 = vmatprep.subr.mxu0 0.0
        %539 = vmatpush1.msra.mxu0 %v410
        %540 = vmatprep.subr.mxu0 0.0
        %541 = vmatpush1.msra.mxu0 %v413
        %542 = vmatprep.subr.mxu0 0.0
        %543 = vmatpush1.msra.mxu0 %v416
        %544 = vmatprep.subr.mxu0 0.0
        %545 = vmatpush1.msra.mxu0 %v419
        %546 = vmatprep.subr.mxu0 0.0
        %547 = vmatpush1.msra.mxu0 %v422
        %548 = vmatprep.subr.mxu0 0.0
        %549 = vmatpush1.msra.mxu0 %v425
        %550 = vmatprep.subr.mxu0 0.0
        %551 = vmatpush1.msra.mxu0 %v428
        %552 = vmatprep.subr.mxu0 0.0
        %553 = vmatpush1.msra.mxu0 %v431
        %554 = vmatprep.subr.mxu0 0.0
        %555 = vmatpush1.msra.mxu0 %v434
        %556 = vmatprep.subr.mxu0 0.0
        %557 = vmatpush1.msra.mxu0 %v437
        %558 = vmatprep.subr.mxu0 0.0
        %559 = vmatpush1.msra.mxu0 0.0
        %560 = vmatprep.subr.mxu0 0.0
        %561 = vmatpush1.msra.mxu0 0.0
        %562 = vmatprep.subr.mxu0 0.0
        %563 = vmatpush1.msra.mxu0 0.0
        %564 = vmatprep.subr.mxu0 0.0
        %565 = vmatpush1.msra.mxu0 0.0
        %566 = vmatprep.subr.mxu0 0.0
        %567 = vmatpush1.msra.mxu0 0.0
        %568 = vmatprep.subr.mxu0 0.0
        %569 = vmatpush1.msra.mxu0 0.0
        %570 = vmatprep.subr.mxu0 0.0
        %571 = vmatpush1.msra.mxu0 0.0
        %572 = vmatprep.subr.mxu0 0.0
        %573 = vmatpush1.msra.mxu0 0.0
        %574 = vmatprep.subr.mxu0 0.0
        %575 = vmatpush1.msra.mxu0 0.0
        %576 = vmatprep.subr.mxu0 0.0
        %577 = vmatpush1.msra.mxu0 0.0
        %578 = vmatprep.subr.mxu0 0.0
        %579 = vmatpush1.msra.mxu0 0.0
        %580 = vmatprep.subr.mxu0 0.0
        %581 = vmatpush1.msra.mxu0 0.0
        %582 = vmatprep.subr.mxu0 0.0
        %583 = vmatpush1.msra.mxu0 0.0
        %584 = vmatprep.subr.mxu0 0.0
        %585 = vmatpush1.msra.mxu0 0.0
        %586 = vmatprep.subr.mxu0 0.0
        %587 = vmatpush1.msra.mxu0 0.0
        %588 = vmatprep.subr.mxu0 0.0
        %589 = vmatpush1.msra.mxu0 0.0
        %590 = vmatprep.mubr.f32.mxu0 0.0
        %591 = vmatmul.mubr.f32.gmra.mrb[0].mxu0 %v389
        %v592 = vpop.f32.mrb[0].mxu0
        %v593 = vadd.f32 %v451, %v592
        %v594 = vpop.f32.mrb[0].mxu0
        %595 = vdwg.mxu0
        %v596 = vld [vmem:[#allocation10] sm:$0x1]
        %v598 = vlaneseq
        %v599 = vshrl.u32 %v598, 7
        %v600 = vsub.s32 0, %v599
        %v601 = vrot.slane %v596, %v600
        %v603 = vadd.f32 %v361, %v601
        %v604 = vmul.f32 %v522, 0.25
        %vm605 = vcmask 130048
        %v607 = vsel %vm605, %v604, 0
        %v610 = vsel %vm605, %v524, 0
        %612 = vmatprep.subr.mxu0 0.0
        %613 = vmatpush1.xpose.msra.mxu0 %v610
        %614 = vmatprep.subr.mxu0 0.0
        %615 = vmatpush1.xpose.msra.mxu0 0.0
        %616 = vmatprep.subr.mxu0 0.0
        %617 = vmatpush1.xpose.msra.mxu0 0.0
        %618 = vmatprep.subr.mxu0 0.0
        %619 = vmatpush1.xpose.msra.mxu0 0.0
        %620 = vmatprep.subr.mxu0 0.0
        %621 = vmatpush1.xpose.msra.mxu0 0.0
        %622 = vmatprep.subr.mxu0 0.0
        %623 = vmatpush1.xpose.msra.mxu0 0.0
        %624 = vmatprep.subr.mxu0 0.0
        %625 = vmatpush1.xpose.msra.mxu0 0.0
        %626 = vmatprep.subr.mxu0 0.0
        %627 = vmatpush1.xpose.msra.mxu0 0.0
        %628 = vmatprep.subr.mxu0 0.0
        %629 = vmatpush1.xpose.msra.mxu0 0.0
        %630 = vmatprep.subr.mxu0 0.0
        %631 = vmatpush1.xpose.msra.mxu0 0.0
        %632 = vmatprep.subr.mxu0 0.0
        %633 = vmatpush1.xpose.msra.mxu0 0.0
        %634 = vmatprep.subr.mxu0 0.0
        %635 = vmatpush1.xpose.msra.mxu0 0.0
        %636 = vmatprep.subr.mxu0 0.0
        %637 = vmatpush1.xpose.msra.mxu0 0.0
        %638 = vmatprep.subr.mxu0 0.0
        %639 = vmatpush1.xpose.msra.mxu0 0.0
        %640 = vmatprep.subr.mxu0 0.0
        %641 = vmatpush1.xpose.msra.mxu0 0.0
        %642 = vmatprep.subr.mxu0 0.0
        %643 = vmatpush1.xpose.msra.mxu0 0.0
        %644 = vmatprep.subr.mxu0 0.0
        %645 = vmatpush1.xpose.msra.mxu0 0.0
        %646 = vmatprep.subr.mxu0 0.0
        %647 = vmatpush1.xpose.msra.mxu0 0.0
        %648 = vmatprep.subr.mxu0 0.0
        %649 = vmatpush1.xpose.msra.mxu0 0.0
        %650 = vmatprep.subr.mxu0 0.0
        %651 = vmatpush1.xpose.msra.mxu0 0.0
        %652 = vmatprep.subr.mxu0 0.0
        %653 = vmatpush1.xpose.msra.mxu0 0.0
        %654 = vmatprep.subr.mxu0 0.0
        %655 = vmatpush1.xpose.msra.mxu0 0.0
        %656 = vmatprep.subr.mxu0 0.0
        %657 = vmatpush1.xpose.msra.mxu0 0.0
        %658 = vmatprep.subr.mxu0 0.0
        %659 = vmatpush1.xpose.msra.mxu0 0.0
        %660 = vmatprep.subr.mxu0 0.0
        %661 = vmatpush1.xpose.msra.mxu0 0.0
        %662 = vmatprep.subr.mxu0 0.0
        %663 = vmatpush1.xpose.msra.mxu0 0.0
        %664 = vmatprep.subr.mxu0 0.0
        %665 = vmatpush1.xpose.msra.mxu0 0.0
        %666 = vmatprep.subr.mxu0 0.0
        %667 = vmatpush1.xpose.msra.mxu0 0.0
        %668 = vmatprep.subr.mxu0 0.0
        %669 = vmatpush1.xpose.msra.mxu0 0.0
        %670 = vmatprep.subr.mxu0 0.0
        %671 = vmatpush1.xpose.msra.mxu0 0.0
        %672 = vmatprep.subr.mxu0 0.0
        %673 = vmatpush1.xpose.msra.mxu0 0.0
        %674 = vmatprep.subr.mxu0 0.0
        %675 = vmatpush1.xpose.msra.mxu0 0.0
        %676 = vmatprep.mubr.f32.mxu0 0.0
        %677 = vmatmul.mubr.f32.gmra.mrb[0].mxu0 %v607
        %v678 = vpop.f32.mrb[0].mxu0
        %v679 = vadd.f32 0.0, %v678
        %v680 = vpop.f32.mrb[0].mxu0
        %681 = vdwg.mxu0
        %vm682 = vcmask 64512
        %v683 = vsel %vm682, %v679, -inf
        %684 = vmax.xlane.f32.xlu0 %v683
        %v685 = vpop.xlane.xlu0 %684
        %v686 = vsub.f32 %v679, %v685
        %v687 = vmul.f32 %v686, 1.442695
        %v688 = vpow.pop %v687
        %v689 = vsel %vm682, %v688, 0.0
        %690 = vadd.xlane.f32.xlu0 %v689
        %v691 = vpop.xlane.xlu0 %690
        %v693 = vsel %vm682, %v688, 0
        %695 = vmatprep.subr.mxu0 0.0
        %696 = vmatpush1.msra.mxu0 %v593
        %697 = vmatprep.subr.mxu0 0.0
        %698 = vmatpush1.msra.mxu0 0.0
        %699 = vmatprep.subr.mxu0 0.0
        %700 = vmatpush1.msra.mxu0 0.0
        %701 = vmatprep.subr.mxu0 0.0
        %702 = vmatpush1.msra.mxu0 0.0
        %703 = vmatprep.subr.mxu0 0.0
        %704 = vmatpush1.msra.mxu0 0.0
        %705 = vmatprep.subr.mxu0 0.0
        %706 = vmatpush1.msra.mxu0 0.0
        %707 = vmatprep.subr.mxu0 0.0
        %708 = vmatpush1.msra.mxu0 0.0
        %709 = vmatprep.subr.mxu0 0.0
        %710 = vmatpush1.msra.mxu0 0.0
        %711 = vmatprep.subr.mxu0 0.0
        %712 = vmatpush1.msra.mxu0 0.0
        %713 = vmatprep.subr.mxu0 0.0
        %714 = vmatpush1.msra.mxu0 0.0
        %715 = vmatprep.subr.mxu0 0.0
        %716 = vmatpush1.msra.mxu0 0.0
        %717 = vmatprep.subr.mxu0 0.0
        %718 = vmatpush1.msra.mxu0 0.0
        %719 = vmatprep.subr.mxu0 0.0
        %720 = vmatpush1.msra.mxu0 0.0
        %721 = vmatprep.subr.mxu0 0.0
        %722 = vmatpush1.msra.mxu0 0.0
        %723 = vmatprep.subr.mxu0 0.0
        %724 = vmatpush1.msra.mxu0 0.0
        %725 = vmatprep.subr.mxu0 0.0
        %726 = vmatpush1.msra.mxu0 0.0
        %727 = vmatprep.subr.mxu0 0.0
        %728 = vmatpush1.msra.mxu0 0.0
        %729 = vmatprep.subr.mxu0 0.0
        %730 = vmatpush1.msra.mxu0 0.0
        %731 = vmatprep.subr.mxu0 0.0
        %732 = vmatpush1.msra.mxu0 0.0
        %733 = vmatprep.subr.mxu0 0.0
        %734 = vmatpush1.msra.mxu0 0.0
        %735 = vmatprep.subr.mxu0 0.0
        %736 = vmatpush1.msra.mxu0 0.0
        %737 = vmatprep.subr.mxu0 0.0
        %738 = vmatpush1.msra.mxu0 0.0
        %739 = vmatprep.subr.mxu0 0.0
        %740 = vmatpush1.msra.mxu0 0.0
        %741 = vmatprep.subr.mxu0 0.0
        %742 = vmatpush1.msra.mxu0 0.0
        %743 = vmatprep.subr.mxu0 0.0
        %744 = vmatpush1.msra.mxu0 0.0
        %745 = vmatprep.subr.mxu0 0.0
        %746 = vmatpush1.msra.mxu0 0.0
        %747 = vmatprep.subr.mxu0 0.0
        %748 = vmatpush1.msra.mxu0 0.0
        %749 = vmatprep.subr.mxu0 0.0
        %750 = vmatpush1.msra.mxu0 0.0
        %751 = vmatprep.subr.mxu0 0.0
        %752 = vmatpush1.msra.mxu0 0.0
        %753 = vmatprep.subr.mxu0 0.0
        %754 = vmatpush1.msra.mxu0 0.0
        %755 = vmatprep.subr.mxu0 0.0
        %756 = vmatpush1.msra.mxu0 0.0
        %757 = vmatprep.subr.mxu0 0.0
        %758 = vmatpush1.msra.mxu0 0.0
        %759 = vmatprep.mubr.f32.mxu0 0.0
        %760 = vmatmul.mubr.f32.gmra.mrb[0].mxu0 %v693
        %v761 = vpop.f32.mrb[0].mxu0
        %v762 = vadd.f32 0.0, %v761
        %v763 = vpop.f32.mrb[0].mxu0
        %764 = vdwg.mxu0
        %v765 = vrcp.pop %v691
        %v766 = vmul.f32 %v762, %v765
        %v767 = vld [vmem:[#allocation9] sm:$0xff]
        %v768 = vld [vmem:[#allocation9 + $0x8] sm:$0xff]
        %v770 = vsel %vm605, %v766, 0
        %772 = vmatprep.subr.mxu0 0.0
        %773 = vmatpush1.msra.mxu0 %v767
        %774 = vmatprep.subr.mxu0 0.0
        %775 = vmatpush1.msra.mxu0 %v768
        %776 = vmatprep.subr.mxu0 0.0
        %777 = vmatpush1.msra.mxu0 0.0
        %778 = vmatprep.subr.mxu0 0.0
        %779 = vmatpush1.msra.mxu0 0.0
        %780 = vmatprep.subr.mxu0 0.0
        %781 = vmatpush1.msra.mxu0 0.0
        %782 = vmatprep.subr.mxu0 0.0
        %783 = vmatpush1.msra.mxu0 0.0
        %784 = vmatprep.subr.mxu0 0.0
        %785 = vmatpush1.msra.mxu0 0.0
        %786 = vmatprep.subr.mxu0 0.0
        %787 = vmatpush1.msra.mxu0 0.0
        %788 = vmatprep.subr.mxu0 0.0
        %789 = vmatpush1.msra.mxu0 0.0
        %790 = vmatprep.subr.mxu0 0.0
        %791 = vmatpush1.msra.mxu0 0.0
        %792 = vmatprep.subr.mxu0 0.0
        %793 = vmatpush1.msra.mxu0 0.0
        %794 = vmatprep.subr.mxu0 0.0
        %795 = vmatpush1.msra.mxu0 0.0
        %796 = vmatprep.subr.mxu0 0.0
        %797 = vmatpush1.msra.mxu0 0.0
        %798 = vmatprep.subr.mxu0 0.0
        %799 = vmatpush1.msra.mxu0 0.0
        %800 = vmatprep.subr.mxu0 0.0
        %801 = vmatpush1.msra.mxu0 0.0
        %802 = vmatprep.subr.mxu0 0.0
        %803 = vmatpush1.msra.mxu0 0.0
        %804 = vmatprep.subr.mxu0 0.0
        %805 = vmatpush1.msra.mxu0 0.0
        %806 = vmatprep.subr.mxu0 0.0
        %807 = vmatpush1.msra.mxu0 0.0
        %808 = vmatprep.subr.mxu0 0.0
        %809 = vmatpush1.msra.mxu0 0.0
        %810 = vmatprep.subr.mxu0 0.0
        %811 = vmatpush1.msra.mxu0 0.0
        %812 = vmatprep.subr.mxu0 0.0
        %813 = vmatpush1.msra.mxu0 0.0
        %814 = vmatprep.subr.mxu0 0.0
        %815 = vmatpush1.msra.mxu0 0.0
        %816 = vmatprep.subr.mxu0 0.0
        %817 = vmatpush1.msra.mxu0 0.0
        %818 = vmatprep.subr.mxu0 0.0
        %819 = vmatpush1.msra.mxu0 0.0
        %820 = vmatprep.subr.mxu0 0.0
        %821 = vmatpush1.msra.mxu0 0.0
        %822 = vmatprep.subr.mxu0 0.0
        %823 = vmatpush1.msra.mxu0 0.0
        %824 = vmatprep.subr.mxu0 0.0
        %825 = vmatpush1.msra.mxu0 0.0
        %826 = vmatprep.subr.mxu0 0.0
        %827 = vmatpush1.msra.mxu0 0.0
        %828 = vmatprep.subr.mxu0 0.0
        %829 = vmatpush1.msra.mxu0 0.0
        %830 = vmatprep.subr.mxu0 0.0
        %831 = vmatpush1.msra.mxu0 0.0
        %832 = vmatprep.subr.mxu0 0.0
        %833 = vmatpush1.msra.mxu0 0.0
        %834 = vmatprep.subr.mxu0 0.0
        %835 = vmatpush1.msra.mxu0 0.0
        %836 = vmatprep.mubr.f32.mxu0 0.0
        %837 = vmatmul.mubr.f32.gmra.mrb[0].mxu0 %v770
        %v838 = vpop.f32.mrb[0].mxu0
        %v839 = vadd.f32 0.0, %v838
        %v840 = vpop.f32.mrb[0].mxu0
        %841 = vdwg.mxu0
        %v842 = vadd.f32 %v603, %v839
        %843 = vrot.lane.b32.xlu0 %v604, 112
        %v844 = vpop.permute.xlu0 %843
        %845 = vrot.lane.b32.xlu0 %v524, 112
        %v846 = vpop.permute.xlu0 %845
        %v847 = vsel %vm605, %v844, 0
        %v849 = vsel %vm605, %v846, 0
        %851 = vmatprep.subr.mxu0 0.0
        %852 = vmatpush1.xpose.msra.mxu0 %v849
        %853 = vmatprep.subr.mxu0 0.0
        %854 = vmatpush1.xpose.msra.mxu0 0.0
        %855 = vmatprep.subr.mxu0 0.0
        %856 = vmatpush1.xpose.msra.mxu0 0.0
        %857 = vmatprep.subr.mxu0 0.0
        %858 = vmatpush1.xpose.msra.mxu0 0.0
        %859 = vmatprep.subr.mxu0 0.0
        %860 = vmatpush1.xpose.msra.mxu0 0.0
        %861 = vmatprep.subr.mxu0 0.0
        %862 = vmatpush1.xpose.msra.mxu0 0.0
        %863 = vmatprep.subr.mxu0 0.0
        %864 = vmatpush1.xpose.msra.mxu0 0.0
        %865 = vmatprep.subr.mxu0 0.0
        %866 = vmatpush1.xpose.msra.mxu0 0.0
        %867 = vmatprep.subr.mxu0 0.0
        %868 = vmatpush1.xpose.msra.mxu0 0.0
        %869 = vmatprep.subr.mxu0 0.0
        %870 = vmatpush1.xpose.msra.mxu0 0.0
        %871 = vmatprep.subr.mxu0 0.0
        %872 = vmatpush1.xpose.msra.mxu0 0.0
        %873 = vmatprep.subr.mxu0 0.0
        %874 = vmatpush1.xpose.msra.mxu0 0.0
        %875 = vmatprep.subr.mxu0 0.0
        %876 = vmatpush1.xpose.msra.mxu0 0.0
        %877 = vmatprep.subr.mxu0 0.0
        %878 = vmatpush1.xpose.msra.mxu0 0.0
        %879 = vmatprep.subr.mxu0 0.0
        %880 = vmatpush1.xpose.msra.mxu0 0.0
        %881 = vmatprep.subr.mxu0 0.0
        %882 = vmatpush1.xpose.msra.mxu0 0.0
        %883 = vmatprep.subr.mxu0 0.0
        %884 = vmatpush1.xpose.msra.mxu0 0.0
        %885 = vmatprep.subr.mxu0 0.0
        %886 = vmatpush1.xpose.msra.mxu0 0.0
        %887 = vmatprep.subr.mxu0 0.0
        %888 = vmatpush1.xpose.msra.mxu0 0.0
        %889 = vmatprep.subr.mxu0 0.0
        %890 = vmatpush1.xpose.msra.mxu0 0.0
        %891 = vmatprep.subr.mxu0 0.0
        %892 = vmatpush1.xpose.msra.mxu0 0.0
        %893 = vmatprep.subr.mxu0 0.0
        %894 = vmatpush1.xpose.msra.mxu0 0.0
        %895 = vmatprep.subr.mxu0 0.0
        %896 = vmatpush1.xpose.msra.mxu0 0.0
        %897 = vmatprep.subr.mxu0 0.0
        %898 = vmatpush1.xpose.msra.mxu0 0.0
        %899 = vmatprep.subr.mxu0 0.0
        %900 = vmatpush1.xpose.msra.mxu0 0.0
        %901 = vmatprep.subr.mxu0 0.0
        %902 = vmatpush1.xpose.msra.mxu0 0.0
        %903 = vmatprep.subr.mxu0 0.0
        %904 = vmatpush1.xpose.msra.mxu0 0.0
        %905 = vmatprep.subr.mxu0 0.0
        %906 = vmatpush1.xpose.msra.mxu0 0.0
        %907 = vmatprep.subr.mxu0 0.0
        %908 = vmatpush1.xpose.msra.mxu0 0.0
        %909 = vmatprep.subr.mxu0 0.0
        %910 = vmatpush1.xpose.msra.mxu0 0.0
        %911 = vmatprep.subr.mxu0 0.0
        %912 = vmatpush1.xpose.msra.mxu0 0.0
        %913 = vmatprep.subr.mxu0 0.0
        %914 = vmatpush1.xpose.msra.mxu0 0.0
        %915 = vmatprep.mubr.f32.mxu0 0.0
        %916 = vmatmul.mubr.f32.gmra.mrb[0].mxu0 %v847
        %v917 = vpop.f32.mrb[0].mxu0
        %v918 = vadd.f32 0.0, %v917
        %v919 = vpop.f32.mrb[0].mxu0
        %920 = vdwg.mxu0
        %v921 = vsel %vm682, %v918, -inf
        %922 = vmax.xlane.f32.xlu0 %v921
        %v923 = vpop.xlane.xlu0 %922
        %v924 = vsub.f32 %v918, %v923
        %v925 = vmul.f32 %v924, 1.442695
        %v926 = vpow.pop %v925
        %v927 = vsel %vm682, %v926, 0.0
        %928 = vadd.xlane.f32.xlu0 %v927
        %v929 = vpop.xlane.xlu0 %928
        %931 = vrot.lane.b32.xlu0 %v593, 112
        %v932 = vpop.permute.xlu0 %931
        %v935 = vsel %vm682, %v926, 0
        %937 = vmatprep.subr.mxu0 0.0
        %938 = vmatpush1.msra.mxu0 %v932
        %939 = vmatprep.subr.mxu0 0.0
        %940 = vmatpush1.msra.mxu0 0.0
        %941 = vmatprep.subr.mxu0 0.0
        %942 = vmatpush1.msra.mxu0 0.0
        %943 = vmatprep.subr.mxu0 0.0
        %944 = vmatpush1.msra.mxu0 0.0
        %945 = vmatprep.subr.mxu0 0.0
        %946 = vmatpush1.msra.mxu0 0.0
        %947 = vmatprep.subr.mxu0 0.0
        %948 = vmatpush1.msra.mxu0 0.0
        %949 = vmatprep.subr.mxu0 0.0
        %950 = vmatpush1.msra.mxu0 0.0
        %951 = vmatprep.subr.mxu0 0.0
        %952 = vmatpush1.msra.mxu0 0.0
        %953 = vmatprep.subr.mxu0 0.0
        %954 = vmatpush1.msra.mxu0 0.0
        %955 = vmatprep.subr.mxu0 0.0
        %956 = vmatpush1.msra.mxu0 0.0
        %957 = vmatprep.subr.mxu0 0.0
        %958 = vmatpush1.msra.mxu0 0.0
        %959 = vmatprep.subr.mxu0 0.0
        %960 = vmatpush1.msra.mxu0 0.0
        %961 = vmatprep.subr.mxu0 0.0
        %962 = vmatpush1.msra.mxu0 0.0
        %963 = vmatprep.subr.mxu0 0.0
        %964 = vmatpush1.msra.mxu0 0.0
        %965 = vmatprep.subr.mxu0 0.0
        %966 = vmatpush1.msra.mxu0 0.0
        %967 = vmatprep.subr.mxu0 0.0
        %968 = vmatpush1.msra.mxu0 0.0
        %969 = vmatprep.subr.mxu0 0.0
        %970 = vmatpush1.msra.mxu0 0.0
        %971 = vmatprep.subr.mxu0 0.0
        %972 = vmatpush1.msra.mxu0 0.0
        %973 = vmatprep.subr.mxu0 0.0
        %974 = vmatpush1.msra.mxu0 0.0
        %975 = vmatprep.subr.mxu0 0.0
        %976 = vmatpush1.msra.mxu0 0.0
        %977 = vmatprep.subr.mxu0 0.0
        %978 = vmatpush1.msra.mxu0 0.0
        %979 = vmatprep.subr.mxu0 0.0
        %980 = vmatpush1.msra.mxu0 0.0
        %981 = vmatprep.subr.mxu0 0.0
        %982 = vmatpush1.msra.mxu0 0.0
        %983 = vmatprep.subr.mxu0 0.0
        %984 = vmatpush1.msra.mxu0 0.0
        %985 = vmatprep.subr.mxu0 0.0
        %986 = vmatpush1.msra.mxu0 0.0
        %987 = vmatprep.subr.mxu0 0.0
        %988 = vmatpush1.msra.mxu0 0.0
        %989 = vmatprep.subr.mxu0 0.0
        %990 = vmatpush1.msra.mxu0 0.0
        %991 = vmatprep.subr.mxu0 0.0
        %992 = vmatpush1.msra.mxu0 0.0
        %993 = vmatprep.subr.mxu0 0.0
        %994 = vmatpush1.msra.mxu0 0.0
        %995 = vmatprep.subr.mxu0 0.0
        %996 = vmatpush1.msra.mxu0 0.0
        %997 = vmatprep.subr.mxu0 0.0
        %998 = vmatpush1.msra.mxu0 0.0
        %999 = vmatprep.subr.mxu0 0.0
        %1000 = vmatpush1.msra.mxu0 0.0
        %1001 = vmatprep.mubr.f32.mxu0 0.0
        %1002 = vmatmul.mubr.f32.gmra.mrb[0].mxu0 %v935
        %v1003 = vpop.f32.mrb[0].mxu0
        %v1004 = vadd.f32 0.0, %v1003
        %v1005 = vpop.f32.mrb[0].mxu0
        %1006 = vdwg.mxu0
        %v1007 = vrcp.pop %v929
        %v1008 = vmul.f32 %v1004, %v1007
        %v1009 = vld [vmem:[#allocation9 + $0x10] sm:$0xff]
        %v1010 = vld [vmem:[#allocation9 + $0x18] sm:$0xff]
        %v1012 = vsel %vm605, %v1008, 0
        %1014 = vmatprep.subr.mxu0 0.0
        %1015 = vmatpush1.msra.mxu0 %v1009
        %1016 = vmatprep.subr.mxu0 0.0
        %1017 = vmatpush1.msra.mxu0 %v1010
        %1018 = vmatprep.subr.mxu0 0.0
        %1019 = vmatpush1.msra.mxu0 0.0
        %1020 = vmatprep.subr.mxu0 0.0
        %1021 = vmatpush1.msra.mxu0 0.0
        %1022 = vmatprep.subr.mxu0 0.0
        %1023 = vmatpush1.msra.mxu0 0.0
        %1024 = vmatprep.subr.mxu0 0.0
        %1025 = vmatpush1.msra.mxu0 0.0
        %1026 = vmatprep.subr.mxu0 0.0
        %1027 = vmatpush1.msra.mxu0 0.0
        %1028 = vmatprep.subr.mxu0 0.0
        %1029 = vmatpush1.msra.mxu0 0.0
        %1030 = vmatprep.subr.mxu0 0.0
        %1031 = vmatpush1.msra.mxu0 0.0
        %1032 = vmatprep.subr.mxu0 0.0
        %1033 = vmatpush1.msra.mxu0 0.0
        %1034 = vmatprep.subr.mxu0 0.0
        %1035 = vmatpush1.msra.mxu0 0.0
        %1036 = vmatprep.subr.mxu0 0.0
        %1037 = vmatpush1.msra.mxu0 0.0
        %1038 = vmatprep.subr.mxu0 0.0
        %1039 = vmatpush1.msra.mxu0 0.0
        %1040 = vmatprep.subr.mxu0 0.0
        %1041 = vmatpush1.msra.mxu0 0.0
        %1042 = vmatprep.subr.mxu0 0.0
        %1043 = vmatpush1.msra.mxu0 0.0
        %1044 = vmatprep.subr.mxu0 0.0
        %1045 = vmatpush1.msra.mxu0 0.0
        %1046 = vmatprep.subr.mxu0 0.0
        %1047 = vmatpush1.msra.mxu0 0.0
        %1048 = vmatprep.subr.mxu0 0.0
        %1049 = vmatpush1.msra.mxu0 0.0
        %1050 = vmatprep.subr.mxu0 0.0
        %1051 = vmatpush1.msra.mxu0 0.0
        %1052 = vmatprep.subr.mxu0 0.0
        %1053 = vmatpush1.msra.mxu0 0.0
        %1054 = vmatprep.subr.mxu0 0.0
        %1055 = vmatpush1.msra.mxu0 0.0
        %1056 = vmatprep.subr.mxu0 0.0
        %1057 = vmatpush1.msra.mxu0 0.0
        %1058 = vmatprep.subr.mxu0 0.0
        %1059 = vmatpush1.msra.mxu0 0.0
        %1060 = vmatprep.subr.mxu0 0.0
        %1061 = vmatpush1.msra.mxu0 0.0
        %1062 = vmatprep.subr.mxu0 0.0
        %1063 = vmatpush1.msra.mxu0 0.0
        %1064 = vmatprep.subr.mxu0 0.0
        %1065 = vmatpush1.msra.mxu0 0.0
        %1066 = vmatprep.subr.mxu0 0.0
        %1067 = vmatpush1.msra.mxu0 0.0
        %1068 = vmatprep.subr.mxu0 0.0
        %1069 = vmatpush1.msra.mxu0 0.0
        %1070 = vmatprep.subr.mxu0 0.0
        %1071 = vmatpush1.msra.mxu0 0.0
        %1072 = vmatprep.subr.mxu0 0.0
        %1073 = vmatpush1.msra.mxu0 0.0
        %1074 = vmatprep.subr.mxu0 0.0
        %1075 = vmatpush1.msra.mxu0 0.0
        %1076 = vmatprep.subr.mxu0 0.0
        %1077 = vmatpush1.msra.mxu0 0.0
        %1078 = vmatprep.mubr.f32.mxu0 0.0
        %1079 = vmatmul.mubr.f32.gmra.mrb[0].mxu0 %v1012
        %v1080 = vpop.f32.mrb[0].mxu0
        %v1081 = vadd.f32 0.0, %v1080
        %v1082 = vpop.f32.mrb[0].mxu0
        %1083 = vdwg.mxu0
        %v1084 = vadd.f32 %v842, %v1081
        %1085 = vrot.lane.b32.xlu0 %v604, 96
        %v1086 = vpop.permute.xlu0 %1085
        %1087 = vrot.lane.b32.xlu0 %v524, 96
        %v1088 = vpop.permute.xlu0 %1087
        %v1089 = vsel %vm605, %v1086, 0
        %v1091 = vsel %vm605, %v1088, 0
        %1093 = vmatprep.subr.mxu0 0.0
        %1094 = vmatpush1.xpose.msra.mxu0 %v1091
        %1095 = vmatprep.subr.mxu0 0.0
        %1096 = vmatpush1.xpose.msra.mxu0 0.0
        %1097 = vmatprep.subr.mxu0 0.0
        %1098 = vmatpush1.xpose.msra.mxu0 0.0
        %1099 = vmatprep.subr.mxu0 0.0
        %1100 = vmatpush1.xpose.msra.mxu0 0.0
        %1101 = vmatprep.subr.mxu0 0.0
        %1102 = vmatpush1.xpose.msra.mxu0 0.0
        %1103 = vmatprep.subr.mxu0 0.0
        %1104 = vmatpush1.xpose.msra.mxu0 0.0
        %1105 = vmatprep.subr.mxu0 0.0
        %1106 = vmatpush1.xpose.msra.mxu0 0.0
        %1107 = vmatprep.subr.mxu0 0.0
        %1108 = vmatpush1.xpose.msra.mxu0 0.0
        %1109 = vmatprep.subr.mxu0 0.0
        %1110 = vmatpush1.xpose.msra.mxu0 0.0
        %1111 = vmatprep.subr.mxu0 0.0
        %1112 = vmatpush1.xpose.msra.mxu0 0.0
        %1113 = vmatprep.subr.mxu0 0.0
        %1114 = vmatpush1.xpose.msra.mxu0 0.0
        %1115 = vmatprep.subr.mxu0 0.0
        %1116 = vmatpush1.xpose.msra.mxu0 0.0
        %1117 = vmatprep.subr.mxu0 0.0
        %1118 = vmatpush1.xpose.msra.mxu0 0.0
        %1119 = vmatprep.subr.mxu0 0.0
        %1120 = vmatpush1.xpose.msra.mxu0 0.0
        %1121 = vmatprep.subr.mxu0 0.0
        %1122 = vmatpush1.xpose.msra.mxu0 0.0
        %1123 = vmatprep.subr.mxu0 0.0
        %1124 = vmatpush1.xpose.msra.mxu0 0.0
        %1125 = vmatprep.subr.mxu0 0.0
        %1126 = vmatpush1.xpose.msra.mxu0 0.0
        %1127 = vmatprep.subr.mxu0 0.0
        %1128 = vmatpush1.xpose.msra.mxu0 0.0
        %1129 = vmatprep.subr.mxu0 0.0
        %1130 = vmatpush1.xpose.msra.mxu0 0.0
        %1131 = vmatprep.subr.mxu0 0.0
        %1132 = vmatpush1.xpose.msra.mxu0 0.0
        %1133 = vmatprep.subr.mxu0 0.0
        %1134 = vmatpush1.xpose.msra.mxu0 0.0
        %1135 = vmatprep.subr.mxu0 0.0
        %1136 = vmatpush1.xpose.msra.mxu0 0.0
        %1137 = vmatprep.subr.mxu0 0.0
        %1138 = vmatpush1.xpose.msra.mxu0 0.0
        %1139 = vmatprep.subr.mxu0 0.0
        %1140 = vmatpush1.xpose.msra.mxu0 0.0
        %1141 = vmatprep.subr.mxu0 0.0
        %1142 = vmatpush1.xpose.msra.mxu0 0.0
        %1143 = vmatprep.subr.mxu0 0.0
        %1144 = vmatpush1.xpose.msra.mxu0 0.0
        %1145 = vmatprep.subr.mxu0 0.0
        %1146 = vmatpush1.xpose.msra.mxu0 0.0
        %1147 = vmatprep.subr.mxu0 0.0
        %1148 = vmatpush1.xpose.msra.mxu0 0.0
        %1149 = vmatprep.subr.mxu0 0.0
        %1150 = vmatpush1.xpose.msra.mxu0 0.0
        %1151 = vmatprep.subr.mxu0 0.0
        %1152 = vmatpush1.xpose.msra.mxu0 0.0
        %1153 = vmatprep.subr.mxu0 0.0
        %1154 = vmatpush1.xpose.msra.mxu0 0.0
        %1155 = vmatprep.subr.mxu0 0.0
        %1156 = vmatpush1.xpose.msra.mxu0 0.0
        %1157 = vmatprep.mubr.f32.mxu0 0.0
        %1158 = vmatmul.mubr.f32.gmra.mrb[0].mxu0 %v1089
        %v1159 = vpop.f32.mrb[0].mxu0
        %v1160 = vadd.f32 0.0, %v1159
        %v1161 = vpop.f32.mrb[0].mxu0
        %1162 = vdwg.mxu0
        %v1163 = vsel %vm682, %v1160, -inf
        %1164 = vmax.xlane.f32.xlu0 %v1163
        %v1165 = vpop.xlane.xlu0 %1164
        %v1166 = vsub.f32 %v1160, %v1165
        %v1167 = vmul.f32 %v1166, 1.442695
        %v1168 = vpow.pop %v1167
        %v1169 = vsel %vm682, %v1168, 0.0
        %1170 = vadd.xlane.f32.xlu0 %v1169
        %v1171 = vpop.xlane.xlu0 %1170
        %1172 = vrot.lane.b32.xlu0 %v593, 96
        %v1173 = vpop.permute.xlu0 %1172
        %v1176 = vsel %vm682, %v1168, 0
        %1178 = vmatprep.subr.mxu0 0.0
        %1179 = vmatpush1.msra.mxu0 %v1173
        %1180 = vmatprep.subr.mxu0 0.0
        %1181 = vmatpush1.msra.mxu0 0.0
        %1182 = vmatprep.subr.mxu0 0.0
        %1183 = vmatpush1.msra.mxu0 0.0
        %1184 = vmatprep.subr.mxu0 0.0
        %1185 = vmatpush1.msra.mxu0 0.0
        %1186 = vmatprep.subr.mxu0 0.0
        %1187 = vmatpush1.msra.mxu0 0.0
        %1188 = vmatprep.subr.mxu0 0.0
        %1189 = vmatpush1.msra.mxu0 0.0
        %1190 = vmatprep.subr.mxu0 0.0
        %1191 = vmatpush1.msra.mxu0 0.0
        %1192 = vmatprep.subr.mxu0 0.0
        %1193 = vmatpush1.msra.mxu0 0.0
        %1194 = vmatprep.subr.mxu0 0.0
        %1195 = vmatpush1.msra.mxu0 0.0
        %1196 = vmatprep.subr.mxu0 0.0
        %1197 = vmatpush1.msra.mxu0 0.0
        %1198 = vmatprep.subr.mxu0 0.0
        %1199 = vmatpush1.msra.mxu0 0.0
        %1200 = vmatprep.subr.mxu0 0.0
        %1201 = vmatpush1.msra.mxu0 0.0
        %1202 = vmatprep.subr.mxu0 0.0
        %1203 = vmatpush1.msra.mxu0 0.0
        %1204 = vmatprep.subr.mxu0 0.0
        %1205 = vmatpush1.msra.mxu0 0.0
        %1206 = vmatprep.subr.mxu0 0.0
        %1207 = vmatpush1.msra.mxu0 0.0
        %1208 = vmatprep.subr.mxu0 0.0
        %1209 = vmatpush1.msra.mxu0 0.0
        %1210 = vmatprep.subr.mxu0 0.0
        %1211 = vmatpush1.msra.mxu0 0.0
        %1212 = vmatprep.subr.mxu0 0.0
        %1213 = vmatpush1.msra.mxu0 0.0
        %1214 = vmatprep.subr.mxu0 0.0
        %1215 = vmatpush1.msra.mxu0 0.0
        %1216 = vmatprep.subr.mxu0 0.0
        %1217 = vmatpush1.msra.mxu0 0.0
        %1218 = vmatprep.subr.mxu0 0.0
        %1219 = vmatpush1.msra.mxu0 0.0
        %1220 = vmatprep.subr.mxu0 0.0
        %1221 = vmatpush1.msra.mxu0 0.0
        %1222 = vmatprep.subr.mxu0 0.0
        %1223 = vmatpush1.msra.mxu0 0.0
        %1224 = vmatprep.subr.mxu0 0.0
        %1225 = vmatpush1.msra.mxu0 0.0
        %1226 = vmatprep.subr.mxu0 0.0
        %1227 = vmatpush1.msra.mxu0 0.0
        %1228 = vmatprep.subr.mxu0 0.0
        %1229 = vmatpush1.msra.mxu0 0.0
        %1230 = vmatprep.subr.mxu0 0.0
        %1231 = vmatpush1.msra.mxu0 0.0
        %1232 = vmatprep.subr.mxu0 0.0
        %1233 = vmatpush1.msra.mxu0 0.0
        %1234 = vmatprep.subr.mxu0 0.0
        %1235 = vmatpush1.msra.mxu0 0.0
        %1236 = vmatprep.subr.mxu0 0.0
        %1237 = vmatpush1.msra.mxu0 0.0
        %1238 = vmatprep.subr.mxu0 0.0
        %1239 = vmatpush1.msra.mxu0 0.0
        %1240 = vmatprep.subr.mxu0 0.0
        %1241 = vmatpush1.msra.mxu0 0.0
        %1242 = vmatprep.mubr.f32.mxu0 0.0
        %1243 = vmatmul.mubr.f32.gmra.mrb[0].mxu0 %v1176
        %v1244 = vpop.f32.mrb[0].mxu0
        %v1245 = vadd.f32 0.0, %v1244
        %v1246 = vpop.f32.mrb[0].mxu0
        %1247 = vdwg.mxu0
        %v1248 = vrcp.pop %v1171
        %v1249 = vmul.f32 %v1245, %v1248
        %v1250 = vld [vmem:[#allocation9 + $0x20] sm:$0xff]
        %v1251 = vld [vmem:[#allocation9 + $0x28] sm:$0xff]
        %v1253 = vsel %vm605, %v1249, 0
        %1255 = vmatprep.subr.mxu0 0.0
        %1256 = vmatpush1.msra.mxu0 %v1250
        %1257 = vmatprep.subr.mxu0 0.0
        %1258 = vmatpush1.msra.mxu0 %v1251
        %1259 = vmatprep.subr.mxu0 0.0
        %1260 = vmatpush1.msra.mxu0 0.0
        %1261 = vmatprep.subr.mxu0 0.0
        %1262 = vmatpush1.msra.mxu0 0.0
        %1263 = vmatprep.subr.mxu0 0.0
        %1264 = vmatpush1.msra.mxu0 0.0
        %1265 = vmatprep.subr.mxu0 0.0
        %1266 = vmatpush1.msra.mxu0 0.0
        %1267 = vmatprep.subr.mxu0 0.0
        %1268 = vmatpush1.msra.mxu0 0.0
        %1269 = vmatprep.subr.mxu0 0.0
        %1270 = vmatpush1.msra.mxu0 0.0
        %1271 = vmatprep.subr.mxu0 0.0
        %1272 = vmatpush1.msra.mxu0 0.0
        %1273 = vmatprep.subr.mxu0 0.0
        %1274 = vmatpush1.msra.mxu0 0.0
        %1275 = vmatprep.subr.mxu0 0.0
        %1276 = vmatpush1.msra.mxu0 0.0
        %1277 = vmatprep.subr.mxu0 0.0
        %1278 = vmatpush1.msra.mxu0 0.0
        %1279 = vmatprep.subr.mxu0 0.0
        %1280 = vmatpush1.msra.mxu0 0.0
        %1281 = vmatprep.subr.mxu0 0.0
        %1282 = vmatpush1.msra.mxu0 0.0
        %1283 = vmatprep.subr.mxu0 0.0
        %1284 = vmatpush1.msra.mxu0 0.0
        %1285 = vmatprep.subr.mxu0 0.0
        %1286 = vmatpush1.msra.mxu0 0.0
        %1287 = vmatprep.subr.mxu0 0.0
        %1288 = vmatpush1.msra.mxu0 0.0
        %1289 = vmatprep.subr.mxu0 0.0
        %1290 = vmatpush1.msra.mxu0 0.0
        %1291 = vmatprep.subr.mxu0 0.0
        %1292 = vmatpush1.msra.mxu0 0.0
        %1293 = vmatprep.subr.mxu0 0.0
        %1294 = vmatpush1.msra.mxu0 0.0
        %1295 = vmatprep.subr.mxu0 0.0
        %1296 = vmatpush1.msra.mxu0 0.0
        %1297 = vmatprep.subr.mxu0 0.0
        %1298 = vmatpush1.msra.mxu0 0.0
        %1299 = vmatprep.subr.mxu0 0.0
        %1300 = vmatpush1.msra.mxu0 0.0
        %1301 = vmatprep.subr.mxu0 0.0
        %1302 = vmatpush1.msra.mxu0 0.0
        %1303 = vmatprep.subr.mxu0 0.0
        %1304 = vmatpush1.msra.mxu0 0.0
        %1305 = vmatprep.subr.mxu0 0.0
        %1306 = vmatpush1.msra.mxu0 0.0
        %1307 = vmatprep.subr.mxu0 0.0
        %1308 = vmatpush1.msra.mxu0 0.0
        %1309 = vmatprep.subr.mxu0 0.0
        %1310 = vmatpush1.msra.mxu0 0.0
        %1311 = vmatprep.subr.mxu0 0.0
        %1312 = vmatpush1.msra.mxu0 0.0
        %1313 = vmatprep.subr.mxu0 0.0
        %1314 = vmatpush1.msra.mxu0 0.0
        %1315 = vmatprep.subr.mxu0 0.0
        %1316 = vmatpush1.msra.mxu0 0.0
        %1317 = vmatprep.subr.mxu0 0.0
        %1318 = vmatpush1.msra.mxu0 0.0
        %1319 = vmatprep.mubr.f32.mxu0 0.0
        %1320 = vmatmul.mubr.f32.gmra.mrb[0].mxu0 %v1253
        %v1321 = vpop.f32.mrb[0].mxu0
        %v1322 = vadd.f32 0.0, %v1321
        %v1323 = vpop.f32.mrb[0].mxu0
        %1324 = vdwg.mxu0
        %v1325 = vadd.f32 %v1084, %v1322
        %1326 = vrot.lane.b32.xlu0 %v604, 80
        %v1327 = vpop.permute.xlu0 %1326
        %1328 = vrot.lane.b32.xlu0 %v524, 80
        %v1329 = vpop.permute.xlu0 %1328
        %v1330 = vsel %vm605, %v1327, 0
        %v1332 = vsel %vm605, %v1329, 0
        %1334 = vmatprep.subr.mxu0 0.0
        %1335 = vmatpush1.xpose.msra.mxu0 %v1332
        %1336 = vmatprep.subr.mxu0 0.0
        %1337 = vmatpush1.xpose.msra.mxu0 0.0
        %1338 = vmatprep.subr.mxu0 0.0
        %1339 = vmatpush1.xpose.msra.mxu0 0.0
        %1340 = vmatprep.subr.mxu0 0.0
        %1341 = vmatpush1.xpose.msra.mxu0 0.0
        %1342 = vmatprep.subr.mxu0 0.0
        %1343 = vmatpush1.xpose.msra.mxu0 0.0
        %1344 = vmatprep.subr.mxu0 0.0
        %1345 = vmatpush1.xpose.msra.mxu0 0.0
        %1346 = vmatprep.subr.mxu0 0.0
        %1347 = vmatpush1.xpose.msra.mxu0 0.0
        %1348 = vmatprep.subr.mxu0 0.0
        %1349 = vmatpush1.xpose.msra.mxu0 0.0
        %1350 = vmatprep.subr.mxu0 0.0
        %1351 = vmatpush1.xpose.msra.mxu0 0.0
        %1352 = vmatprep.subr.mxu0 0.0
        %1353 = vmatpush1.xpose.msra.mxu0 0.0
        %1354 = vmatprep.subr.mxu0 0.0
        %1355 = vmatpush1.xpose.msra.mxu0 0.0
        %1356 = vmatprep.subr.mxu0 0.0
        %1357 = vmatpush1.xpose.msra.mxu0 0.0
        %1358 = vmatprep.subr.mxu0 0.0
        %1359 = vmatpush1.xpose.msra.mxu0 0.0
        %1360 = vmatprep.subr.mxu0 0.0
        %1361 = vmatpush1.xpose.msra.mxu0 0.0
        %1362 = vmatprep.subr.mxu0 0.0
        %1363 = vmatpush1.xpose.msra.mxu0 0.0
        %1364 = vmatprep.subr.mxu0 0.0
        %1365 = vmatpush1.xpose.msra.mxu0 0.0
        %1366 = vmatprep.subr.mxu0 0.0
        %1367 = vmatpush1.xpose.msra.mxu0 0.0
        %1368 = vmatprep.subr.mxu0 0.0
        %1369 = vmatpush1.xpose.msra.mxu0 0.0
        %1370 = vmatprep.subr.mxu0 0.0
        %1371 = vmatpush1.xpose.msra.mxu0 0.0
        %1372 = vmatprep.subr.mxu0 0.0
        %1373 = vmatpush1.xpose.msra.mxu0 0.0
        %1374 = vmatprep.subr.mxu0 0.0
        %1375 = vmatpush1.xpose.msra.mxu0 0.0
        %1376 = vmatprep.subr.mxu0 0.0
        %1377 = vmatpush1.xpose.msra.mxu0 0.0
        %1378 = vmatprep.subr.mxu0 0.0
        %1379 = vmatpush1.xpose.msra.mxu0 0.0
        %1380 = vmatprep.subr.mxu0 0.0
        %1381 = vmatpush1.xpose.msra.mxu0 0.0
        %1382 = vmatprep.subr.mxu0 0.0
        %1383 = vmatpush1.xpose.msra.mxu0 0.0
        %1384 = vmatprep.subr.mxu0 0.0
        %1385 = vmatpush1.xpose.msra.mxu0 0.0
        %1386 = vmatprep.subr.mxu0 0.0
        %1387 = vmatpush1.xpose.msra.mxu0 0.0
        %1388 = vmatprep.subr.mxu0 0.0
        %1389 = vmatpush1.xpose.msra.mxu0 0.0
        %1390 = vmatprep.subr.mxu0 0.0
        %1391 = vmatpush1.xpose.msra.mxu0 0.0
        %1392 = vmatprep.subr.mxu0 0.0
        %1393 = vmatpush1.xpose.msra.mxu0 0.0
        %1394 = vmatprep.subr.mxu0 0.0
        %1395 = vmatpush1.xpose.msra.mxu0 0.0
        %1396 = vmatprep.subr.mxu0 0.0
        %1397 = vmatpush1.xpose.msra.mxu0 0.0
        %1398 = vmatprep.mubr.f32.mxu0 0.0
        %1399 = vmatmul.mubr.f32.gmra.mrb[0].mxu0 %v1330
        %v1400 = vpop.f32.mrb[0].mxu0
        %v1401 = vadd.f32 0.0, %v1400
        %v1402 = vpop.f32.mrb[0].mxu0
        %1403 = vdwg.mxu0
        %v1404 = vsel %vm682, %v1401, -inf
        %1405 = vmax.xlane.f32.xlu0 %v1404
        %v1406 = vpop.xlane.xlu0 %1405
        %v1407 = vsub.f32 %v1401, %v1406
        %v1408 = vmul.f32 %v1407, 1.442695
        %v1409 = vpow.pop %v1408
        %v1410 = vsel %vm682, %v1409, 0.0
        %1411 = vadd.xlane.f32.xlu0 %v1410
        %v1412 = vpop.xlane.xlu0 %1411
        %1413 = vrot.lane.b32.xlu0 %v593, 80
        %v1414 = vpop.permute.xlu0 %1413
        %v1417 = vsel %vm682, %v1409, 0
        %1419 = vmatprep.subr.mxu0 0.0
        %1420 = vmatpush1.msra.mxu0 %v1414
        %1421 = vmatprep.subr.mxu0 0.0
        %1422 = vmatpush1.msra.mxu0 0.0
        %1423 = vmatprep.subr.mxu0 0.0
        %1424 = vmatpush1.msra.mxu0 0.0
        %1425 = vmatprep.subr.mxu0 0.0
        %1426 = vmatpush1.msra.mxu0 0.0
        %1427 = vmatprep.subr.mxu0 0.0
        %1428 = vmatpush1.msra.mxu0 0.0
        %1429 = vmatprep.subr.mxu0 0.0
        %1430 = vmatpush1.msra.mxu0 0.0
        %1431 = vmatprep.subr.mxu0 0.0
        %1432 = vmatpush1.msra.mxu0 0.0
        %1433 = vmatprep.subr.mxu0 0.0
        %1434 = vmatpush1.msra.mxu0 0.0
        %1435 = vmatprep.subr.mxu0 0.0
        %1436 = vmatpush1.msra.mxu0 0.0
        %1437 = vmatprep.subr.mxu0 0.0
        %1438 = vmatpush1.msra.mxu0 0.0
        %1439 = vmatprep.subr.mxu0 0.0
        %1440 = vmatpush1.msra.mxu0 0.0
        %1441 = vmatprep.subr.mxu0 0.0
        %1442 = vmatpush1.msra.mxu0 0.0
        %1443 = vmatprep.subr.mxu0 0.0
        %1444 = vmatpush1.msra.mxu0 0.0
        %1445 = vmatprep.subr.mxu0 0.0
        %1446 = vmatpush1.msra.mxu0 0.0
        %1447 = vmatprep.subr.mxu0 0.0
        %1448 = vmatpush1.msra.mxu0 0.0
        %1449 = vmatprep.subr.mxu0 0.0
        %1450 = vmatpush1.msra.mxu0 0.0
        %1451 = vmatprep.subr.mxu0 0.0
        %1452 = vmatpush1.msra.mxu0 0.0
        %1453 = vmatprep.subr.mxu0 0.0
        %1454 = vmatpush1.msra.mxu0 0.0
        %1455 = vmatprep.subr.mxu0 0.0
        %1456 = vmatpush1.msra.mxu0 0.0
        %1457 = vmatprep.subr.mxu0 0.0
        %1458 = vmatpush1.msra.mxu0 0.0
        %1459 = vmatprep.subr.mxu0 0.0
        %1460 = vmatpush1.msra.mxu0 0.0
        %1461 = vmatprep.subr.mxu0 0.0
        %1462 = vmatpush1.msra.mxu0 0.0
        %1463 = vmatprep.subr.mxu0 0.0
        %1464 = vmatpush1.msra.mxu0 0.0
        %1465 = vmatprep.subr.mxu0 0.0
        %1466 = vmatpush1.msra.mxu0 0.0
        %1467 = vmatprep.subr.mxu0 0.0
        %1468 = vmatpush1.msra.mxu0 0.0
        %1469 = vmatprep.subr.mxu0 0.0
        %1470 = vmatpush1.msra.mxu0 0.0
        %1471 = vmatprep.subr.mxu0 0.0
        %1472 = vmatpush1.msra.mxu0 0.0
        %1473 = vmatprep.subr.mxu0 0.0
        %1474 = vmatpush1.msra.mxu0 0.0
        %1475 = vmatprep.subr.mxu0 0.0
        %1476 = vmatpush1.msra.mxu0 0.0
        %1477 = vmatprep.subr.mxu0 0.0
        %1478 = vmatpush1.msra.mxu0 0.0
        %1479 = vmatprep.subr.mxu0 0.0
        %1480 = vmatpush1.msra.mxu0 0.0
        %1481 = vmatprep.subr.mxu0 0.0
        %1482 = vmatpush1.msra.mxu0 0.0
        %1483 = vmatprep.mubr.f32.mxu0 0.0
        %1484 = vmatmul.mubr.f32.gmra.mrb[0].mxu0 %v1417
        %v1485 = vpop.f32.mrb[0].mxu0
        %v1486 = vadd.f32 0.0, %v1485
        %v1487 = vpop.f32.mrb[0].mxu0
        %1488 = vdwg.mxu0
        %v1489 = vrcp.pop %v1412
        %v1490 = vmul.f32 %v1486, %v1489
        %v1491 = vld [vmem:[#allocation9 + $0x30] sm:$0xff]
        %v1492 = vld [vmem:[#allocation9 + $0x38] sm:$0xff]
        %v1494 = vsel %vm605, %v1490, 0
        %1496 = vmatprep.subr.mxu0 0.0
        %1497 = vmatpush1.msra.mxu0 %v1491
        %1498 = vmatprep.subr.mxu0 0.0
        %1499 = vmatpush1.msra.mxu0 %v1492
        %1500 = vmatprep.subr.mxu0 0.0
        %1501 = vmatpush1.msra.mxu0 0.0
        %1502 = vmatprep.subr.mxu0 0.0
        %1503 = vmatpush1.msra.mxu0 0.0
        %1504 = vmatprep.subr.mxu0 0.0
        %1505 = vmatpush1.msra.mxu0 0.0
        %1506 = vmatprep.subr.mxu0 0.0
        %1507 = vmatpush1.msra.mxu0 0.0
        %1508 = vmatprep.subr.mxu0 0.0
        %1509 = vmatpush1.msra.mxu0 0.0
        %1510 = vmatprep.subr.mxu0 0.0
        %1511 = vmatpush1.msra.mxu0 0.0
        %1512 = vmatprep.subr.mxu0 0.0
        %1513 = vmatpush1.msra.mxu0 0.0
        %1514 = vmatprep.subr.mxu0 0.0
        %1515 = vmatpush1.msra.mxu0 0.0
        %1516 = vmatprep.subr.mxu0 0.0
        %1517 = vmatpush1.msra.mxu0 0.0
        %1518 = vmatprep.subr.mxu0 0.0
        %1519 = vmatpush1.msra.mxu0 0.0
        %1520 = vmatprep.subr.mxu0 0.0
        %1521 = vmatpush1.msra.mxu0 0.0
        %1522 = vmatprep.subr.mxu0 0.0
        %1523 = vmatpush1.msra.mxu0 0.0
        %1524 = vmatprep.subr.mxu0 0.0
        %1525 = vmatpush1.msra.mxu0 0.0
        %1526 = vmatprep.subr.mxu0 0.0
        %1527 = vmatpush1.msra.mxu0 0.0
        %1528 = vmatprep.subr.mxu0 0.0
        %1529 = vmatpush1.msra.mxu0 0.0
        %1530 = vmatprep.subr.mxu0 0.0
        %1531 = vmatpush1.msra.mxu0 0.0
        %1532 = vmatprep.subr.mxu0 0.0
        %1533 = vmatpush1.msra.mxu0 0.0
        %1534 = vmatprep.subr.mxu0 0.0
        %1535 = vmatpush1.msra.mxu0 0.0
        %1536 = vmatprep.subr.mxu0 0.0
        %1537 = vmatpush1.msra.mxu0 0.0
        %1538 = vmatprep.subr.mxu0 0.0
        %1539 = vmatpush1.msra.mxu0 0.0
        %1540 = vmatprep.subr.mxu0 0.0
        %1541 = vmatpush1.msra.mxu0 0.0
        %1542 = vmatprep.subr.mxu0 0.0
        %1543 = vmatpush1.msra.mxu0 0.0
        %1544 = vmatprep.subr.mxu0 0.0
        %1545 = vmatpush1.msra.mxu0 0.0
        %1546 = vmatprep.subr.mxu0 0.0
        %1547 = vmatpush1.msra.mxu0 0.0
        %1548 = vmatprep.subr.mxu0 0.0
        %1549 = vmatpush1.msra.mxu0 0.0
        %1550 = vmatprep.subr.mxu0 0.0
        %1551 = vmatpush1.msra.mxu0 0.0
        %1552 = vmatprep.subr.mxu0 0.0
        %1553 = vmatpush1.msra.mxu0 0.0
        %1554 = vmatprep.subr.mxu0 0.0
        %1555 = vmatpush1.msra.mxu0 0.0
        %1556 = vmatprep.subr.mxu0 0.0
        %1557 = vmatpush1.msra.mxu0 0.0
        %1558 = vmatprep.subr.mxu0 0.0
        %1559 = vmatpush1.msra.mxu0 0.0
        %1560 = vmatprep.mubr.f32.mxu0 0.0
        %1561 = vmatmul.mubr.f32.gmra.mrb[0].mxu0 %v1494
        %v1562 = vpop.f32.mrb[0].mxu0
        %v1563 = vadd.f32 0.0, %v1562
        %v1564 = vpop.f32.mrb[0].mxu0
        %1565 = vdwg.mxu0
        %v1566 = vadd.f32 %v1325, %v1563
        %1567 = vrot.lane.b32.xlu0 %v604, 64
        %v1568 = vpop.permute.xlu0 %1567
        %1569 = vrot.lane.b32.xlu0 %v524, 64
        %v1570 = vpop.permute.xlu0 %1569
        %v1571 = vsel %vm605, %v1568, 0
        %v1573 = vsel %vm605, %v1570, 0
        %1575 = vmatprep.subr.mxu0 0.0
        %1576 = vmatpush1.xpose.msra.mxu0 %v1573
        %1577 = vmatprep.subr.mxu0 0.0
        %1578 = vmatpush1.xpose.msra.mxu0 0.0
        %1579 = vmatprep.subr.mxu0 0.0
        %1580 = vmatpush1.xpose.msra.mxu0 0.0
        %1581 = vmatprep.subr.mxu0 0.0
        %1582 = vmatpush1.xpose.msra.mxu0 0.0
        %1583 = vmatprep.subr.mxu0 0.0
        %1584 = vmatpush1.xpose.msra.mxu0 0.0
        %1585 = vmatprep.subr.mxu0 0.0
        %1586 = vmatpush1.xpose.msra.mxu0 0.0
        %1587 = vmatprep.subr.mxu0 0.0
        %1588 = vmatpush1.xpose.msra.mxu0 0.0
        %1589 = vmatprep.subr.mxu0 0.0
        %1590 = vmatpush1.xpose.msra.mxu0 0.0
        %1591 = vmatprep.subr.mxu0 0.0
        %1592 = vmatpush1.xpose.msra.mxu0 0.0
        %1593 = vmatprep.subr.mxu0 0.0
        %1594 = vmatpush1.xpose.msra.mxu0 0.0
        %1595 = vmatprep.subr.mxu0 0.0
        %1596 = vmatpush1.xpose.msra.mxu0 0.0
        %1597 = vmatprep.subr.mxu0 0.0
        %1598 = vmatpush1.xpose.msra.mxu0 0.0
        %1599 = vmatprep.subr.mxu0 0.0
        %1600 = vmatpush1.xpose.msra.mxu0 0.0
        %1601 = vmatprep.subr.mxu0 0.0
        %1602 = vmatpush1.xpose.msra.mxu0 0.0
        %1603 = vmatprep.subr.mxu0 0.0
        %1604 = vmatpush1.xpose.msra.mxu0 0.0
        %1605 = vmatprep.subr.mxu0 0.0
        %1606 = vmatpush1.xpose.msra.mxu0 0.0
        %1607 = vmatprep.subr.mxu0 0.0
        %1608 = vmatpush1.xpose.msra.mxu0 0.0
        %1609 = vmatprep.subr.mxu0 0.0
        %1610 = vmatpush1.xpose.msra.mxu0 0.0
        %1611 = vmatprep.subr.mxu0 0.0
        %1612 = vmatpush1.xpose.msra.mxu0 0.0
        %1613 = vmatprep.subr.mxu0 0.0
        %1614 = vmatpush1.xpose.msra.mxu0 0.0
        %1615 = vmatprep.subr.mxu0 0.0
        %1616 = vmatpush1.xpose.msra.mxu0 0.0
        %1617 = vmatprep.subr.mxu0 0.0
        %1618 = vmatpush1.xpose.msra.mxu0 0.0
        %1619 = vmatprep.subr.mxu0 0.0
        %1620 = vmatpush1.xpose.msra.mxu0 0.0
        %1621 = vmatprep.subr.mxu0 0.0
        %1622 = vmatpush1.xpose.msra.mxu0 0.0
        %1623 = vmatprep.subr.mxu0 0.0
        %1624 = vmatpush1.xpose.msra.mxu0 0.0
        %1625 = vmatprep.subr.mxu0 0.0
        %1626 = vmatpush1.xpose.msra.mxu0 0.0
        %1627 = vmatprep.subr.mxu0 0.0
        %1628 = vmatpush1.xpose.msra.mxu0 0.0
        %1629 = vmatprep.subr.mxu0 0.0
        %1630 = vmatpush1.xpose.msra.mxu0 0.0
        %1631 = vmatprep.subr.mxu0 0.0
        %1632 = vmatpush1.xpose.msra.mxu0 0.0
        %1633 = vmatprep.subr.mxu0 0.0
        %1634 = vmatpush1.xpose.msra.mxu0 0.0
        %1635 = vmatprep.subr.mxu0 0.0
        %1636 = vmatpush1.xpose.msra.mxu0 0.0
        %1637 = vmatprep.subr.mxu0 0.0
        %1638 = vmatpush1.xpose.msra.mxu0 0.0
        %1639 = vmatprep.mubr.f32.mxu0 0.0
        %1640 = vmatmul.mubr.f32.gmra.mrb[0].mxu0 %v1571
        %v1641 = vpop.f32.mrb[0].mxu0
        %v1642 = vadd.f32 0.0, %v1641
        %v1643 = vpop.f32.mrb[0].mxu0
        %1644 = vdwg.mxu0
        %v1645 = vsel %vm682, %v1642, -inf
        %1646 = vmax.xlane.f32.xlu0 %v1645
        %v1647 = vpop.xlane.xlu0 %1646
        %v1648 = vsub.f32 %v1642, %v1647
        %v1649 = vmul.f32 %v1648, 1.442695
        %v1650 = vpow.pop %v1649
        %v1651 = vsel %vm682, %v1650, 0.0
        %1652 = vadd.xlane.f32.xlu0 %v1651
        %v1653 = vpop.xlane.xlu0 %1652
        %1654 = vrot.lane.b32.xlu0 %v593, 64
        %v1655 = vpop.permute.xlu0 %1654
        %v1658 = vsel %vm682, %v1650, 0
        %1660 = vmatprep.subr.mxu0 0.0
        %1661 = vmatpush1.msra.mxu0 %v1655
        %1662 = vmatprep.subr.mxu0 0.0
        %1663 = vmatpush1.msra.mxu0 0.0
        %1664 = vmatprep.subr.mxu0 0.0
        %1665 = vmatpush1.msra.mxu0 0.0
        %1666 = vmatprep.subr.mxu0 0.0
        %1667 = vmatpush1.msra.mxu0 0.0
        %1668 = vmatprep.subr.mxu0 0.0
        %1669 = vmatpush1.msra.mxu0 0.0
        %1670 = vmatprep.subr.mxu0 0.0
        %1671 = vmatpush1.msra.mxu0 0.0
        %1672 = vmatprep.subr.mxu0 0.0
        %1673 = vmatpush1.msra.mxu0 0.0
        %1674 = vmatprep.subr.mxu0 0.0
        %1675 = vmatpush1.msra.mxu0 0.0
        %1676 = vmatprep.subr.mxu0 0.0
        %1677 = vmatpush1.msra.mxu0 0.0
        %1678 = vmatprep.subr.mxu0 0.0
        %1679 = vmatpush1.msra.mxu0 0.0
        %1680 = vmatprep.subr.mxu0 0.0
        %1681 = vmatpush1.msra.mxu0 0.0
        %1682 = vmatprep.subr.mxu0 0.0
        %1683 = vmatpush1.msra.mxu0 0.0
        %1684 = vmatprep.subr.mxu0 0.0
        %1685 = vmatpush1.msra.mxu0 0.0
        %1686 = vmatprep.subr.mxu0 0.0
        %1687 = vmatpush1.msra.mxu0 0.0
        %1688 = vmatprep.subr.mxu0 0.0
        %1689 = vmatpush1.msra.mxu0 0.0
        %1690 = vmatprep.subr.mxu0 0.0
        %1691 = vmatpush1.msra.mxu0 0.0
        %1692 = vmatprep.subr.mxu0 0.0
        %1693 = vmatpush1.msra.mxu0 0.0
        %1694 = vmatprep.subr.mxu0 0.0
        %1695 = vmatpush1.msra.mxu0 0.0
        %1696 = vmatprep.subr.mxu0 0.0
        %1697 = vmatpush1.msra.mxu0 0.0
        %1698 = vmatprep.subr.mxu0 0.0
        %1699 = vmatpush1.msra.mxu0 0.0
        %1700 = vmatprep.subr.mxu0 0.0
        %1701 = vmatpush1.msra.mxu0 0.0
        %1702 = vmatprep.subr.mxu0 0.0
        %1703 = vmatpush1.msra.mxu0 0.0
        %1704 = vmatprep.subr.mxu0 0.0
        %1705 = vmatpush1.msra.mxu0 0.0
        %1706 = vmatprep.subr.mxu0 0.0
        %1707 = vmatpush1.msra.mxu0 0.0
        %1708 = vmatprep.subr.mxu0 0.0
        %1709 = vmatpush1.msra.mxu0 0.0
        %1710 = vmatprep.subr.mxu0 0.0
        %1711 = vmatpush1.msra.mxu0 0.0
        %1712 = vmatprep.subr.mxu0 0.0
        %1713 = vmatpush1.msra.mxu0 0.0
        %1714 = vmatprep.subr.mxu0 0.0
        %1715 = vmatpush1.msra.mxu0 0.0
        %1716 = vmatprep.subr.mxu0 0.0
        %1717 = vmatpush1.msra.mxu0 0.0
        %1718 = vmatprep.subr.mxu0 0.0
        %1719 = vmatpush1.msra.mxu0 0.0
        %1720 = vmatprep.subr.mxu0 0.0
        %1721 = vmatpush1.msra.mxu0 0.0
        %1722 = vmatprep.subr.mxu0 0.0
        %1723 = vmatpush1.msra.mxu0 0.0
        %1724 = vmatprep.mubr.f32.mxu0 0.0
        %1725 = vmatmul.mubr.f32.gmra.mrb[0].mxu0 %v1658
        %v1726 = vpop.f32.mrb[0].mxu0
        %v1727 = vadd.f32 0.0, %v1726
        %v1728 = vpop.f32.mrb[0].mxu0
        %1729 = vdwg.mxu0
        %v1730 = vrcp.pop %v1653
        %v1731 = vmul.f32 %v1727, %v1730
        %v1732 = vld [vmem:[#allocation9 + $0x40] sm:$0xff]
        %v1733 = vld [vmem:[#allocation9 + $0x48] sm:$0xff]
        %v1735 = vsel %vm605, %v1731, 0
        %1737 = vmatprep.subr.mxu0 0.0
        %1738 = vmatpush1.msra.mxu0 %v1732
        %1739 = vmatprep.subr.mxu0 0.0
        %1740 = vmatpush1.msra.mxu0 %v1733
        %1741 = vmatprep.subr.mxu0 0.0
        %1742 = vmatpush1.msra.mxu0 0.0
        %1743 = vmatprep.subr.mxu0 0.0
        %1744 = vmatpush1.msra.mxu0 0.0
        %1745 = vmatprep.subr.mxu0 0.0
        %1746 = vmatpush1.msra.mxu0 0.0
        %1747 = vmatprep.subr.mxu0 0.0
        %1748 = vmatpush1.msra.mxu0 0.0
        %1749 = vmatprep.subr.mxu0 0.0
        %1750 = vmatpush1.msra.mxu0 0.0
        %1751 = vmatprep.subr.mxu0 0.0
        %1752 = vmatpush1.msra.mxu0 0.0
        %1753 = vmatprep.subr.mxu0 0.0
        %1754 = vmatpush1.msra.mxu0 0.0
        %1755 = vmatprep.subr.mxu0 0.0
        %1756 = vmatpush1.msra.mxu0 0.0
        %1757 = vmatprep.subr.mxu0 0.0
        %1758 = vmatpush1.msra.mxu0 0.0
        %1759 = vmatprep.subr.mxu0 0.0
        %1760 = vmatpush1.msra.mxu0 0.0
        %1761 = vmatprep.subr.mxu0 0.0
        %1762 = vmatpush1.msra.mxu0 0.0
        %1763 = vmatprep.subr.mxu0 0.0
        %1764 = vmatpush1.msra.mxu0 0.0
        %1765 = vmatprep.subr.mxu0 0.0
        %1766 = vmatpush1.msra.mxu0 0.0
        %1767 = vmatprep.subr.mxu0 0.0
        %1768 = vmatpush1.msra.mxu0 0.0
        %1769 = vmatprep.subr.mxu0 0.0
        %1770 = vmatpush1.msra.mxu0 0.0
        %1771 = vmatprep.subr.mxu0 0.0
        %1772 = vmatpush1.msra.mxu0 0.0
        %1773 = vmatprep.subr.mxu0 0.0
        %1774 = vmatpush1.msra.mxu0 0.0
        %1775 = vmatprep.subr.mxu0 0.0
        %1776 = vmatpush1.msra.mxu0 0.0
        %1777 = vmatprep.subr.mxu0 0.0
        %1778 = vmatpush1.msra.mxu0 0.0
        %1779 = vmatprep.subr.mxu0 0.0
        %1780 = vmatpush1.msra.mxu0 0.0
        %1781 = vmatprep.subr.mxu0 0.0
        %1782 = vmatpush1.msra.mxu0 0.0
        %1783 = vmatprep.subr.mxu0 0.0
        %1784 = vmatpush1.msra.mxu0 0.0
        %1785 = vmatprep.subr.mxu0 0.0
        %1786 = vmatpush1.msra.mxu0 0.0
        %1787 = vmatprep.subr.mxu0 0.0
        %1788 = vmatpush1.msra.mxu0 0.0
        %1789 = vmatprep.subr.mxu0 0.0
        %1790 = vmatpush1.msra.mxu0 0.0
        %1791 = vmatprep.subr.mxu0 0.0
        %1792 = vmatpush1.msra.mxu0 0.0
        %1793 = vmatprep.subr.mxu0 0.0
        %1794 = vmatpush1.msra.mxu0 0.0
        %1795 = vmatprep.subr.mxu0 0.0
        %1796 = vmatpush1.msra.mxu0 0.0
        %1797 = vmatprep.subr.mxu0 0.0
        %1798 = vmatpush1.msra.mxu0 0.0
        %1799 = vmatprep.subr.mxu0 0.0
        %1800 = vmatpush1.msra.mxu0 0.0
        %1801 = vmatprep.mubr.f32.mxu0 0.0
        %1802 = vmatmul.mubr.f32.gmra.mrb[0].mxu0 %v1735
        %v1803 = vpop.f32.mrb[0].mxu0
        %v1804 = vadd.f32 0.0, %v1803
        %v1805 = vpop.f32.mrb[0].mxu0
        %1806 = vdwg.mxu0
        %v1807 = vadd.f32 %v1566, %v1804
        %1808 = vrot.lane.b32.xlu0 %v604, 48
        %v1809 = vpop.permute.xlu0 %1808
        %1810 = vrot.lane.b32.xlu0 %v524, 48
        %v1811 = vpop.permute.xlu0 %1810
        %v1812 = vsel %vm605, %v1809, 0
        %v1814 = vsel %vm605, %v1811, 0
        %1816 = vmatprep.subr.mxu0 0.0
        %1817 = vmatpush1.xpose.msra.mxu0 %v1814
        %1818 = vmatprep.subr.mxu0 0.0
        %1819 = vmatpush1.xpose.msra.mxu0 0.0
        %1820 = vmatprep.subr.mxu0 0.0
        %1821 = vmatpush1.xpose.msra.mxu0 0.0
        %1822 = vmatprep.subr.mxu0 0.0
        %1823 = vmatpush1.xpose.msra.mxu0 0.0
        %1824 = vmatprep.subr.mxu0 0.0
        %1825 = vmatpush1.xpose.msra.mxu0 0.0
        %1826 = vmatprep.subr.mxu0 0.0
        %1827 = vmatpush1.xpose.msra.mxu0 0.0
        %1828 = vmatprep.subr.mxu0 0.0
        %1829 = vmatpush1.xpose.msra.mxu0 0.0
        %1830 = vmatprep.subr.mxu0 0.0
        %1831 = vmatpush1.xpose.msra.mxu0 0.0
        %1832 = vmatprep.subr.mxu0 0.0
        %1833 = vmatpush1.xpose.msra.mxu0 0.0
        %1834 = vmatprep.subr.mxu0 0.0
        %1835 = vmatpush1.xpose.msra.mxu0 0.0
        %1836 = vmatprep.subr.mxu0 0.0
        %1837 = vmatpush1.xpose.msra.mxu0 0.0
        %1838 = vmatprep.subr.mxu0 0.0
        %1839 = vmatpush1.xpose.msra.mxu0 0.0
        %1840 = vmatprep.subr.mxu0 0.0
        %1841 = vmatpush1.xpose.msra.mxu0 0.0
        %1842 = vmatprep.subr.mxu0 0.0
        %1843 = vmatpush1.xpose.msra.mxu0 0.0
        %1844 = vmatprep.subr.mxu0 0.0
        %1845 = vmatpush1.xpose.msra.mxu0 0.0
        %1846 = vmatprep.subr.mxu0 0.0
        %1847 = vmatpush1.xpose.msra.mxu0 0.0
        %1848 = vmatprep.subr.mxu0 0.0
        %1849 = vmatpush1.xpose.msra.mxu0 0.0
        %1850 = vmatprep.subr.mxu0 0.0
        %1851 = vmatpush1.xpose.msra.mxu0 0.0
        %1852 = vmatprep.subr.mxu0 0.0
        %1853 = vmatpush1.xpose.msra.mxu0 0.0
        %1854 = vmatprep.subr.mxu0 0.0
        %1855 = vmatpush1.xpose.msra.mxu0 0.0
        %1856 = vmatprep.subr.mxu0 0.0
        %1857 = vmatpush1.xpose.msra.mxu0 0.0
        %1858 = vmatprep.subr.mxu0 0.0
        %1859 = vmatpush1.xpose.msra.mxu0 0.0
        %1860 = vmatprep.subr.mxu0 0.0
        %1861 = vmatpush1.xpose.msra.mxu0 0.0
        %1862 = vmatprep.subr.mxu0 0.0
        %1863 = vmatpush1.xpose.msra.mxu0 0.0
        %1864 = vmatprep.subr.mxu0 0.0
        %1865 = vmatpush1.xpose.msra.mxu0 0.0
        %1866 = vmatprep.subr.mxu0 0.0
        %1867 = vmatpush1.xpose.msra.mxu0 0.0
        %1868 = vmatprep.subr.mxu0 0.0
        %1869 = vmatpush1.xpose.msra.mxu0 0.0
        %1870 = vmatprep.subr.mxu0 0.0
        %1871 = vmatpush1.xpose.msra.mxu0 0.0
        %1872 = vmatprep.subr.mxu0 0.0
        %1873 = vmatpush1.xpose.msra.mxu0 0.0
        %1874 = vmatprep.subr.mxu0 0.0
        %1875 = vmatpush1.xpose.msra.mxu0 0.0
        %1876 = vmatprep.subr.mxu0 0.0
        %1877 = vmatpush1.xpose.msra.mxu0 0.0
        %1878 = vmatprep.subr.mxu0 0.0
        %1879 = vmatpush1.xpose.msra.mxu0 0.0
        %1880 = vmatprep.mubr.f32.mxu0 0.0
        %1881 = vmatmul.mubr.f32.gmra.mrb[0].mxu0 %v1812
        %v1882 = vpop.f32.mrb[0].mxu0
        %v1883 = vadd.f32 0.0, %v1882
        %v1884 = vpop.f32.mrb[0].mxu0
        %1885 = vdwg.mxu0
        %v1886 = vsel %vm682, %v1883, -inf
        %1887 = vmax.xlane.f32.xlu0 %v1886
        %v1888 = vpop.xlane.xlu0 %1887
        %v1889 = vsub.f32 %v1883, %v1888
        %v1890 = vmul.f32 %v1889, 1.442695
        %v1891 = vpow.pop %v1890
        %v1892 = vsel %vm682, %v1891, 0.0
        %1893 = vadd.xlane.f32.xlu0 %v1892
        %v1894 = vpop.xlane.xlu0 %1893
        %1895 = vrot.lane.b32.xlu0 %v593, 48
        %v1896 = vpop.permute.xlu0 %1895
        %v1899 = vsel %vm682, %v1891, 0
        %1901 = vmatprep.subr.mxu0 0.0
        %1902 = vmatpush1.msra.mxu0 %v1896
        %1903 = vmatprep.subr.mxu0 0.0
        %1904 = vmatpush1.msra.mxu0 0.0
        %1905 = vmatprep.subr.mxu0 0.0
        %1906 = vmatpush1.msra.mxu0 0.0
        %1907 = vmatprep.subr.mxu0 0.0
        %1908 = vmatpush1.msra.mxu0 0.0
        %1909 = vmatprep.subr.mxu0 0.0
        %1910 = vmatpush1.msra.mxu0 0.0
        %1911 = vmatprep.subr.mxu0 0.0
        %1912 = vmatpush1.msra.mxu0 0.0
        %1913 = vmatprep.subr.mxu0 0.0
        %1914 = vmatpush1.msra.mxu0 0.0
        %1915 = vmatprep.subr.mxu0 0.0
        %1916 = vmatpush1.msra.mxu0 0.0
        %1917 = vmatprep.subr.mxu0 0.0
        %1918 = vmatpush1.msra.mxu0 0.0
        %1919 = vmatprep.subr.mxu0 0.0
        %1920 = vmatpush1.msra.mxu0 0.0
        %1921 = vmatprep.subr.mxu0 0.0
        %1922 = vmatpush1.msra.mxu0 0.0
        %1923 = vmatprep.subr.mxu0 0.0
        %1924 = vmatpush1.msra.mxu0 0.0
        %1925 = vmatprep.subr.mxu0 0.0
        %1926 = vmatpush1.msra.mxu0 0.0
        %1927 = vmatprep.subr.mxu0 0.0
        %1928 = vmatpush1.msra.mxu0 0.0
        %1929 = vmatprep.subr.mxu0 0.0
        %1930 = vmatpush1.msra.mxu0 0.0
        %1931 = vmatprep.subr.mxu0 0.0
        %1932 = vmatpush1.msra.mxu0 0.0
        %1933 = vmatprep.subr.mxu0 0.0
        %1934 = vmatpush1.msra.mxu0 0.0
        %1935 = vmatprep.subr.mxu0 0.0
        %1936 = vmatpush1.msra.mxu0 0.0
        %1937 = vmatprep.subr.mxu0 0.0
        %1938 = vmatpush1.msra.mxu0 0.0
        %1939 = vmatprep.subr.mxu0 0.0
        %1940 = vmatpush1.msra.mxu0 0.0
        %1941 = vmatprep.subr.mxu0 0.0
        %1942 = vmatpush1.msra.mxu0 0.0
        %1943 = vmatprep.subr.mxu0 0.0
        %1944 = vmatpush1.msra.mxu0 0.0
        %1945 = vmatprep.subr.mxu0 0.0
        %1946 = vmatpush1.msra.mxu0 0.0
        %1947 = vmatprep.subr.mxu0 0.0
        %1948 = vmatpush1.msra.mxu0 0.0
        %1949 = vmatprep.subr.mxu0 0.0
        %1950 = vmatpush1.msra.mxu0 0.0
        %1951 = vmatprep.subr.mxu0 0.0
        %1952 = vmatpush1.msra.mxu0 0.0
        %1953 = vmatprep.subr.mxu0 0.0
        %1954 = vmatpush1.msra.mxu0 0.0
        %1955 = vmatprep.subr.mxu0 0.0
        %1956 = vmatpush1.msra.mxu0 0.0
        %1957 = vmatprep.subr.mxu0 0.0
        %1958 = vmatpush1.msra.mxu0 0.0
        %1959 = vmatprep.subr.mxu0 0.0
        %1960 = vmatpush1.msra.mxu0 0.0
        %1961 = vmatprep.subr.mxu0 0.0
        %1962 = vmatpush1.msra.mxu0 0.0
        %1963 = vmatprep.subr.mxu0 0.0
        %1964 = vmatpush1.msra.mxu0 0.0
        %1965 = vmatprep.mubr.f32.mxu0 0.0
        %1966 = vmatmul.mubr.f32.gmra.mrb[0].mxu0 %v1899
        %v1967 = vpop.f32.mrb[0].mxu0
        %v1968 = vadd.f32 0.0, %v1967
        %v1969 = vpop.f32.mrb[0].mxu0
        %1970 = vdwg.mxu0
        %v1971 = vrcp.pop %v1894
        %v1972 = vmul.f32 %v1968, %v1971
        %v1973 = vld [vmem:[#allocation9 + $0x50] sm:$0xff]
        %v1974 = vld [vmem:[#allocation9 + $0x58] sm:$0xff]
        %v1976 = vsel %vm605, %v1972, 0
        %1978 = vmatprep.subr.mxu0 0.0
        %1979 = vmatpush1.msra.mxu0 %v1973
        %1980 = vmatprep.subr.mxu0 0.0
        %1981 = vmatpush1.msra.mxu0 %v1974
        %1982 = vmatprep.subr.mxu0 0.0
        %1983 = vmatpush1.msra.mxu0 0.0
        %1984 = vmatprep.subr.mxu0 0.0
        %1985 = vmatpush1.msra.mxu0 0.0
        %1986 = vmatprep.subr.mxu0 0.0
        %1987 = vmatpush1.msra.mxu0 0.0
        %1988 = vmatprep.subr.mxu0 0.0
        %1989 = vmatpush1.msra.mxu0 0.0
        %1990 = vmatprep.subr.mxu0 0.0
        %1991 = vmatpush1.msra.mxu0 0.0
        %1992 = vmatprep.subr.mxu0 0.0
        %1993 = vmatpush1.msra.mxu0 0.0
        %1994 = vmatprep.subr.mxu0 0.0
        %1995 = vmatpush1.msra.mxu0 0.0
        %1996 = vmatprep.subr.mxu0 0.0
        %1997 = vmatpush1.msra.mxu0 0.0
        %1998 = vmatprep.subr.mxu0 0.0
        %1999 = vmatpush1.msra.mxu0 0.0
        %2000 = vmatprep.subr.mxu0 0.0
        %2001 = vmatpush1.msra.mxu0 0.0
        %2002 = vmatprep.subr.mxu0 0.0
        %2003 = vmatpush1.msra.mxu0 0.0
        %2004 = vmatprep.subr.mxu0 0.0
        %2005 = vmatpush1.msra.mxu0 0.0
        %2006 = vmatprep.subr.mxu0 0.0
        %2007 = vmatpush1.msra.mxu0 0.0
        %2008 = vmatprep.subr.mxu0 0.0
        %2009 = vmatpush1.msra.mxu0 0.0
        %2010 = vmatprep.subr.mxu0 0.0
        %2011 = vmatpush1.msra.mxu0 0.0
        %2012 = vmatprep.subr.mxu0 0.0
        %2013 = vmatpush1.msra.mxu0 0.0
        %2014 = vmatprep.subr.mxu0 0.0
        %2015 = vmatpush1.msra.mxu0 0.0
        %2016 = vmatprep.subr.mxu0 0.0
        %2017 = vmatpush1.msra.mxu0 0.0
        %2018 = vmatprep.subr.mxu0 0.0
        %2019 = vmatpush1.msra.mxu0 0.0
        %2020 = vmatprep.subr.mxu0 0.0
        %2021 = vmatpush1.msra.mxu0 0.0
        %2022 = vmatprep.subr.mxu0 0.0
        %2023 = vmatpush1.msra.mxu0 0.0
        %2024 = vmatprep.subr.mxu0 0.0
        %2025 = vmatpush1.msra.mxu0 0.0
        %2026 = vmatprep.subr.mxu0 0.0
        %2027 = vmatpush1.msra.mxu0 0.0
        %2028 = vmatprep.subr.mxu0 0.0
        %2029 = vmatpush1.msra.mxu0 0.0
        %2030 = vmatprep.subr.mxu0 0.0
        %2031 = vmatpush1.msra.mxu0 0.0
        %2032 = vmatprep.subr.mxu0 0.0
        %2033 = vmatpush1.msra.mxu0 0.0
        %2034 = vmatprep.subr.mxu0 0.0
        %2035 = vmatpush1.msra.mxu0 0.0
        %2036 = vmatprep.subr.mxu0 0.0
        %2037 = vmatpush1.msra.mxu0 0.0
        %2038 = vmatprep.subr.mxu0 0.0
        %2039 = vmatpush1.msra.mxu0 0.0
        %2040 = vmatprep.subr.mxu0 0.0
        %2041 = vmatpush1.msra.mxu0 0.0
        %2042 = vmatprep.mubr.f32.mxu0 0.0
        %2043 = vmatmul.mubr.f32.gmra.mrb[0].mxu0 %v1976
        %v2044 = vpop.f32.mrb[0].mxu0
        %v2045 = vadd.f32 0.0, %v2044
        %v2046 = vpop.f32.mrb[0].mxu0
        %2047 = vdwg.mxu0
        %v2048 = vadd.f32 %v1807, %v2045
        %2049 = vrot.lane.b32.xlu0 %v604, 32
        %v2050 = vpop.permute.xlu0 %2049
        %2051 = vrot.lane.b32.xlu0 %v524, 32
        %v2052 = vpop.permute.xlu0 %2051
        %v2053 = vsel %vm605, %v2050, 0
        %v2055 = vsel %vm605, %v2052, 0
        %2057 = vmatprep.subr.mxu0 0.0
        %2058 = vmatpush1.xpose.msra.mxu0 %v2055
        %2059 = vmatprep.subr.mxu0 0.0
        %2060 = vmatpush1.xpose.msra.mxu0 0.0
        %2061 = vmatprep.subr.mxu0 0.0
        %2062 = vmatpush1.xpose.msra.mxu0 0.0
        %2063 = vmatprep.subr.mxu0 0.0
        %2064 = vmatpush1.xpose.msra.mxu0 0.0
        %2065 = vmatprep.subr.mxu0 0.0
        %2066 = vmatpush1.xpose.msra.mxu0 0.0
        %2067 = vmatprep.subr.mxu0 0.0
        %2068 = vmatpush1.xpose.msra.mxu0 0.0
        %2069 = vmatprep.subr.mxu0 0.0
        %2070 = vmatpush1.xpose.msra.mxu0 0.0
        %2071 = vmatprep.subr.mxu0 0.0
        %2072 = vmatpush1.xpose.msra.mxu0 0.0
        %2073 = vmatprep.subr.mxu0 0.0
        %2074 = vmatpush1.xpose.msra.mxu0 0.0
        %2075 = vmatprep.subr.mxu0 0.0
        %2076 = vmatpush1.xpose.msra.mxu0 0.0
        %2077 = vmatprep.subr.mxu0 0.0
        %2078 = vmatpush1.xpose.msra.mxu0 0.0
        %2079 = vmatprep.subr.mxu0 0.0
        %2080 = vmatpush1.xpose.msra.mxu0 0.0
        %2081 = vmatprep.subr.mxu0 0.0
        %2082 = vmatpush1.xpose.msra.mxu0 0.0
        %2083 = vmatprep.subr.mxu0 0.0
        %2084 = vmatpush1.xpose.msra.mxu0 0.0
        %2085 = vmatprep.subr.mxu0 0.0
        %2086 = vmatpush1.xpose.msra.mxu0 0.0
        %2087 = vmatprep.subr.mxu0 0.0
        %2088 = vmatpush1.xpose.msra.mxu0 0.0
        %2089 = vmatprep.subr.mxu0 0.0
        %2090 = vmatpush1.xpose.msra.mxu0 0.0
        %2091 = vmatprep.subr.mxu0 0.0
        %2092 = vmatpush1.xpose.msra.mxu0 0.0
        %2093 = vmatprep.subr.mxu0 0.0
        %2094 = vmatpush1.xpose.msra.mxu0 0.0
        %2095 = vmatprep.subr.mxu0 0.0
        %2096 = vmatpush1.xpose.msra.mxu0 0.0
        %2097 = vmatprep.subr.mxu0 0.0
        %2098 = vmatpush1.xpose.msra.mxu0 0.0
        %2099 = vmatprep.subr.mxu0 0.0
        %2100 = vmatpush1.xpose.msra.mxu0 0.0
        %2101 = vmatprep.subr.mxu0 0.0
        %2102 = vmatpush1.xpose.msra.mxu0 0.0
        %2103 = vmatprep.subr.mxu0 0.0
        %2104 = vmatpush1.xpose.msra.mxu0 0.0
        %2105 = vmatprep.subr.mxu0 0.0
        %2106 = vmatpush1.xpose.msra.mxu0 0.0
        %2107 = vmatprep.subr.mxu0 0.0
        %2108 = vmatpush1.xpose.msra.mxu0 0.0
        %2109 = vmatprep.subr.mxu0 0.0
        %2110 = vmatpush1.xpose.msra.mxu0 0.0
        %2111 = vmatprep.subr.mxu0 0.0
        %2112 = vmatpush1.xpose.msra.mxu0 0.0
        %2113 = vmatprep.subr.mxu0 0.0
        %2114 = vmatpush1.xpose.msra.mxu0 0.0
        %2115 = vmatprep.subr.mxu0 0.0
        %2116 = vmatpush1.xpose.msra.mxu0 0.0
        %2117 = vmatprep.subr.mxu0 0.0
        %2118 = vmatpush1.xpose.msra.mxu0 0.0
        %2119 = vmatprep.subr.mxu0 0.0
        %2120 = vmatpush1.xpose.msra.mxu0 0.0
        %2121 = vmatprep.mubr.f32.mxu0 0.0
        %2122 = vmatmul.mubr.f32.gmra.mrb[0].mxu0 %v2053
        %v2123 = vpop.f32.mrb[0].mxu0
        %v2124 = vadd.f32 0.0, %v2123
        %v2125 = vpop.f32.mrb[0].mxu0
        %2126 = vdwg.mxu0
        %v2127 = vsel %vm682, %v2124, -inf
        %2128 = vmax.xlane.f32.xlu0 %v2127
        %v2129 = vpop.xlane.xlu0 %2128
        %v2130 = vsub.f32 %v2124, %v2129
        %v2131 = vmul.f32 %v2130, 1.442695
        %v2132 = vpow.pop %v2131
        %v2133 = vsel %vm682, %v2132, 0.0
        %2134 = vadd.xlane.f32.xlu0 %v2133
        %v2135 = vpop.xlane.xlu0 %2134
        %2136 = vrot.lane.b32.xlu0 %v593, 32
        %v2137 = vpop.permute.xlu0 %2136
        %v2140 = vsel %vm682, %v2132, 0
        %2142 = vmatprep.subr.mxu0 0.0
        %2143 = vmatpush1.msra.mxu0 %v2137
        %2144 = vmatprep.subr.mxu0 0.0
        %2145 = vmatpush1.msra.mxu0 0.0
        %2146 = vmatprep.subr.mxu0 0.0
        %2147 = vmatpush1.msra.mxu0 0.0
        %2148 = vmatprep.subr.mxu0 0.0
        %2149 = vmatpush1.msra.mxu0 0.0
        %2150 = vmatprep.subr.mxu0 0.0
        %2151 = vmatpush1.msra.mxu0 0.0
        %2152 = vmatprep.subr.mxu0 0.0
        %2153 = vmatpush1.msra.mxu0 0.0
        %2154 = vmatprep.subr.mxu0 0.0
        %2155 = vmatpush1.msra.mxu0 0.0
        %2156 = vmatprep.subr.mxu0 0.0
        %2157 = vmatpush1.msra.mxu0 0.0
        %2158 = vmatprep.subr.mxu0 0.0
        %2159 = vmatpush1.msra.mxu0 0.0
        %2160 = vmatprep.subr.mxu0 0.0
        %2161 = vmatpush1.msra.mxu0 0.0
        %2162 = vmatprep.subr.mxu0 0.0
        %2163 = vmatpush1.msra.mxu0 0.0
        %2164 = vmatprep.subr.mxu0 0.0
        %2165 = vmatpush1.msra.mxu0 0.0
        %2166 = vmatprep.subr.mxu0 0.0
        %2167 = vmatpush1.msra.mxu0 0.0
        %2168 = vmatprep.subr.mxu0 0.0
        %2169 = vmatpush1.msra.mxu0 0.0
        %2170 = vmatprep.subr.mxu0 0.0
        %2171 = vmatpush1.msra.mxu0 0.0
        %2172 = vmatprep.subr.mxu0 0.0
        %2173 = vmatpush1.msra.mxu0 0.0
        %2174 = vmatprep.subr.mxu0 0.0
        %2175 = vmatpush1.msra.mxu0 0.0
        %2176 = vmatprep.subr.mxu0 0.0
        %2177 = vmatpush1.msra.mxu0 0.0
        %2178 = vmatprep.subr.mxu0 0.0
        %2179 = vmatpush1.msra.mxu0 0.0
        %2180 = vmatprep.subr.mxu0 0.0
        %2181 = vmatpush1.msra.mxu0 0.0
        %2182 = vmatprep.subr.mxu0 0.0
        %2183 = vmatpush1.msra.mxu0 0.0
        %2184 = vmatprep.subr.mxu0 0.0
        %2185 = vmatpush1.msra.mxu0 0.0
        %2186 = vmatprep.subr.mxu0 0.0
        %2187 = vmatpush1.msra.mxu0 0.0
        %2188 = vmatprep.subr.mxu0 0.0
        %2189 = vmatpush1.msra.mxu0 0.0
        %2190 = vmatprep.subr.mxu0 0.0
        %2191 = vmatpush1.msra.mxu0 0.0
        %2192 = vmatprep.subr.mxu0 0.0
        %2193 = vmatpush1.msra.mxu0 0.0
        %2194 = vmatprep.subr.mxu0 0.0
        %2195 = vmatpush1.msra.mxu0 0.0
        %2196 = vmatprep.subr.mxu0 0.0
        %2197 = vmatpush1.msra.mxu0 0.0
        %2198 = vmatprep.subr.mxu0 0.0
        %2199 = vmatpush1.msra.mxu0 0.0
        %2200 = vmatprep.subr.mxu0 0.0
        %2201 = vmatpush1.msra.mxu0 0.0
        %2202 = vmatprep.subr.mxu0 0.0
        %2203 = vmatpush1.msra.mxu0 0.0
        %2204 = vmatprep.subr.mxu0 0.0
        %2205 = vmatpush1.msra.mxu0 0.0
        %2206 = vmatprep.mubr.f32.mxu0 0.0
        %2207 = vmatmul.mubr.f32.gmra.mrb[0].mxu0 %v2140
        %v2208 = vpop.f32.mrb[0].mxu0
        %v2209 = vadd.f32 0.0, %v2208
        %v2210 = vpop.f32.mrb[0].mxu0
        %2211 = vdwg.mxu0
        %v2212 = vrcp.pop %v2135
        %v2213 = vmul.f32 %v2209, %v2212
        %v2214 = vld [vmem:[#allocation9 + $0x60] sm:$0xff]
        %v2215 = vld [vmem:[#allocation9 + $0x68] sm:$0xff]
        %v2217 = vsel %vm605, %v2213, 0
        %2219 = vmatprep.subr.mxu0 0.0
        %2220 = vmatpush1.msra.mxu0 %v2214
        %2221 = vmatprep.subr.mxu0 0.0
        %2222 = vmatpush1.msra.mxu0 %v2215
        %2223 = vmatprep.subr.mxu0 0.0
        %2224 = vmatpush1.msra.mxu0 0.0
        %2225 = vmatprep.subr.mxu0 0.0
        %2226 = vmatpush1.msra.mxu0 0.0
        %2227 = vmatprep.subr.mxu0 0.0
        %2228 = vmatpush1.msra.mxu0 0.0
        %2229 = vmatprep.subr.mxu0 0.0
        %2230 = vmatpush1.msra.mxu0 0.0
        %2231 = vmatprep.subr.mxu0 0.0
        %2232 = vmatpush1.msra.mxu0 0.0
        %2233 = vmatprep.subr.mxu0 0.0
        %2234 = vmatpush1.msra.mxu0 0.0
        %2235 = vmatprep.subr.mxu0 0.0
        %2236 = vmatpush1.msra.mxu0 0.0
        %2237 = vmatprep.subr.mxu0 0.0
        %2238 = vmatpush1.msra.mxu0 0.0
        %2239 = vmatprep.subr.mxu0 0.0
        %2240 = vmatpush1.msra.mxu0 0.0
        %2241 = vmatprep.subr.mxu0 0.0
        %2242 = vmatpush1.msra.mxu0 0.0
        %2243 = vmatprep.subr.mxu0 0.0
        %2244 = vmatpush1.msra.mxu0 0.0
        %2245 = vmatprep.subr.mxu0 0.0
        %2246 = vmatpush1.msra.mxu0 0.0
        %2247 = vmatprep.subr.mxu0 0.0
        %2248 = vmatpush1.msra.mxu0 0.0
        %2249 = vmatprep.subr.mxu0 0.0
        %2250 = vmatpush1.msra.mxu0 0.0
        %2251 = vmatprep.subr.mxu0 0.0
        %2252 = vmatpush1.msra.mxu0 0.0
        %2253 = vmatprep.subr.mxu0 0.0
        %2254 = vmatpush1.msra.mxu0 0.0
        %2255 = vmatprep.subr.mxu0 0.0
        %2256 = vmatpush1.msra.mxu0 0.0
        %2257 = vmatprep.subr.mxu0 0.0
        %2258 = vmatpush1.msra.mxu0 0.0
        %2259 = vmatprep.subr.mxu0 0.0
        %2260 = vmatpush1.msra.mxu0 0.0
        %2261 = vmatprep.subr.mxu0 0.0
        %2262 = vmatpush1.msra.mxu0 0.0
        %2263 = vmatprep.subr.mxu0 0.0
        %2264 = vmatpush1.msra.mxu0 0.0
        %2265 = vmatprep.subr.mxu0 0.0
        %2266 = vmatpush1.msra.mxu0 0.0
        %2267 = vmatprep.subr.mxu0 0.0
        %2268 = vmatpush1.msra.mxu0 0.0
        %2269 = vmatprep.subr.mxu0 0.0
        %2270 = vmatpush1.msra.mxu0 0.0
        %2271 = vmatprep.subr.mxu0 0.0
        %2272 = vmatpush1.msra.mxu0 0.0
        %2273 = vmatprep.subr.mxu0 0.0
        %2274 = vmatpush1.msra.mxu0 0.0
        %2275 = vmatprep.subr.mxu0 0.0
        %2276 = vmatpush1.msra.mxu0 0.0
        %2277 = vmatprep.subr.mxu0 0.0
        %2278 = vmatpush1.msra.mxu0 0.0
        %2279 = vmatprep.subr.mxu0 0.0
        %2280 = vmatpush1.msra.mxu0 0.0
        %2281 = vmatprep.subr.mxu0 0.0
        %2282 = vmatpush1.msra.mxu0 0.0
        %2283 = vmatprep.mubr.f32.mxu0 0.0
        %2284 = vmatmul.mubr.f32.gmra.mrb[0].mxu0 %v2217
        %v2285 = vpop.f32.mrb[0].mxu0
        %v2286 = vadd.f32 0.0, %v2285
        %v2287 = vpop.f32.mrb[0].mxu0
        %2288 = vdwg.mxu0
        %v2289 = vadd.f32 %v2048, %v2286
        %2290 = vrot.lane.b32.xlu0 %v604, 16
        %v2291 = vpop.permute.xlu0 %2290
        %2292 = vrot.lane.b32.xlu0 %v524, 16
        %v2293 = vpop.permute.xlu0 %2292
        %v2294 = vsel %vm605, %v2291, 0
        %v2296 = vsel %vm605, %v2293, 0
        %2298 = vmatprep.subr.mxu0 0.0
        %2299 = vmatpush1.xpose.msra.mxu0 %v2296
        %2300 = vmatprep.subr.mxu0 0.0
        %2301 = vmatpush1.xpose.msra.mxu0 0.0
        %2302 = vmatprep.subr.mxu0 0.0
        %2303 = vmatpush1.xpose.msra.mxu0 0.0
        %2304 = vmatprep.subr.mxu0 0.0
        %2305 = vmatpush1.xpose.msra.mxu0 0.0
        %2306 = vmatprep.subr.mxu0 0.0
        %2307 = vmatpush1.xpose.msra.mxu0 0.0
        %2308 = vmatprep.subr.mxu0 0.0
        %2309 = vmatpush1.xpose.msra.mxu0 0.0
        %2310 = vmatprep.subr.mxu0 0.0
        %2311 = vmatpush1.xpose.msra.mxu0 0.0
        %2312 = vmatprep.subr.mxu0 0.0
        %2313 = vmatpush1.xpose.msra.mxu0 0.0
        %2314 = vmatprep.subr.mxu0 0.0
        %2315 = vmatpush1.xpose.msra.mxu0 0.0
        %2316 = vmatprep.subr.mxu0 0.0
        %2317 = vmatpush1.xpose.msra.mxu0 0.0
        %2318 = vmatprep.subr.mxu0 0.0
        %2319 = vmatpush1.xpose.msra.mxu0 0.0
        %2320 = vmatprep.subr.mxu0 0.0
        %2321 = vmatpush1.xpose.msra.mxu0 0.0
        %2322 = vmatprep.subr.mxu0 0.0
        %2323 = vmatpush1.xpose.msra.mxu0 0.0
        %2324 = vmatprep.subr.mxu0 0.0
        %2325 = vmatpush1.xpose.msra.mxu0 0.0
        %2326 = vmatprep.subr.mxu0 0.0
        %2327 = vmatpush1.xpose.msra.mxu0 0.0
        %2328 = vmatprep.subr.mxu0 0.0
        %2329 = vmatpush1.xpose.msra.mxu0 0.0
        %2330 = vmatprep.subr.mxu0 0.0
        %2331 = vmatpush1.xpose.msra.mxu0 0.0
        %2332 = vmatprep.subr.mxu0 0.0
        %2333 = vmatpush1.xpose.msra.mxu0 0.0
        %2334 = vmatprep.subr.mxu0 0.0
        %2335 = vmatpush1.xpose.msra.mxu0 0.0
        %2336 = vmatprep.subr.mxu0 0.0
        %2337 = vmatpush1.xpose.msra.mxu0 0.0
        %2338 = vmatprep.subr.mxu0 0.0
        %2339 = vmatpush1.xpose.msra.mxu0 0.0
        %2340 = vmatprep.subr.mxu0 0.0
        %2341 = vmatpush1.xpose.msra.mxu0 0.0
        %2342 = vmatprep.subr.mxu0 0.0
        %2343 = vmatpush1.xpose.msra.mxu0 0.0
        %2344 = vmatprep.subr.mxu0 0.0
        %2345 = vmatpush1.xpose.msra.mxu0 0.0
        %2346 = vmatprep.subr.mxu0 0.0
        %2347 = vmatpush1.xpose.msra.mxu0 0.0
        %2348 = vmatprep.subr.mxu0 0.0
        %2349 = vmatpush1.xpose.msra.mxu0 0.0
        %2350 = vmatprep.subr.mxu0 0.0
        %2351 = vmatpush1.xpose.msra.mxu0 0.0
        %2352 = vmatprep.subr.mxu0 0.0
        %2353 = vmatpush1.xpose.msra.mxu0 0.0
        %2354 = vmatprep.subr.mxu0 0.0
        %2355 = vmatpush1.xpose.msra.mxu0 0.0
        %2356 = vmatprep.subr.mxu0 0.0
        %2357 = vmatpush1.xpose.msra.mxu0 0.0
        %2358 = vmatprep.subr.mxu0 0.0
        %2359 = vmatpush1.xpose.msra.mxu0 0.0
        %2360 = vmatprep.subr.mxu0 0.0
        %2361 = vmatpush1.xpose.msra.mxu0 0.0
        %2362 = vmatprep.mubr.f32.mxu0 0.0
        %2363 = vmatmul.mubr.f32.gmra.mrb[0].mxu0 %v2294
        %v2364 = vpop.f32.mrb[0].mxu0
        %v2365 = vadd.f32 0.0, %v2364
        %v2366 = vpop.f32.mrb[0].mxu0
        %2367 = vdwg.mxu0
        %v2368 = vsel %vm682, %v2365, -inf
        %2369 = vmax.xlane.f32.xlu0 %v2368
        %v2370 = vpop.xlane.xlu0 %2369
        %v2371 = vsub.f32 %v2365, %v2370
        %v2372 = vmul.f32 %v2371, 1.442695
        %v2373 = vpow.pop %v2372
        %v2374 = vsel %vm682, %v2373, 0.0
        %2375 = vadd.xlane.f32.xlu0 %v2374
        %v2376 = vpop.xlane.xlu0 %2375
        %2377 = vrot.lane.b32.xlu0 %v593, 16
        %v2378 = vpop.permute.xlu0 %2377
        %v2381 = vsel %vm682, %v2373, 0
        %2383 = vmatprep.subr.mxu0 0.0
        %2384 = vmatpush1.msra.mxu0 %v2378
        %2385 = vmatprep.subr.mxu0 0.0
        %2386 = vmatpush1.msra.mxu0 0.0
        %2387 = vmatprep.subr.mxu0 0.0
        %2388 = vmatpush1.msra.mxu0 0.0
        %2389 = vmatprep.subr.mxu0 0.0
        %2390 = vmatpush1.msra.mxu0 0.0
        %2391 = vmatprep.subr.mxu0 0.0
        %2392 = vmatpush1.msra.mxu0 0.0
        %2393 = vmatprep.subr.mxu0 0.0
        %2394 = vmatpush1.msra.mxu0 0.0
        %2395 = vmatprep.subr.mxu0 0.0
        %2396 = vmatpush1.msra.mxu0 0.0
        %2397 = vmatprep.subr.mxu0 0.0
        %2398 = vmatpush1.msra.mxu0 0.0
        %2399 = vmatprep.subr.mxu0 0.0
        %2400 = vmatpush1.msra.mxu0 0.0
        %2401 = vmatprep.subr.mxu0 0.0
        %2402 = vmatpush1.msra.mxu0 0.0
        %2403 = vmatprep.subr.mxu0 0.0
        %2404 = vmatpush1.msra.mxu0 0.0
        %2405 = vmatprep.subr.mxu0 0.0
        %2406 = vmatpush1.msra.mxu0 0.0
        %2407 = vmatprep.subr.mxu0 0.0
        %2408 = vmatpush1.msra.mxu0 0.0
        %2409 = vmatprep.subr.mxu0 0.0
        %2410 = vmatpush1.msra.mxu0 0.0
        %2411 = vmatprep.subr.mxu0 0.0
        %2412 = vmatpush1.msra.mxu0 0.0
        %2413 = vmatprep.subr.mxu0 0.0
        %2414 = vmatpush1.msra.mxu0 0.0
        %2415 = vmatprep.subr.mxu0 0.0
        %2416 = vmatpush1.msra.mxu0 0.0
        %2417 = vmatprep.subr.mxu0 0.0
        %2418 = vmatpush1.msra.mxu0 0.0
        %2419 = vmatprep.subr.mxu0 0.0
        %2420 = vmatpush1.msra.mxu0 0.0
        %2421 = vmatprep.subr.mxu0 0.0
        %2422 = vmatpush1.msra.mxu0 0.0
        %2423 = vmatprep.subr.mxu0 0.0
        %2424 = vmatpush1.msra.mxu0 0.0
        %2425 = vmatprep.subr.mxu0 0.0
        %2426 = vmatpush1.msra.mxu0 0.0
        %2427 = vmatprep.subr.mxu0 0.0
        %2428 = vmatpush1.msra.mxu0 0.0
        %2429 = vmatprep.subr.mxu0 0.0
        %2430 = vmatpush1.msra.mxu0 0.0
        %2431 = vmatprep.subr.mxu0 0.0
        %2432 = vmatpush1.msra.mxu0 0.0
        %2433 = vmatprep.subr.mxu0 0.0
        %2434 = vmatpush1.msra.mxu0 0.0
        %2435 = vmatprep.subr.mxu0 0.0
        %2436 = vmatpush1.msra.mxu0 0.0
        %2437 = vmatprep.subr.mxu0 0.0
        %2438 = vmatpush1.msra.mxu0 0.0
        %2439 = vmatprep.subr.mxu0 0.0
        %2440 = vmatpush1.msra.mxu0 0.0
        %2441 = vmatprep.subr.mxu0 0.0
        %2442 = vmatpush1.msra.mxu0 0.0
        %2443 = vmatprep.subr.mxu0 0.0
        %2444 = vmatpush1.msra.mxu0 0.0
        %2445 = vmatprep.subr.mxu0 0.0
        %2446 = vmatpush1.msra.mxu0 0.0
        %2447 = vmatprep.mubr.f32.mxu0 0.0
        %2448 = vmatmul.mubr.f32.gmra.mrb[0].mxu0 %v2381
        %v2449 = vpop.f32.mrb[0].mxu0
        %v2450 = vadd.f32 0.0, %v2449
        %v2451 = vpop.f32.mrb[0].mxu0
        %2452 = vdwg.mxu0
        %v2453 = vrcp.pop %v2376
        %v2454 = vmul.f32 %v2450, %v2453
        %v2455 = vld [vmem:[#allocation9 + $0x70] sm:$0xff]
        %v2456 = vld [vmem:[#allocation9 + $0x78] sm:$0xff]
        %v2458 = vsel %vm605, %v2454, 0
        %2460 = vmatprep.subr.mxu0 0.0
        %2461 = vmatpush1.msra.mxu0 %v2455
        %2462 = vmatprep.subr.mxu0 0.0
        %2463 = vmatpush1.msra.mxu0 %v2456
        %2464 = vmatprep.subr.mxu0 0.0
        %2465 = vmatpush1.msra.mxu0 0.0
        %2466 = vmatprep.subr.mxu0 0.0
        %2467 = vmatpush1.msra.mxu0 0.0
        %2468 = vmatprep.subr.mxu0 0.0
        %2469 = vmatpush1.msra.mxu0 0.0
        %2470 = vmatprep.subr.mxu0 0.0
        %2471 = vmatpush1.msra.mxu0 0.0
        %2472 = vmatprep.subr.mxu0 0.0
        %2473 = vmatpush1.msra.mxu0 0.0
        %2474 = vmatprep.subr.mxu0 0.0
        %2475 = vmatpush1.msra.mxu0 0.0
        %2476 = vmatprep.subr.mxu0 0.0
        %2477 = vmatpush1.msra.mxu0 0.0
        %2478 = vmatprep.subr.mxu0 0.0
        %2479 = vmatpush1.msra.mxu0 0.0
        %2480 = vmatprep.subr.mxu0 0.0
        %2481 = vmatpush1.msra.mxu0 0.0
        %2482 = vmatprep.subr.mxu0 0.0
        %2483 = vmatpush1.msra.mxu0 0.0
        %2484 = vmatprep.subr.mxu0 0.0
        %2485 = vmatpush1.msra.mxu0 0.0
        %2486 = vmatprep.subr.mxu0 0.0
        %2487 = vmatpush1.msra.mxu0 0.0
        %2488 = vmatprep.subr.mxu0 0.0
        %2489 = vmatpush1.msra.mxu0 0.0
        %2490 = vmatprep.subr.mxu0 0.0
        %2491 = vmatpush1.msra.mxu0 0.0
        %2492 = vmatprep.subr.mxu0 0.0
        %2493 = vmatpush1.msra.mxu0 0.0
        %2494 = vmatprep.subr.mxu0 0.0
        %2495 = vmatpush1.msra.mxu0 0.0
        %2496 = vmatprep.subr.mxu0 0.0
        %2497 = vmatpush1.msra.mxu0 0.0
        %2498 = vmatprep.subr.mxu0 0.0
        %2499 = vmatpush1.msra.mxu0 0.0
        %2500 = vmatprep.subr.mxu0 0.0
        %2501 = vmatpush1.msra.mxu0 0.0
        %2502 = vmatprep.subr.mxu0 0.0
        %2503 = vmatpush1.msra.mxu0 0.0
        %2504 = vmatprep.subr.mxu0 0.0
        %2505 = vmatpush1.msra.mxu0 0.0
        %2506 = vmatprep.subr.mxu0 0.0
        %2507 = vmatpush1.msra.mxu0 0.0
        %2508 = vmatprep.subr.mxu0 0.0
        %2509 = vmatpush1.msra.mxu0 0.0
        %2510 = vmatprep.subr.mxu0 0.0
        %2511 = vmatpush1.msra.mxu0 0.0
        %2512 = vmatprep.subr.mxu0 0.0
        %2513 = vmatpush1.msra.mxu0 0.0
        %2514 = vmatprep.subr.mxu0 0.0
        %2515 = vmatpush1.msra.mxu0 0.0
        %2516 = vmatprep.subr.mxu0 0.0
        %2517 = vmatpush1.msra.mxu0 0.0
        %2518 = vmatprep.subr.mxu0 0.0
        %2519 = vmatpush1.msra.mxu0 0.0
        %2520 = vmatprep.subr.mxu0 0.0
        %2521 = vmatpush1.msra.mxu0 0.0
        %2522 = vmatprep.subr.mxu0 0.0
        %2523 = vmatpush1.msra.mxu0 0.0
        %2524 = vmatprep.mubr.f32.mxu0 0.0
        %2525 = vmatmul.mubr.f32.gmra.mrb[0].mxu0 %v2458
        %v2526 = vpop.f32.mrb[0].mxu0
        %v2527 = vadd.f32 0.0, %v2526
        %v2528 = vpop.f32.mrb[0].mxu0
        %2529 = vdwg.mxu0
        %v2530 = vadd.f32 %v2289, %v2527
        %2531 = vst [vmem:[%s360] sm:$0xff] %v2530
        %p2532 = scmp.lt.s32.totalorder %s24, 1
        %s2533 = scalar_select %p2532, %s24, 1
        %s2534 = smul.addr %s2533, 8
        %s2535 = scalar_lea.vmem %s7, %s2534
        // Predicated region
        $region73: #{encoder_block.2} parent=47 // pred_check
          %p2536 = pneg %p194
        $region74: #{encoder_block.2} parent=47 // pred_check_branch
          %2538 = sbr.rel (%p2536) target = $region76
        $region75: #{encoder_block.2} parent=47 // pred_region
          _
        $region76: #{encoder_block.2} parent=47 // pred_fallthru
          _
      $region48: #{encoder_block.2} parent=5 // pred_fallthru
        _
      %p2539 = scmp.le.s32.totalorder 2, %s19
      // Predicated region
      $region77: #{encoder_block.2} parent=5 // pred_check
        %p2540 = pneg %p2539
      $region78: #{encoder_block.2} parent=5 // pred_check_branch
        %2542 = sbr.rel (%p2540) target = $region80
      $region79: #{encoder_block.2} parent=5 // pred_region
        %s2543 = ssub.s32 %s19, 2
        // Predicated region
        $region81: #{encoder_block.2} parent=79 // pred_check
          %p2544 = pneg %p200
        $region82: #{encoder_block.2} parent=79 // pred_check_branch
          %2546 = sbr.rel (%p2544) target = $region84
        $region83: #{encoder_block.2} parent=79 // pred_region
          %p2547 = scmp.lt.s32.totalorder %s25, 1
          %s2548 = scalar_select %p2547, %s25, 1
          %s2549 = smul.addr %s2548, 8
          %s2550 = scalar_lea.vmem %s7, %s2549
        $region84: #{encoder_block.2} parent=79 // pred_fallthru
          _
      $region80: #{encoder_block.2} parent=5 // pred_fallthru
        _
    $region6: #{encoder_block.2} parent=1 // loop_footer
      %s23 = sadd.s32 1, %s19
    $region7: #{encoder_block.2} parent=1 // loop_footer_branch
      %18 = sbr.rel target = $region3
    $region8: #{encoder_block.2} parent=1 // loop_exit
      _
    %2551 = vsyncpa [#allocation3], 1
    %s2552 = scalar_lea.sflag [#allocation3], 1
    %2553 = vsyncpa %s2552, 1
    %2554 = vsyncpa [#allocation5], 1
    %2555 = vsyncpa [#allocation8], 1
    %2556 = vsyncpa [#allocation11], 1

// kernel: encoder_block.3
$region0: #{encoder_block.3}
  #allocation0 [shape = 'u32[]', space=smem, size = 0x4, offset = 0x4, fixed_abs, tag = 'smem constant byte address 0x4 - core index']
  #allocation1 [shape = 'u32[144,128]{1,0:T(1,128)}', space=vmem, size = 0x12000, scoped, tag = 'internal scratch']
  #allocation2 [shape = 'f32[16,128]{1,0:T(8,128)}', space=vmem, size = 0x2000, scoped, tag = 'scratch operand']
  #allocation3 [shape = 'f32[16,128]{1,0:T(8,128)}', space=vmem, size = 0x2000, scoped, tag = 'scratch operand']
  %s0 = inlined_call_operand.vmem [shape: f32[16,128], index: 0, kind: input, shape index: {}]
  %s1 = inlined_call_operand.vmem [shape: f32[1,128], index: 1, kind: input, shape index: {}]
  %s2 = inlined_call_operand.vmem [shape: f32[1,128], index: 2, kind: input, shape index: {}]
  %s3 = inlined_call_operand.vmem [shape: f32[128,512], index: 3, kind: input, shape index: {}]
  %s4 = inlined_call_operand.vmem [shape: f32[1,512], index: 4, kind: input, shape index: {}]
  %s5 = inlined_call_operand.hbm [shape: f32[512,128], index: 5, kind: input, shape index: {}]
  %s6 = inlined_call_operand.vmem [shape: f32[1,128], index: 6, kind: input, shape index: {}]
  %s7 = inlined_call_operand.hbm [shape: f32[16,128], index: 7, kind: output, shape index: {}]
  %s8 = sld [smem:[#allocation0]]
  $region50: #{encoder_block.3} parent=0
    _
  %s10 = ssub.s32 1, %s8
  %s11 = scalar_select 0, %s10, %s8
  $region1: #{encoder_block.3} parent=0
    #allocation4 [shape = 'u8[262144]{0}', space=vmem, size = 0x40000, scoped, tag = 'input window, operand 5, single buffered']
    #allocation5 [shape = 's32[1]{0}', space=sflag, size = 0x4, scoped, tag = 'scoped memory for encoder_block.3']
    #allocation6 [shape = 's32[1]{0}', space=sflag, size = 0x4, scoped, tag = 'scoped memory for encoder_block.3']
    #allocation7 [shape = 'u8[8192]{0}', space=vmem, size = 0x2000, scoped, tag = 'output window, operand 0, single buffered']
    %12 = vsyncpa [#allocation5], 0
    %13 = vsyncpa [#allocation6], 0
    // Predicated region
    $region2: #{encoder_block.3} parent=1 // pred_check
      _
    $region3: #{encoder_block.3} parent=1 // pred_check_branch
      %15 = sbr.rel (0) target = $region5
    $region4: #{encoder_block.3} parent=1 // pred_region
      _
    $region5: #{encoder_block.3} parent=1 // pred_fallthru
      _
    // Predicated region
    $region6: #{encoder_block.3} parent=1 // pred_check
      _
    $region7: #{encoder_block.3} parent=1 // pred_check_branch
      %17 = sbr.rel (0) target = $region9
    $region8: #{encoder_block.3} parent=1 // pred_region
      _
    $region9: #{encoder_block.3} parent=1 // pred_fallthru
      _
    // Predicated region
    $region10: #{encoder_block.3} parent=1 // pred_check
      _
    $region11: #{encoder_block.3} parent=1 // pred_check_branch
      %19 = sbr.rel (0) target = $region13
    $region12: #{encoder_block.3} parent=1 // pred_region
      _
    $region13: #{encoder_block.3} parent=1 // pred_fallthru
      _
    // Predicated region
    $region14: #{encoder_block.3} parent=1 // pred_check
      _
    $region15: #{encoder_block.3} parent=1 // pred_check_branch
      %21 = sbr.rel (0) target = $region17
    $region16: #{encoder_block.3} parent=1 // pred_region
      _
    $region17: #{encoder_block.3} parent=1 // pred_fallthru
      _
    // Predicated region
    $region18: #{encoder_block.3} parent=1 // pred_check
      _
    $region19: #{encoder_block.3} parent=1 // pred_check_branch
      %23 = sbr.rel (0) target = $region21
    $region20: #{encoder_block.3} parent=1 // pred_region
      _
    $region21: #{encoder_block.3} parent=1 // pred_fallthru
      _
    // Predicated region
    $region22: #{encoder_block.3} parent=1 // pred_check
      _
    $region23: #{encoder_block.3} parent=1 // pred_check_branch
      %25 = sbr.rel (0) target = $region25
    $region24: #{encoder_block.3} parent=1 // pred_region
      %s27 = ssub.s32 8192, 8192
      %28 = vsyncadd [#allocation5], %s27
      %s29 = sshll.u32 [#allocation4], 4
      %s30 = int_to_ptr.vmem [resolvable:$true] %s29
      %35 = dma.hbm_to_vmem [thread:$0]  %s5, 8192, %s30, [#allocation5], 128, 128, 8
    $region25: #{encoder_block.3} parent=1 // pred_fallthru
      _
    // Predicated region
    $region26: #{encoder_block.3} parent=1 // pred_check
      _
    $region27: #{encoder_block.3} parent=1 // pred_check_branch
      %37 = sbr.rel (0) target = $region29
    $region28: #{encoder_block.3} parent=1 // pred_region
      _
    $region29: #{encoder_block.3} parent=1 // pred_fallthru
      _
    // Predicated region
    $region30: #{encoder_block.3} parent=1 // pred_check
      _
    $region31: #{encoder_block.3} parent=1 // pred_check_branch
      %39 = sbr.rel (0) target = $region33
    $region32: #{encoder_block.3} parent=1 // pred_region
      %40 = dma.done [#allocation5], 8192
    $region33: #{encoder_block.3} parent=1 // pred_fallthru
      _
    %p41 = scmp.eq.s32.totalorder 0, 0
    // Predicated region
    $region34: #{encoder_block.3} parent=1 // pred_check
      %p42 = pneg %p41
    $region35: #{encoder_block.3} parent=1 // pred_check_branch
      %44 = sbr.rel (%p42) target = $region37
    $region36: #{encoder_block.3} parent=1 // pred_region
      %v45 = vld [vmem:[%s0] sm:$0xff]
      %v46 = vld [vmem:[%s0 + $0x8] sm:$0xff]
      %v47 = vld [vmem:[%s1] sm:$0x1]
      %v48 = vld [vmem:[%s2] sm:$0x1]
      %49 = vadd.xlane.f32.xlu0 %v45
      %v50 = vpop.xlane.xlu0 %49
      %51 = vadd.xlane.f32.xlu0 %v46
      %v52 = vpop.xlane.xlu0 %51
      %v53 = vrcp.pop 128.0
      %v54 = vmul.f32 %v50, %v53
      %v55 = vmul.f32 %v52, %v53
      %v56 = vsub.f32 %v45, %v54
      %v57 = vsub.f32 %v46, %v55
      %v58 = vmul.f32 %v56, %v56
      %v59 = vmul.f32 %v57, %v57
      %60 = vadd.xlane.f32.xlu0 %v58
      %v61 = vpop.xlane.xlu0 %60
      %62 = vadd.xlane.f32.xlu0 %v59
      %v63 = vpop.xlane.xlu0 %62
      %v64 = vmul.f32 %v61, %v53
      %v65 = vmul.f32 %v63, %v53
      %v66 = vadd.f32 %v64, 1e-05
      %v67 = vadd.f32 %v65, 1e-05
      %v68 = vrsqrt.pop %v66
      %v69 = vrsqrt.pop %v67
      %v70 = vmul.f32 %v56, %v68
      %v71 = vmul.f32 %v57, %v69
      %v73 = vlaneseq
      %v74 = vshrl.u32 %v73, 7
      %v75 = vsub.s32 0, %v74
      %v76 = vrot.slane %v47, %v75
      %v78 = vmul.f32 %v70, %v76
      %v79 = vmul.f32 %v71, %v76
      %v81 = vlaneseq
      %v82 = vshrl.u32 %v81, 7
      %v83 = vsub.s32 0, %v82
      %v84 = vrot.slane %v48, %v83
      %v86 = vadd.f32 %v78, %v84
      %v87 = vadd.f32 %v79, %v84
      %88 = vst [vmem:[#allocation2] sm:$0xff] %v86
      %89 = vst [vmem:[#allocation2 + $0x8] sm:$0xff] %v87
      %90 = vst [vmem:[#allocation3] sm:$0xff] 0.0
      %91 = vst [vmem:[#allocation3 + $0x8] sm:$0xff] 0.0
    $region37: #{encoder_block.3} parent=1 // pred_fallthru
      _
    %v92 = vld [vmem:[#allocation2] sm:$0xff]
    %v93 = vld [vmem:[#allocation2 + $0x8] sm:$0xff]
    %v94 = vld [vmem:[%s3] sm:$0xff]
    %v95 = vld [vmem:[%s3 + $0x8] sm:$0xff]
    %v96 = vld [vmem:[%s3 + $0x10] sm:$0xff]
    %v97 = vld [vmem:[%s3 + $0x18] sm:$0xff]
    %v98 = vld [vmem:[%s3 + $0x20] sm:$0xff]
    %v99 = vld [vmem:[%s3 + $0x28] sm:$0xff]
    %v100 = vld [vmem:[%s3 + $0x30] sm:$0xff]
    %v101 = vld [vmem:[%s3 + $0x38] sm:$0xff]
    %v102 = vld [vmem:[%s3 + $0x40] sm:$0xff]
    %v103 = vld [vmem:[%s3 + $0x48] sm:$0xff]
    %v104 = vld [vmem:[%s3 + $0x50] sm:$0xff]
    %v105 = vld [vmem:[%s3 + $0x58] sm:$0xff]
    %v106 = vld [vmem:[%s3 + $0x60] sm:$0xff]
    %v107 = vld [vmem:[%s3 + $0x68] sm:$0xff]
    %v108 = vld [vmem:[%s3 + $0x70] sm:$0xff]
    %v109 = vld [vmem:[%s3 + $0x78] sm:$0xff]
    %v110 = vld [vmem:[%s3 + $0x80] sm:$0xff]
    %v111 = vld [vmem:[%s3 + $0x88] sm:$0xff]
    %v112 = vld [vmem:[%s3 + $0x90] sm:$0xff]
    %v113 = vld [vmem:[%s3 + $0x98] sm:$0xff]
    %v114 = vld [vmem:[%s3 + $0xa0] sm:$0xff]
    %v115 = vld [vmem:[%s3 + $0xa8] sm:$0xff]
    %v116 = vld [vmem:[%s3 + $0xb0] sm:$0xff]
    %v117 = vld [vmem:[%s3 + $0xb8] sm:$0xff]
    %v118 = vld [vmem:[%s3 + $0xc0] sm:$0xff]
    %v119 = vld [vmem:[%s3 + $0xc8] sm:$0xff]
    %v120 = vld [vmem:[%s3 + $0xd0] sm:$0xff]
    %v121 = vld [vmem:[%s3 + $0xd8] sm:$0xff]
    %v122 = vld [vmem:[%s3 + $0xe0] sm:$0xff]
    %v123 = vld [vmem:[%s3 + $0xe8] sm:$0xff]
    %v124 = vld [vmem:[%s3 + $0xf0] sm:$0xff]
    %v125 = vld [vmem:[%s3 + $0xf8] sm:$0xff]
    %v126 = vld [vmem:[%s3 + $0x100] sm:$0xff]
    %v127 = vld [vmem:[%s3 + $0x108] sm:$0xff]
    %v128 = vld [vmem:[%s3 + $0x110] sm:$0xff]
    %v129 = vld [vmem:[%s3 + $0x118] sm:$0xff]
    %v130 = vld [vmem:[%s3 + $0x120] sm:$0xff]
    %v131 = vld [vmem:[%s3 + $0x128] sm:$0xff]
    %v132 = vld [vmem:[%s3 + $0x130] sm:$0xff]
    %v133 = vld [vmem:[%s3 + $0x138] sm:$0xff]
    %v134 = vld [vmem:[%s3 + $0x140] sm:$0xff]
    %v135 = vld [vmem:[%s3 + $0x148] sm:$0xff]
    %v136 = vld [vmem:[%s3 + $0x150] sm:$0xff]
    %v137 = vld [vmem:[%s3 + $0x158] sm:$0xff]
    %v138 = vld [vmem:[%s3 + $0x160] sm:$0xff]
    %v139 = vld [vmem:[%s3 + $0x168] sm:$0xff]
    %v140 = vld [vmem:[%s3 + $0x170] sm:$0xff]
    %v141 = vld [vmem:[%s3 + $0x178] sm:$0xff]
    %v142 = vld [vmem:[%s3 + $0x180] sm:$0xff]
    %v143 = vld [vmem:[%s3 + $0x188] sm:$0xff]
    %v144 = vld [vmem:[%s3 + $0x190] sm:$0xff]
    %v145 = vld [vmem:[%s3 + $0x198] sm:$0xff]
    %v146 = vld [vmem:[%s3 + $0x1a0] sm:$0xff]
    %v147 = vld [vmem:[%s3 + $0x1a8] sm:$0xff]
    %v148 = vld [vmem:[%s3 + $0x1b0] sm:$0xff]
    %v149 = vld [vmem:[%s3 + $0x1b8] sm:$0xff]
    %v150 = vld [vmem:[%s3 + $0x1c0] sm:$0xff]
    %v151 = vld [vmem:[%s3 + $0x1c8] sm:$0xff]
    %v152 = vld [vmem:[%s3 + $0x1d0] sm:$0xff]
    %v153 = vld [vmem:[%s3 + $0x1d8] sm:$0xff]
    %v154 = vld [vmem:[%s3 + $0x1e0] sm:$0xff]
    %v155 = vld [vmem:[%s3 + $0x1e8] sm:$0xff]
    %v156 = vld [vmem:[%s3 + $0x1f0] sm:$0xff]
    %v157 = vld [vmem:[%s3 + $0x1f8] sm:$0xff]
    %v158 = vld [vmem:[%s4] sm:$0xf]
    %v160 = vlaneseq
    %v161 = vshrl.u32 %v160, 7
    %v162 = vsub.s32 0, %v161
    %v163 = vrot.slane %v158, %v162
    %v164 = vlaneseq
    %v165 = vshrl.u32 %v164, 7
    %v166 = vsub.s32 1, %v165
    %v167 = vrot.slane %v158, %v166
    %v168 = vlaneseq
    %v169 = vshrl.u32 %v168, 7
    %v170 = vsub.s32 2, %v169
    %v171 = vrot.slane %v158, %v170
    %v172 = vlaneseq
    %v173 = vshrl.u32 %v172, 7
    %v174 = vsub.s32 3, %v173
    %v175 = vrot.slane %v158, %v174
    %180 = vmatprep.subr.mxu0 %v95
    %181 = vmatpush1.msra.mxu0 %v94
    %182 = vmatprep.subr.mxu0 %v99
    %183 = vmatpush1.msra.mxu0 %v98
    %184 = vmatprep.subr.mxu0 %v103
    %185 = vmatpush1.msra.mxu0 %v102
    %186 = vmatprep.subr.mxu0 %v107
    %187 = vmatpush1.msra.mxu0 %v106
    %188 = vmatprep.subr.mxu0 %v111
    %189 = vmatpush1.msra.mxu0 %v110
    %190 = vmatprep.subr.mxu0 %v115
    %191 = vmatpush1.msra.mxu0 %v114
    %192 = vmatprep.subr.mxu0 %v119
    %193 = vmatpush1.msra.mxu0 %v118
    %194 = vmatprep.subr.mxu0 %v123
    %195 = vmatpush1.msra.mxu0 %v122
    %196 = vmatprep.subr.mxu0 %v127
    %197 = vmatpush1.msra.mxu0 %v126
    %198 = vmatprep.subr.mxu0 %v131
    %199 = vmatpush1.msra.mxu0 %v130
    %200 = vmatprep.subr.mxu0 %v135
    %201 = vmatpush1.msra.mxu0 %v134
    %202 = vmatprep.subr.mxu0 %v139
    %203 = vmatpush1.msra.mxu0 %v138
    %204 = vmatprep.subr.mxu0 %v143
    %205 = vmatpush1.msra.mxu0 %v142
    %206 = vmatprep.subr.mxu0 %v147
    %207 = vmatpush1.msra.mxu0 %v146
    %208 = vmatprep.subr.mxu0 %v151
    %209 = vmatpush1.msra.mxu0 %v150
    %210 = vmatprep.subr.mxu0 %v155
    %211 = vmatpush1.msra.mxu0 %v154
    %212 = vmatprep.subr.mxu0 0.0
    %213 = vmatpush1.msra.mxu0 0.0
    %214 = vmatprep.subr.mxu0 0.0
    %215 = vmatpush1.msra.mxu0 0.0
    %216 = vmatprep.subr.mxu0 0.0
    %217 = vmatpush1.msra.mxu0 0.0
    %218 = vmatprep.subr.mxu0 0.0
    %219 = vmatpush1.msra.mxu0 0.0
    %220 = vmatprep.subr.mxu0 0.0
    %221 = vmatpush1.msra.mxu0 0.0
    %222 = vmatprep.subr.mxu0 0.0
    %223 = vmatpush1.msra.mxu0 0.0
    %224 = vmatprep.subr.mxu0 0.0
    %225 = vmatpush1.msra.mxu0 0.0
    %226 = vmatprep.subr.mxu0 0.0
    %227 = vmatpush1.msra.mxu0 0.0
    %228 = vmatprep.subr.mxu0 0.0
    %229 = vmatpush1.msra.mxu0 0.0
    %230 = vmatprep.subr.mxu0 0.0
    %231 = vmatpush1.msra.mxu0 0.0
    %232 = vmatprep.subr.mxu0 0.0
    %233 = vmatpush1.msra.mxu0 0.0
    %234 = vmatprep.subr.mxu0 0.0
    %235 = vmatpush1.msra.mxu0 0.0
    %236 = vmatprep.subr.mxu0 0.0
    %237 = vmatpush1.msra.mxu0 0.0
    %238 = vmatprep.subr.mxu0 0.0
    %239 = vmatpush1.msra.mxu0 0.0
    %240 = vmatprep.subr.mxu0 0.0
    %241 = vmatpush1.msra.mxu0 0.0
    %242 = vmatprep.subr.mxu0 0.0
    %243 = vmatpush1.msra.mxu0 0.0
    %244 = vmatprep.mubr.f32.mxu0 0.0
    %245 = vmatmul.mubr.f32.gmra.mrb[0].mxu0 %v92
    %v246 = vpop.f32.mrb[0].mxu0
    %v247 = vadd.f32 %v163, %v246
    %v248 = vpop.f32.mrb[0].mxu0
    %v249 = vadd.f32 %v167, %v248
    %250 = vmatprep.mubr.f32.mxu0 0.0
    %251 = vmatmul.mubr.f32.gmra.mrb[0].mxu0 %v93
    %v252 = vpop.f32.mrb[0].mxu0
    %v253 = vadd.f32 %v163, %v252
    %v254 = vpop.f32.mrb[0].mxu0
    %v255 = vadd.f32 %v167, %v254
    %256 = vdwg.mxu0
    %257 = vmatprep.subr.mxu0 %v97
    %258 = vmatpush1.msra.mxu0 %v96
    %259 = vmatprep.subr.mxu0 %v101
    %260 = vmatpush1.msra.mxu0 %v100
    %261 = vmatprep.subr.mxu0 %v105
    %262 = vmatpush1.msra.mxu0 %v104
    %263 = vmatprep.subr.mxu0 %v109
    %264 = vmatpush1.msra.mxu0 %v108
    %265 = vmatprep.subr.mxu0 %v113
    %266 = vmatpush1.msra.mxu0 %v112
    %267 = vmatprep.subr.mxu0 %v117
    %268 = vmatpush1.msra.mxu0 %v116
    %269 = vmatprep.subr.mxu0 %v121
    %270 = vmatpush1.msra.mxu0 %v120
    %271 = vmatprep.subr.mxu0 %v125
    %272 = vmatpush1.msra.mxu0 %v124
    %273 = vmatprep.subr.mxu0 %v129
    %274 = vmatpush1.msra.mxu0 %v128
    %275 = vmatprep.subr.mxu0 %v133
    %276 = vmatpush1.msra.mxu0 %v132
    %277 = vmatprep.subr.mxu0 %v137
    %278 = vmatpush1.msra.mxu0 %v136
    %279 = vmatprep.subr.mxu0 %v141
    %280 = vmatpush1.msra.mxu0 %v140
    %281 = vmatprep.subr.mxu0 %v145
    %282 = vmatpush1.msra.mxu0 %v144
    %283 = vmatprep.subr.mxu0 %v149
    %284 = vmatpush1.msra.mxu0 %v148
    %285 = vmatprep.subr.mxu0 %v153
    %286 = vmatpush1.msra.mxu0 %v152
    %287 = vmatprep.subr.mxu0 %v157
    %288 = vmatpush1.msra.mxu0 %v156
    %289 = vmatprep.subr.mxu0 0.0
    %290 = vmatpush1.msra.mxu0 0.0
    %291 = vmatprep.subr.mxu0 0.0
    %292 = vmatpush1.msra.mxu0 0.0
    %293 = vmatprep.subr.mxu0 0.0
    %294 = vmatpush1.msra.mxu0 0.0
    %295 = vmatprep.subr.mxu0 0.0
    %296 = vmatpush1.msra.mxu0 0.0
    %297 = vmatprep.subr.mxu0 0.0
    %298 = vmatpush1.msra.mxu0 0.0
    %299 = vmatprep.subr.mxu0 0.0
    %300 = vmatpush1.msra.mxu0 0.0
    %301 = vmatprep.subr.mxu0 0.0
    %302 = vmatpush1.msra.mxu0 0.0
    %303 = vmatprep.subr.mxu0 0.0
    %304 = vmatpush1.msra.mxu0 0.0
    %305 = vmatprep.subr.mxu0 0.0
    %306 = vmatpush1.msra.mxu0 0.0
    %307 = vmatprep.subr.mxu0 0.0
    %308 = vmatpush1.msra.mxu0 0.0
    %309 = vmatprep.subr.mxu0 0.0
    %310 = vmatpush1.msra.mxu0 0.0
    %311 = vmatprep.subr.mxu0 0.0
    %312 = vmatpush1.msra.mxu0 0.0
    %313 = vmatprep.subr.mxu0 0.0
    %314 = vmatpush1.msra.mxu0 0.0
    %315 = vmatprep.subr.mxu0 0.0
    %316 = vmatpush1.msra.mxu0 0.0
    %317 = vmatprep.subr.mxu0 0.0
    %318 = vmatpush1.msra.mxu0 0.0
    %319 = vmatprep.subr.mxu0 0.0
    %320 = vmatpush1.msra.mxu0 0.0
    %321 = vmatprep.mubr.f32.mxu0 0.0
    %322 = vmatmul.mubr.f32.gmra.mrb[0].mxu0 %v92
    %v323 = vpop.f32.mrb[0].mxu0
    %v324 = vadd.f32 %v171, %v323
    %v325 = vpop.f32.mrb[0].mxu0
    %v326 = vadd.f32 %v175, %v325
    %327 = vmatprep.mubr.f32.mxu0 0.0
    %328 = vmatmul.mubr.f32.gmra.mrb[0].mxu0 %v93
    %v329 = vpop.f32.mrb[0].mxu0
    %v330 = vadd.f32 %v171, %v329
    %v331 = vpop.f32.mrb[0].mxu0
    %v332 = vadd.f32 %v175, %v331
    %333 = vdwg.mxu0
    %v334 = vmul.f32 %v247, 0.5
    %v335 = vmul.f32 %v249, 0.5
    %v336 = vmul.f32 %v324, 0.5
    %v337 = vmul.f32 %v326, 0.5
    %v338 = vmul.f32 %v253, 0.5
    %v339 = vmul.f32 %v255, 0.5
    %v340 = vmul.f32 %v330, 0.5
    %v341 = vmul.f32 %v332, 0.5
    %v342 = vmul.f32 %v247, 0.044715
    %v343 = vmul.f32 %v249, 0.044715
    %v344 = vmul.f32 %v324, 0.044715
    %v345 = vmul.f32 %v326, 0.044715
    %v346 = vmul.f32 %v253, 0.044715
    %v347 = vmul.f32 %v255, 0.044715
    %v348 = vmul.f32 %v330, 0.044715
    %v349 = vmul.f32 %v332, 0.044715
    %v350 = vmul.f32 %v342, %v247
    %v351 = vmul.f32 %v343, %v249
    %v352 = vmul.f32 %v344, %v324
    %v353 = vmul.f32 %v345, %v326
    %v354 = vmul.f32 %v346, %v253
    %v355 = vmul.f32 %v347, %v255
    %v356 = vmul.f32 %v348, %v330
    %v357 = vmul.f32 %v349, %v332
    %v358 = vmul.f32 %v350, %v247
    %v359 = vmul.f32 %v351, %v249
    %v360 = vmul.f32 %v352, %v324
    %v361 = vmul.f32 %v353, %v326
    %v362 = vmul.f32 %v354, %v253
    %v363 = vmul.f32 %v355, %v255
    %v364 = vmul.f32 %v356, %v330
    %v365 = vmul.f32 %v357, %v332
    %v366 = vadd.f32 %v247, %v358
    %v367 = vadd.f32 %v249, %v359
    %v368 = vadd.f32 %v324, %v360
    %v369 = vadd.f32 %v326, %v361
    %v370 = vadd.f32 %v253, %v362
    %v371 = vadd.f32 %v255, %v363
    %v372 = vadd.f32 %v330, %v364
    %v373 = vadd.f32 %v332, %v365
    %v374 = vmul.f32 %v366, 0.7978846
    %v375 = vmul.f32 %v367, 0.7978846
    %v376 = vmul.f32 %v368, 0.7978846
    %v377 = vmul.f32 %v369, 0.7978846
    %v378 = vmul.f32 %v370, 0.7978846
    %v379 = vmul.f32 %v371, 0.7978846
    %v380 = vmul.f32 %v372, 0.7978846
    %v381 = vmul.f32 %v373, 0.7978846
    %v382 = vtanh.pop %v374
    %v383 = vtanh.pop %v375
    %v384 = vtanh.pop %v376
    %v385 = vtanh.pop %v377
    %v386 = vtanh.pop %v378
    %v387 = vtanh.pop %v379
    %v388 = vtanh.pop %v380
    %v389 = vtanh.pop %v381
    %v390 = vadd.f32 %v382, 1.0
    %v391 = vadd.f32 %v383, 1.0
    %v392 = vadd.f32 %v384, 1.0
    %v393 = vadd.f32 %v385, 1.0
    %v394 = vadd.f32 %v386, 1.0
    %v395 = vadd.f32 %v387, 1.0
    %v396 = vadd.f32 %v388, 1.0
    %v397 = vadd.f32 %v389, 1.0
    %v398 = vmul.f32 %v334, %v390
    %v399 = vmul.f32 %v335, %v391
    %v400 = vmul.f32 %v336, %v392
    %v401 = vmul.f32 %v337, %v393
    %v402 = vmul.f32 %v338, %v394
    %v403 = vmul.f32 %v339, %v395
    %v404 = vmul.f32 %v340, %v396
    %v405 = vmul.f32 %v341, %v397
    %v406 = vld [vmem:[#allocation3] sm:$0xff]
    %v407 = vld [vmem:[#allocation3 + $0x8] sm:$0xff]
    %v408 = vld [vmem:[#allocation4] sm:$0xff]
    %v409 = vld [vmem:[#allocation4 + $0x8] sm:$0xff]
    %v410 = vld [vmem:[#allocation4 + $0x10] sm:$0xff]
    %v411 = vld [vmem:[#allocation4 + $0x18] sm:$0xff]
    %v412 = vld [vmem:[#allocation4 + $0x20] sm:$0xff]
    %v413 = vld [vmem:[#allocation4 + $0x28] sm:$0xff]
    %v414 = vld [vmem:[#allocation4 + $0x30] sm:$0xff]
    %v415 = vld [vmem:[#allocation4 + $0x38] sm:$0xff]
    %v416 = vld [vmem:[#allocation4 + $0x40] sm:$0xff]
    %v417 = vld [vmem:[#allocation4 + $0x48] sm:$0xff]
    %v418 = vld [vmem:[#allocation4 + $0x50] sm:$0xff]
    %v419 = vld [vmem:[#allocation4 + $0x58] sm:$0xff]
    %v420 = vld [vmem:[#allocation4 + $0x60] sm:$0xff]
    %v421 = vld [vmem:[#allocation4 + $0x68] sm:$0xff]
    %v422 = vld [vmem:[#allocation4 + $0x70] sm:$0xff]
    %v423 = vld [vmem:[#allocation4 + $0x78] sm:$0xff]
    %v424 = vld [vmem:[#allocation4 + $0x80] sm:$0xff]
    %v425 = vld [vmem:[#allocation4 + $0x88] sm:$0xff]
    %v426 = vld [vmem:[#allocation4 + $0x90] sm:$0xff]
    %v427 = vld [vmem:[#allocation4 + $0x98] sm:$0xff]
    %v428 = vld [vmem:[#allocation4 + $0xa0] sm:$0xff]
    %v429 = vld [vmem:[#allocation4 + $0xa8] sm:$0xff]
    %v430 = vld [vmem:[#allocation4 + $0xb0] sm:$0xff]
    %v431 = vld [vmem:[#allocation4 + $0xb8] sm:$0xff]
    %v432 = vld [vmem:[#allocation4 + $0xc0] sm:$0xff]
    %v433 = vld [vmem:[#allocation4 + $0xc8] sm:$0xff]
    %v434 = vld [vmem:[#allocation4 + $0xd0] sm:$0xff]
    %v435 = vld [vmem:[#allocation4 + $0xd8] sm:$0xff]
    %v436 = vld [vmem:[#allocation4 + $0xe0] sm:$0xff]
    %v437 = vld [vmem:[#allocation4 + $0xe8] sm:$0xff]
    %v438 = vld [vmem:[#allocation4 + $0xf0] sm:$0xff]
    %v439 = vld [vmem:[#allocation4 + $0xf8] sm:$0xff]
    %v440 = vld [vmem:[#allocation4 + $0x100] sm:$0xff]
    %v441 = vld [vmem:[#allocation4 + $0x108] sm:$0xff]
    %v442 = vld [vmem:[#allocation4 + $0x110] sm:$0xff]
    %v443 = vld [vmem:[#allocation4 + $0x118] sm:$0xff]
    %v444 = vld [vmem:[#allocation4 + $0x120] sm:$0xff]
    %v445 = vld [vmem:[#allocation4 + $0x128] sm:$0xff]
    %v446 = vld [vmem:[#allocation4 + $0x130] sm:$0xff]
    %v447 = vld [vmem:[#allocation4 + $0x138] sm:$0xff]
    %v448 = vld [vmem:[#allocation4 + $0x140] sm:$0xff]
    %v449 = vld [vmem:[#allocation4 + $0x148] sm:$0xff]
    %v450 = vld [vmem:[#allocation4 + $0x150] sm:$0xff]
    %v451 = vld [vmem:[#allocation4 + $0x158] sm:$0xff]
    %v452 = vld [vmem:[#allocation4 + $0x160] sm:$0xff]
    %v453 = vld [vmem:[#allocation4 + $0x168] sm:$0xff]
    %v454 = vld [vmem:[#allocation4 + $0x170] sm:$0xff]
    %v455 = vld [vmem:[#allocation4 + $0x178] sm:$0xff]
    %v456 = vld [vmem:[#allocation4 + $0x180] sm:$0xff]
    %v457 = vld [vmem:[#allocation4 + $0x188] sm:$0xff]
    %v458 = vld [vmem:[#allocation4 + $0x190] sm:$0xff]
    %v459 = vld [vmem:[#allocation4 + $0x198] sm:$0xff]
    %v460 = vld [vmem:[#allocation4 + $0x1a0] sm:$0xff]
    %v461 = vld [vmem:[#allocation4 + $0x1a8] sm:$0xff]
    %v462 = vld [vmem:[#allocation4 + $0x1b0] sm:$0xff]
    %v463 = vld [vmem:[#allocation4 + $0x1b8] sm:$0xff]
    %v464 = vld [vmem:[#allocation4 + $0x1c0] sm:$0xff]
    %v465 = vld [vmem:[#allocation4 + $0x1c8] sm:$0xff]
    %v466 = vld [vmem:[#allocation4 + $0x1d0] sm:$0xff]
    %v467 = vld [vmem:[#allocation4 + $0x1d8] sm:$0xff]
    %v468 = vld [vmem:[#allocation4 + $0x1e0] sm:$0xff]
    %v469 = vld [vmem:[#allocation4 + $0x1e8] sm:$0xff]
    %v470 = vld [vmem:[#allocation4 + $0x1f0] sm:$0xff]
    %v471 = vld [vmem:[#allocation4 + $0x1f8] sm:$0xff]
    %472 = vmatprep.subr.mxu0 0.0
    %473 = vmatpush1.msra.mxu0 %v408
    %474 = vmatprep.subr.mxu0 0.0
    %475 = vmatpush1.msra.mxu0 %v409
    %476 = vmatprep.subr.mxu0 0.0
    %477 = vmatpush1.msra.mxu0 %v410
    %478 = vmatprep.subr.mxu0 0.0
    %479 = vmatpush1.msra.mxu0 %v411
    %480 = vmatprep.subr.mxu0 0.0
    %481 = vmatpush1.msra.mxu0 %v412
    %482 = vmatprep.subr.mxu0 0.0
    %483 = vmatpush1.msra.mxu0 %v413
    %484 = vmatprep.subr.mxu0 0.0
    %485 = vmatpush1.msra.mxu0 %v414
    %486 = vmatprep.subr.mxu0 0.0
    %487 = vmatpush1.msra.mxu0 %v415
    %488 = vmatprep.subr.mxu0 0.0
    %489 = vmatpush1.msra.mxu0 %v416
    %490 = vmatprep.subr.mxu0 0.0
    %491 = vmatpush1.msra.mxu0 %v417
    %492 = vmatprep.subr.mxu0 0.0
    %493 = vmatpush1.msra.mxu0 %v418
    %494 = vmatprep.subr.mxu0 0.0
    %495 = vmatpush1.msra.mxu0 %v419
    %496 = vmatprep.subr.mxu0 0.0
    %497 = vmatpush1.msra.mxu0 %v420
    %498 = vmatprep.subr.mxu0 0.0
    %499 = vmatpush1.msra.mxu0 %v421
    %500 = vmatprep.subr.mxu0 0.0
    %501 = vmatpush1.msra.mxu0 %v422
    %502 = vmatprep.subr.mxu0 0.0
    %503 = vmatpush1.msra.mxu0 %v423
    %504 = vmatprep.subr.mxu0 0.0
    %505 = vmatpush1.msra.mxu0 %v424
    %506 = vmatprep.subr.mxu0 0.0
    %507 = vmatpush1.msra.mxu0 %v425
    %508 = vmatprep.subr.mxu0 0.0
    %509 = vmatpush1.msra.mxu0 %v426
    %510 = vmatprep.subr.mxu0 0.0
    %511 = vmatpush1.msra.mxu0 %v427
    %512 = vmatprep.subr.mxu0 0.0
    %513 = vmatpush1.msra.mxu0 %v428
    %514 = vmatprep.subr.mxu0 0.0
    %515 = vmatpush1.msra.mxu0 %v429
    %516 = vmatprep.subr.mxu0 0.0
    %517 = vmatpush1.msra.mxu0 %v430
    %518 = vmatprep.subr.mxu0 0.0
    %519 = vmatpush1.msra.mxu0 %v431
    %520 = vmatprep.subr.mxu0 0.0
    %521 = vmatpush1.msra.mxu0 %v432
    %522 = vmatprep.subr.mxu0 0.0
    %523 = vmatpush1.msra.mxu0 %v433
    %524 = vmatprep.subr.mxu0 0.0
    %525 = vmatpush1.msra.mxu0 %v434
    %526 = vmatprep.subr.mxu0 0.0
    %527 = vmatpush1.msra.mxu0 %v435
    %528 = vmatprep.subr.mxu0 0.0
    %529 = vmatpush1.msra.mxu0 %v436
    %530 = vmatprep.subr.mxu0 0.0
    %531 = vmatpush1.msra.mxu0 %v437
    %532 = vmatprep.subr.mxu0 0.0
    %533 = vmatpush1.msra.mxu0 %v438
    %534 = vmatprep.subr.mxu0 0.0
    %535 = vmatpush1.msra.mxu0 %v439
    %536 = vmatprep.mubr.f32.mxu0 %v399
    %537 = vmatmul.mubr.f32.gmra.mrb[0].mxu0 %v398
    %v538 = vpop.f32.mrb[0].mxu0
    %v539 = vadd.f32 0.0, %v538
    %v540 = vpop.f32.mrb[0].mxu0
    %541 = vmatprep.mubr.f32.mxu0 %v403
    %542 = vmatmul.mubr.f32.gmra.mrb[0].mxu0 %v402
    %v543 = vpop.f32.mrb[0].mxu0
    %v544 = vadd.f32 0.0, %v543
    %v545 = vpop.f32.mrb[0].mxu0
    %546 = vdwg.mxu0
    %547 = vmatprep.subr.mxu0 0.0
    %548 = vmatpush1.msra.mxu0 %v440
    %549 = vmatprep.subr.mxu0 0.0
    %550 = vmatpush1.msra.mxu0 %v441
    %551 = vmatprep.subr.mxu0 0.0
    %552 = vmatpush1.msra.mxu0 %v442
    %553 = vmatprep.subr.mxu0 0.0
    %554 = vmatpush1.msra.mxu0 %v443
    %555 = vmatprep.subr.mxu0 0.0
    %556 = vmatpush1.msra.mxu0 %v444
    %557 = vmatprep.subr.mxu0 0.0
    %558 = vmatpush1.msra.mxu0 %v445
    %559 = vmatprep.subr.mxu0 0.0
    %560 = vmatpush1.msra.mxu0 %v446
    %561 = vmatprep.subr.mxu0 0.0
    %562 = vmatpush1.msra.mxu0 %v447
    %563 = vmatprep.subr.mxu0 0.0
    %564 = vmatpush1.msra.mxu0 %v448
    %565 = vmatprep.subr.mxu0 0.0
    %566 = vmatpush1.msra.mxu0 %v449
    %567 = vmatprep.subr.mxu0 0.0
    %568 = vmatpush1.msra.mxu0 %v450
    %569 = vmatprep.subr.mxu0 0.0
    %570 = vmatpush1.msra.mxu0 %v451
    %571 = vmatprep.subr.mxu0 0.0
    %572 = vmatpush1.msra.mxu0 %v452
    %573 = vmatprep.subr.mxu0 0.0
    %574 = vmatpush1.msra.mxu0 %v453
    %575 = vmatprep.subr.mxu0 0.0
    %576 = vmatpush1.msra.mxu0 %v454
    %577 = vmatprep.subr.mxu0 0.0
    %578 = vmatpush1.msra.mxu0 %v455
    %579 = vmatprep.subr.mxu0 0.0
    %580 = vmatpush1.msra.mxu0 %v456
    %581 = vmatprep.subr.mxu0 0.0
    %582 = vmatpush1.msra.mxu0 %v457
    %583 = vmatprep.subr.mxu0 0.0
    %584 = vmatpush1.msra.mxu0 %v458
    %585 = vmatprep.subr.mxu0 0.0
    %586 = vmatpush1.msra.mxu0 %v459
    %587 = vmatprep.subr.mxu0 0.0
    %588 = vmatpush1.msra.mxu0 %v460
    %589 = vmatprep.subr.mxu0 0.0
    %590 = vmatpush1.msra.mxu0 %v461
    %591 = vmatprep.subr.mxu0 0.0
    %592 = vmatpush1.msra.mxu0 %v462
    %593 = vmatprep.subr.mxu0 0.0
    %594 = vmatpush1.msra.mxu0 %v463
    %595 = vmatprep.subr.mxu0 0.0
    %596 = vmatpush1.msra.mxu0 %v464
    %597 = vmatprep.subr.mxu0 0.0
    %598 = vmatpush1.msra.mxu0 %v465
    %599 = vmatprep.subr.mxu0 0.0
    %600 = vmatpush1.msra.mxu0 %v466
    %601 = vmatprep.subr.mxu0 0.0
    %602 = vmatpush1.msra.mxu0 %v467
    %603 = vmatprep.subr.mxu0 0.0
    %604 = vmatpush1.msra.mxu0 %v468
    %605 = vmatprep.subr.mxu0 0.0
    %606 = vmatpush1.msra.mxu0 %v469
    %607 = vmatprep.subr.mxu0 0.0
    %608 = vmatpush1.msra.mxu0 %v470
    %609 = vmatprep.subr.mxu0 0.0
    %610 = vmatpush1.msra.mxu0 %v471
    %611 = vmatprep.mubr.f32.mxu0 %v401
    %612 = vmatmul.mubr.f32.gmra.mrb[0].mxu0 %v400
    %v613 = vpop.f32.mrb[0].mxu0
    %v614 = vadd.f32 %v539, %v613
    %v615 = vpop.f32.mrb[0].mxu0
    %616 = vmatprep.mubr.f32.mxu0 %v405
    %617 = vmatmul.mubr.f32.gmra.mrb[0].mxu0 %v404
    %v618 = vpop.f32.mrb[0].mxu0
    %v619 = vadd.f32 %v544, %v618
    %v620 = vpop.f32.mrb[0].mxu0
    %621 = vdwg.mxu0
    %v622 = vadd.f32 %v406, %v614
    %v623 = vadd.f32 %v407, %v619
    %624 = vst [vmem:[#allocation3] sm:$0xff] %v622
    %625 = vst [vmem:[#allocation3 + $0x8] sm:$0xff] %v623
    // Predicated region
    $region38: #{encoder_block.3} parent=1 // pred_check
      %p626 = pneg %p41
    $region39: #{encoder_block.3} parent=1 // pred_check_branch
      %628 = sbr.rel (%p626) target = $region41
    $region40: #{encoder_block.3} parent=1 // pred_region
      %v629 = vld [vmem:[#allocation3] sm:$0xff]
      %v630 = vld [vmem:[#allocation3 + $0x8] sm:$0xff]
      %v631 = vld [vmem:[%s6] sm:$0x1]
      %v633 = vlaneseq
      %v634 = vshrl.u32 %v633, 7
      %v635 = vsub.s32 0, %v634
      %v636 = vrot.slane %v631, %v635
      %v638 = vadd.f32 %v629, %v636
      %v639 = vadd.f32 %v630, %v636
      %v640 = vld [vmem:[%s0] sm:$0xff]
      %v641 = vld [vmem:[%s0 + $0x8] sm:$0xff]
      %v642 = vadd.f32 %v638, %v640
      %v643 = vadd.f32 %v639, %v641
      %644 = vst [vmem:[#allocation7] sm:$0xff] %v642
      %645 = vst [vmem:[#allocation7 + $0x8] sm:$0xff] %v643
    $region41: #{encoder_block.3} parent=1 // pred_fallthru
      _
    // Predicated region
    $region42: #{encoder_block.3} parent=1 // pred_check
      _
    $region43: #{encoder_block.3} parent=1 // pred_check_branch
      %647 = sbr.rel (0) target = $region45
    $region44: #{encoder_block.3} parent=1 // pred_region
      %s649 = ssub.s32 256, 256
      %650 = vsyncadd [#allocation6], %s649
      %s651 = sshll.u32 [#allocation7], 4
      %s652 = int_to_ptr.vmem [resolvable:$true] %s651
      %657 = dma.vmem_to_hbm [thread:$0]  %s652, 256, %s7, [#allocation6], 128, 128, 8
    $region45: #{encoder_block.3} parent=1 // pred_fallthru
      _
    // Predicated region
    $region46: #{encoder_block.3} parent=1 // pred_check
      _
    $region47: #{encoder_block.3} parent=1 // pred_check_branch
      %659 = sbr.rel (0) target = $region49
    $region48: #{encoder_block.3} parent=1 // pred_region
      %660 = dma.done [#allocation6], 256
    $region49: #{encoder_block.3} parent=1 // pred_fallthru
      _
    %661 = vsyncpa [#allocation5], 1
    %662 = vsyncpa [#allocation6], 1

</llo_original>
